<compile_context>
chip_gen: v5e
topology: v5e:2x2
jax: 0.10.0
libtpu: 0.0.40
codegen_flags: <defaults>
</compile_context>

<pallas_src>
import math
import functools

import jax
import jax.numpy as jnp
from jax import lax
from jax.experimental import pallas as pl
from jax.experimental.pallas import tpu as pltpu


# Fixed ordering of the (fused) parameter tensors handed to the kernel.
_PARAM_NAMES = (
    "wqkv1", "bqkv1", "wo1", "bo1", "g1", "be1",
    "wq2", "bq2", "wkv2", "bkv2", "wo2", "bo2", "g2", "be2",
    "wf1", "bf1", "wf2", "bf2", "g3", "be3",
)

_BF16 = jnp.bfloat16


# ---------------------------------------------------------------------------
# In-kernel helpers (operate on per-batch 2D tiles living in VMEM)
# ---------------------------------------------------------------------------
def _layernorm(x, gamma, beta, eps):
    # Matches the custom PyTorch LayerNorm: mean over last dim, *unbiased*
    # variance (torch.var default), eps added OUTSIDE the sqrt.
    # Two-pass (centered) variance: avoids the cancellation risk of the
    # sum-of-squares form in f32.  All f32 elementwise.
    n = x.shape[-1]
    mean = jnp.sum(x, axis=-1, keepdims=True) * (1.0 / n)
    d = x - mean
    var = jnp.sum(d * d, axis=-1, keepdims=True) * (1.0 / (n - 1))
    inv = 1.0 / (jnp.sqrt(var) + eps)          # (S,1) divides only
    return gamma * (d * inv) + beta


def _attention_into(attn_ref, q, k, v, mbias, num_heads):
    """Multi-head attention; q already carries 1/sqrt(dk).

    q, k, v: (S, D) f32.  mbias: (S, S) f32 additive bias or None.
    Each head's PV result is written directly into the f32 VMEM scratch slab
    `attn_ref` at its static lane offset — no concat, bounded live ranges.
    """
    S, D = q.shape
    dk = D // num_heads
    qb = q.astype(_BF16)
    kb = k.astype(_BF16)
    vb = v.astype(_BF16)
    for h in range(num_heads):                      # static unrolled loop
        lo = h * dk
        qh = qb[:, lo:lo + dk]
        kh = kb[:, lo:lo + dk]
        vh = vb[:, lo:lo + dk]
        # q @ k^T without an explicit transpose: contract the feature axis of both.
        s = lax.dot_general(qh, kh, (((1,), (1,)), ((), ())),
                            preferred_element_type=jnp.float32)
        if mbias is not None:
            s = s + mbias                            # additive 0 / -1e9 bias
        s = s - jnp.max(s, axis=-1, keepdims=True)
        e = jnp.exp(s)                               # f32 softmax math
        pmat = e * pl.reciprocal(jnp.sum(e, axis=-1, keepdims=True), approx=True)
        o = jnp.dot(pmat.astype(_BF16), vh, preferred_element_type=jnp.float32)
        attn_ref[:, lo:lo + dk] = o                  # static lane-slice store


def _decoder_body(x, enc, mbias, pr, attn_ref, num_heads, eps, ff_chunk):
    """One batch element.  x, enc: (S, D) f32.  pr: dict of resident param refs."""
    D = x.shape[-1]

    # --- 1. masked self-attention + residual (pre-norm; dropout = identity)
    h1 = _layernorm(x, pr["g1"][...], pr["be1"][...], eps).astype(_BF16)
    qkv = jnp.dot(h1, pr["wqkv1"][...],
                  preferred_element_type=jnp.float32) + pr["bqkv1"][...]
    _attention_into(attn_ref, qkv[:, :D], qkv[:, D:2 * D], qkv[:, 2 * D:],
                    mbias, num_heads)
    x = x + (jnp.dot(attn_ref[...].astype(_BF16), pr["wo1"][...],
                     preferred_element_type=jnp.float32) + pr["bo1"][...])

    # --- 2. cross-attention over encoder output + residual (no mask)
    h2 = _layernorm(x, pr["g2"][...], pr["be2"][...], eps).astype(_BF16)
    q2 = jnp.dot(h2, pr["wq2"][...],
                 preferred_element_type=jnp.float32) + pr["bq2"][...]
    kv = jnp.dot(enc.astype(_BF16), pr["wkv2"][...],
                 preferred_element_type=jnp.float32) + pr["bkv2"][...]
    _attention_into(attn_ref, q2, kv[:, :D], kv[:, D:], None, num_heads)
    x = x + (jnp.dot(attn_ref[...].astype(_BF16), pr["wo2"][...],
                     preferred_element_type=jnp.float32) + pr["bo2"][...])

    # --- 3. feed-forward + residual, chunked over d_ff so the (S, d_ff)
    #        intermediate never materializes whole.
    h3 = _layernorm(x, pr["g3"][...], pr["be3"][...], eps).astype(_BF16)
    d_ff = pr["wf1"].shape[-1]
    y = x + pr["bf2"][...]
    for c0 in range(0, d_ff, ff_chunk):              # static chunk loop
        a = jnp.dot(h3, pr["wf1"][:, c0:c0 + ff_chunk],
                    preferred_element_type=jnp.float32) + pr["bf1"][:, c0:c0 + ff_chunk]
        r = jnp.maximum(a, 0.0).astype(_BF16)
        y = y + jnp.dot(r, pr["wf2"][c0:c0 + ff_chunk, :],
                        preferred_element_type=jnp.float32)
    return y


# ---------------------------------------------------------------------------
# Pallas kernel: TB batch elements per grid step
# ---------------------------------------------------------------------------
def decoder_block_kernel(num_heads, eps, ff_chunk, x_ref, enc_ref, mbias_ref, *rest):
    n_params = len(_PARAM_NAMES)
    pr = dict(zip(_PARAM_NAMES, rest[:n_params]))
    out_ref = rest[n_params]
    attn_ref = rest[n_params + 1]                    # (S, D) f32 VMEM scratch

    mbias = mbias_ref[...].astype(jnp.float32)       # bf16 -> f32 once per step
    tb = x_ref.shape[0]
    for t in range(tb):                              # static unroll over batch tile
        x = x_ref[t].astype(jnp.float32)             # (S, D)
        enc = enc_ref[t].astype(jnp.float32)         # (S, D)
        y = _decoder_body(x, enc, mbias, pr, attn_ref, num_heads, eps, ff_chunk)
        out_ref[t] = y.astype(out_ref.dtype)


# ---------------------------------------------------------------------------
# Host-side parameter fusion (done once, outside the kernel)
# ---------------------------------------------------------------------------
def _fuse_params(params, num_heads, d_model):
    dk = d_model // num_heads
    scale = jnp.float32(1.0 / math.sqrt(dk))
    f32 = jnp.float32
    fused = {
        # 1/sqrt(dk) folded into the q projection (first D columns of the fused weight)
        "wqkv1": jnp.concatenate(
            [params["wq1"] * scale, params["wk1"], params["wv1"]], axis=1).astype(_BF16),
        "bqkv1": jnp.concatenate(
            [params["bq1"] * scale, params["bk1"], params["bv1"]], axis=1).astype(f32),
        "wo1": params["wo1"].astype(_BF16), "bo1": params["bo1"].astype(f32),
        "g1": params["g1"].astype(f32), "be1": params["be1"].astype(f32),
        "wq2": (params["wq2"] * scale).astype(_BF16),
        "bq2": (params["bq2"] * scale).astype(f32),
        "wkv2": jnp.concatenate([params["wk2"], params["wv2"]], axis=1).astype(_BF16),
        "bkv2": jnp.concatenate([params["bk2"], params["bv2"]], axis=1).astype(f32),
        "wo2": params["wo2"].astype(_BF16), "bo2": params["bo2"].astype(f32),
        "g2": params["g2"].astype(f32), "be2": params["be2"].astype(f32),
        "wf1": params["wf1"].astype(_BF16), "bf1": params["bf1"].astype(f32),
        "wf2": params["wf2"].astype(_BF16), "bf2": params["bf2"].astype(f32),
        "g3": params["g3"].astype(f32), "be3": params["be3"].astype(f32),
    }
    return [fused[name] for name in _PARAM_NAMES]


def _vmem_limit_bytes():
    """Generation-aware VMEM request: capacity - 16 MiB headroom, capped at 100 MiB."""
    cap = 128 * 1024 * 1024
    try:
        info = pltpu.get_tpu_info()
        cap = int(getattr(info, "vmem_capacity_bytes", cap))
    except Exception:
        pass
    return int(min(max(cap - 16 * 1024 * 1024, 32 * 1024 * 1024), 100 * 1024 * 1024))


def decoder_block(x, enc_out, tgt_mask, params, *, num_heads, eps,
                  ff_chunk=512, batch_tile_bytes=512 * 1024):
    """x, enc_out: [B, S, D]; tgt_mask: [1, 1, S, S]; params: dict (see init_params)."""
    B, S, D = x.shape
    assert D % num_heads == 0
    d_ff = params["wf1"].shape[-1]
    ff_chunk = min(ff_chunk, d_ff)
    if d_ff % ff_chunk != 0:
        ff_chunk = d_ff

    # Additive mask bias computed once host-side (0 keep / -1e9 drop), stored bf16.
    # TODO(synk): when the mask is known causal, generate it in-kernel from
    # lax.broadcasted_iota and drop this operand (saves S^2 VMEM + one DMA).
    mbias = jnp.where(tgt_mask.reshape(S, S) == 0,
                      jnp.float32(-1000000000.0), jnp.float32(0.0)).astype(_BF16)
    param_list = _fuse_params(params, num_heads, D)

    # Several batch elements per grid step while the per-batch tile stays small.
    per_batch = S * D * x.dtype.itemsize
    tb = 1
    for cand in range(B, 0, -1):
        if B % cand == 0 and cand * per_batch <= batch_tile_bytes:
            tb = cand
            break
    grid = (B // tb,)

    kernel = functools.partial(decoder_block_kernel, num_heads, eps, ff_chunk)

    # Grid-invariant operands (mask bias + fused weights): whole-array VMEM
    # residency, no per-grid-step blocking / double-buffering.
    resident = pl.BlockSpec(memory_space=pltpu.MemorySpace.VMEM)
    in_specs = [
        pl.BlockSpec((tb, S, D), lambda b: (b, 0, 0)),   # x           (batch tile)
        pl.BlockSpec((tb, S, D), lambda b: (b, 0, 0)),   # encoder out (batch tile)
        resident,                                         # additive mask bias (bf16)
    ] + [resident] * len(param_list)                      # fused parameters

    return pl.pallas_call(
        kernel,
        out_shape=jax.ShapeDtypeStruct((B, S, D), x.dtype),
        grid=grid,
        in_specs=in_specs,
        out_specs=pl.BlockSpec((tb, S, D), lambda b: (b, 0, 0)),
        scratch_shapes=[pltpu.VMEM((S, D), jnp.float32)],   # per-head PV slab
        compiler_params=pltpu.CompilerParams(
            dimension_semantics=("parallel",),
            vmem_limit_bytes=_vmem_limit_bytes(),
        ),
    )(x, enc_out, mbias, *param_list)


# ---------------------------------------------------------------------------
# Deterministic parameter init (shapes follow the nn.Module __init__)
# ---------------------------------------------------------------------------
def init_params(key, d_model, d_ff):
    keys = jax.random.split(key, 32)
    ki = iter(keys)

    def lin(in_f, out_f):
        bound = 1.0 / math.sqrt(in_f)
        w = jax.random.uniform(next(ki), (in_f, out_f), jnp.float32, -bound, bound)
        b = jax.random.uniform(next(ki), (1, out_f), jnp.float32, -bound, bound)
        return w, b

    p = {}
    # masked self-attention projections
    p["wq1"], p["bq1"] = lin(d_model, d_model)
    p["wk1"], p["bk1"] = lin(d_model, d_model)
    p["wv1"], p["bv1"] = lin(d_model, d_model)
    p["wo1"], p["bo1"] = lin(d_model, d_model)
    p["g1"] = jnp.ones((1, d_model), jnp.float32)
    p["be1"] = jnp.zeros((1, d_model), jnp.float32)
    # cross-attention projections
    p["wq2"], p["bq2"] = lin(d_model, d_model)
    p["wk2"], p["bk2"] = lin(d_model, d_model)
    p["wv2"], p["bv2"] = lin(d_model, d_model)
    p["wo2"], p["bo2"] = lin(d_model, d_model)
    p["g2"] = jnp.ones((1, d_model), jnp.float32)
    p["be2"] = jnp.zeros((1, d_model), jnp.float32)
    # feed-forward
    p["wf1"], p["bf1"] = lin(d_model, d_ff)
    p["wf2"], p["bf2"] = lin(d_ff, d_model)
    p["g3"] = jnp.ones((1, d_model), jnp.float32)
    p["be3"] = jnp.zeros((1, d_model), jnp.float32)
    return p


# ---------------------------------------------------------------------------
# Pure-JAX f32 reference mirroring the PyTorch module exactly (unfused params,
# scale applied after the score matmul, masked_fill semantics, two-pass var).
# ---------------------------------------------------------------------------
def _layernorm_ref(x, gamma, beta, eps):
    mean = jnp.mean(x, axis=-1, keepdims=True)
    d = x - mean
    var = jnp.sum(d * d, axis=-1, keepdims=True) / (x.shape[-1] - 1)
    return gamma * d / (jnp.sqrt(var) + eps) + beta


def _mha_ref(q_in, k_in, v_in, wq, bq, wk, bk, wv, bv, wo, bo, mask, num_heads):
    d_model = q_in.shape[-1]
    dk = d_model // num_heads
    q = q_in @ wq + bq
    k = k_in @ wk + bk
    v = v_in @ wv + bv
    outs = []
    for h in range(num_heads):
        qh = q[:, h * dk:(h + 1) * dk]
        kh = k[:, h * dk:(h + 1) * dk]
        vh = v[:, h * dk:(h + 1) * dk]
        s = qh @ kh.T / math.sqrt(dk)
        if mask is not None:
            s = jnp.where(mask == 0, jnp.float32(-1000000000.0), s)
        pmat = jax.nn.softmax(s, axis=-1)
        outs.append(pmat @ vh)
    o = jnp.concatenate(outs, axis=-1)
    return o @ wo + bo


def decoder_block_ref(x, enc_out, tgt_mask, params, *, num_heads, eps):
    S = x.shape[1]
    mask2d = tgt_mask.reshape(S, S)

    def one(xb, eb):
        h1 = _layernorm_ref(xb, params["g1"], params["be1"], eps)
        xb = xb + _mha_ref(h1, h1, h1,
                           params["wq1"], params["bq1"], params["wk1"], params["bk1"],
                           params["wv1"], params["bv1"], params["wo1"], params["bo1"],
                           mask2d, num_heads)
        h2 = _layernorm_ref(xb, params["g2"], params["be2"], eps)
        xb = xb + _mha_ref(h2, eb, eb,
                           params["wq2"], params["bq2"], params["wk2"], params["bk2"],
                           params["wv2"], params["bv2"], params["wo2"], params["bo2"],
                           None, num_heads)
        h3 = _layernorm_ref(xb, params["g3"], params["be3"], eps)
        ff = jnp.maximum(h3 @ params["wf1"] + params["bf1"], 0.0)
        return xb + ff @ params["wf2"] + params["bf2"]

    return jnp.stack([one(x[b].astype(jnp.float32), enc_out[b].astype(jnp.float32))
                      for b in range(x.shape[0])], axis=0)


if __name__ == "__main__":
    B, S, D, H, DFF = 2, 8, 32, 4, 64
    EPS = 1e-6

    root = jax.random.PRNGKey(0)
    kx, kenc, kp = jax.random.split(root, 3)

    x = jax.random.normal(kx, (B, S, D), jnp.float32)
    enc_out = jax.random.normal(kenc, (B, S, D), jnp.float32)
    # causal target mask [1, 1, S, S]
    tgt_mask = jnp.tril(jnp.ones((S, S), jnp.float32)).reshape(1, 1, S, S)

    params = init_params(kp, D, DFF)

    out = decoder_block(x, enc_out, tgt_mask, params, num_heads=H, eps=EPS)
    out = jax.block_until_ready(out)

    ref = decoder_block_ref(x, enc_out, tgt_mask, params, num_heads=H, eps=EPS)
    assert out.shape == (B, S, D)
    err_max = float(jnp.max(jnp.abs(out - ref)))
    err_mean = float(jnp.mean(jnp.abs(out - ref)))
    # Tolerances loosened vs. the old 2e-4 f32 bound: MXU operands are now bf16
    # (f32 accumulate) and the softmax uses the approx EUP reciprocal.
    assert err_max < 1.5e-1, f"max abs err {err_max}"
    assert err_mean < 3e-2, f"mean abs err {err_mean}"

    print("KERNEL_OK")
</pallas_src>

<mosaic_0001>
module attributes {stable_mosaic.version = 11 : i64} {
  func.func @decoder_block_kernel(%arg0: i32, %arg1: memref<2x8x32xf32, #tpu.memory_space<vmem>>, %arg2: memref<2x8x32xf32, #tpu.memory_space<vmem>>, %arg3: memref<8x8xbf16, #tpu.memory_space<vmem>>, %arg4: memref<32x96xbf16, #tpu.memory_space<vmem>>, %arg5: memref<1x96xf32, #tpu.memory_space<vmem>>, %arg6: memref<32x32xbf16, #tpu.memory_space<vmem>>, %arg7: memref<1x32xf32, #tpu.memory_space<vmem>>, %arg8: memref<1x32xf32, #tpu.memory_space<vmem>>, %arg9: memref<1x32xf32, #tpu.memory_space<vmem>>, %arg10: memref<32x32xbf16, #tpu.memory_space<vmem>>, %arg11: memref<1x32xf32, #tpu.memory_space<vmem>>, %arg12: memref<32x64xbf16, #tpu.memory_space<vmem>>, %arg13: memref<1x64xf32, #tpu.memory_space<vmem>>, %arg14: memref<32x32xbf16, #tpu.memory_space<vmem>>, %arg15: memref<1x32xf32, #tpu.memory_space<vmem>>, %arg16: memref<1x32xf32, #tpu.memory_space<vmem>>, %arg17: memref<1x32xf32, #tpu.memory_space<vmem>>, %arg18: memref<32x64xbf16, #tpu.memory_space<vmem>>, %arg19: memref<1x64xf32, #tpu.memory_space<vmem>>, %arg20: memref<64x32xbf16, #tpu.memory_space<vmem>>, %arg21: memref<1x32xf32, #tpu.memory_space<vmem>>, %arg22: memref<1x32xf32, #tpu.memory_space<vmem>>, %arg23: memref<1x32xf32, #tpu.memory_space<vmem>>, %arg24: memref<2x8x32xf32, #tpu.memory_space<vmem>>, %arg25: memref<8x32xf32, #tpu.memory_space<vmem>>) attributes {dimension_semantics = [#tpu.dimension_semantics<parallel>], iteration_bounds = array<i64: 1>, scalar_prefetch = 0 : i64, scratch_operands = 1 : i64, tpu.core_type = #tpu.core_type<tc>, window_params = [{transform_indices = @transform_0, window_bounds = array<i64: 2, 8, 32>}, {transform_indices = @transform_1, window_bounds = array<i64: 2, 8, 32>}, {pipeline_mode = #tpu.pipeline_mode<synchronous>, transform_indices = @transform_2, window_bounds = array<i64: 8, 8>}, {pipeline_mode = #tpu.pipeline_mode<synchronous>, transform_indices = @transform_3, window_bounds = array<i64: 32, 96>}, {pipeline_mode = #tpu.pipeline_mode<synchronous>, transform_indices = @transform_4, window_bounds = array<i64: 1, 96>}, {pipeline_mode = #tpu.pipeline_mode<synchronous>, transform_indices = @transform_5, window_bounds = array<i64: 32, 32>}, {pipeline_mode = #tpu.pipeline_mode<synchronous>, transform_indices = @transform_6, window_bounds = array<i64: 1, 32>}, {pipeline_mode = #tpu.pipeline_mode<synchronous>, transform_indices = @transform_7, window_bounds = array<i64: 1, 32>}, {pipeline_mode = #tpu.pipeline_mode<synchronous>, transform_indices = @transform_8, window_bounds = array<i64: 1, 32>}, {pipeline_mode = #tpu.pipeline_mode<synchronous>, transform_indices = @transform_9, window_bounds = array<i64: 32, 32>}, {pipeline_mode = #tpu.pipeline_mode<synchronous>, transform_indices = @transform_10, window_bounds = array<i64: 1, 32>}, {pipeline_mode = #tpu.pipeline_mode<synchronous>, transform_indices = @transform_11, window_bounds = array<i64: 32, 64>}, {pipeline_mode = #tpu.pipeline_mode<synchronous>, transform_indices = @transform_12, window_bounds = array<i64: 1, 64>}, {pipeline_mode = #tpu.pipeline_mode<synchronous>, transform_indices = @transform_13, window_bounds = array<i64: 32, 32>}, {pipeline_mode = #tpu.pipeline_mode<synchronous>, transform_indices = @transform_14, window_bounds = array<i64: 1, 32>}, {pipeline_mode = #tpu.pipeline_mode<synchronous>, transform_indices = @transform_15, window_bounds = array<i64: 1, 32>}, {pipeline_mode = #tpu.pipeline_mode<synchronous>, transform_indices = @transform_16, window_bounds = array<i64: 1, 32>}, {pipeline_mode = #tpu.pipeline_mode<synchronous>, transform_indices = @transform_17, window_bounds = array<i64: 32, 64>}, {pipeline_mode = #tpu.pipeline_mode<synchronous>, transform_indices = @transform_18, window_bounds = array<i64: 1, 64>}, {pipeline_mode = #tpu.pipeline_mode<synchronous>, transform_indices = @transform_19, window_bounds = array<i64: 64, 32>}, {pipeline_mode = #tpu.pipeline_mode<synchronous>, transform_indices = @transform_20, window_bounds = array<i64: 1, 32>}, {pipeline_mode = #tpu.pipeline_mode<synchronous>, transform_indices = @transform_21, window_bounds = array<i64: 1, 32>}, {pipeline_mode = #tpu.pipeline_mode<synchronous>, transform_indices = @transform_22, window_bounds = array<i64: 1, 32>}, {transform_indices = @transform_23, window_bounds = array<i64: 2, 8, 32>}]} {
    %c0 = arith.constant 0 : index
    %c0_0 = arith.constant 0 : index
    %0 = vector.load %arg3[%c0, %c0_0] : memref<8x8xbf16, #tpu.memory_space<vmem>>, vector<8x8xbf16>
    %1 = arith.extf %0 : vector<8x8xbf16> to vector<8x8xf32>
    %c0_1 = arith.constant 0 : index
    %c0_2 = arith.constant 0 : index
    %c0_3 = arith.constant 0 : index
    %2 = vector.load %arg1[%c0_1, %c0_2, %c0_3] : memref<2x8x32xf32, #tpu.memory_space<vmem>>, vector<1x8x32xf32>
    %3 = vector.shape_cast %2 : vector<1x8x32xf32> to vector<8x32xf32>
    %c0_4 = arith.constant 0 : index
    %c0_5 = arith.constant 0 : index
    %c0_6 = arith.constant 0 : index
    %4 = vector.load %arg2[%c0_4, %c0_5, %c0_6] : memref<2x8x32xf32, #tpu.memory_space<vmem>>, vector<1x8x32xf32>
    %5 = vector.shape_cast %4 : vector<1x8x32xf32> to vector<8x32xf32>
    %c0_7 = arith.constant 0 : index
    %c0_8 = arith.constant 0 : index
    %6 = vector.load %arg8[%c0_7, %c0_8] : memref<1x32xf32, #tpu.memory_space<vmem>>, vector<1x32xf32>
    %c0_9 = arith.constant 0 : index
    %c0_10 = arith.constant 0 : index
    %7 = vector.load %arg9[%c0_9, %c0_10] : memref<1x32xf32, #tpu.memory_space<vmem>>, vector<1x32xf32>
    %cst = arith.constant dense<0.000000e+00> : vector<8xf32>
    %8 = vector.multi_reduction <add>, %3, %cst [1] : vector<8x32xf32> to vector<8xf32>
    %9 = vector.shape_cast %8 : vector<8xf32> to vector<8x1xf32>
    %cst_11 = arith.constant 3.125000e-02 : f32
    %10 = vector.broadcast %cst_11 : f32 to vector<8x1xf32>
    %11 = arith.mulf %9, %10 : vector<8x1xf32>
    %12 = vector.broadcast %11 : vector<8x1xf32> to vector<8x32xf32>
    %13 = arith.subf %3, %12 : vector<8x32xf32>
    %14 = arith.mulf %13, %13 : vector<8x32xf32>
    %cst_12 = arith.constant dense<0.000000e+00> : vector<8xf32>
    %15 = vector.multi_reduction <add>, %14, %cst_12 [1] : vector<8x32xf32> to vector<8xf32>
    %16 = vector.shape_cast %15 : vector<8xf32> to vector<8x1xf32>
    %cst_13 = arith.constant 0.0322580636 : f32
    %17 = vector.broadcast %cst_13 : f32 to vector<8x1xf32>
    %18 = arith.mulf %16, %17 : vector<8x1xf32>
    %19 = math.sqrt %18 : vector<8x1xf32>
    %cst_14 = arith.constant 9.99999997E-7 : f32
    %20 = vector.broadcast %cst_14 : f32 to vector<8x1xf32>
    %21 = arith.addf %19, %20 : vector<8x1xf32>
    %cst_15 = arith.constant 1.000000e+00 : f32
    %22 = vector.broadcast %cst_15 : f32 to vector<8x1xf32>
    %23 = arith.divf %22, %21 : vector<8x1xf32>
    %24 = vector.broadcast %23 : vector<8x1xf32> to vector<8x32xf32>
    %25 = arith.mulf %13, %24 : vector<8x32xf32>
    %26 = vector.broadcast %6 : vector<1x32xf32> to vector<8x32xf32>
    %27 = arith.mulf %26, %25 : vector<8x32xf32>
    %28 = vector.broadcast %7 : vector<1x32xf32> to vector<8x32xf32>
    %29 = arith.addf %27, %28 : vector<8x32xf32>
    %30 = arith.truncf %29 : vector<8x32xf32> to vector<8x32xbf16>
    %c0_16 = arith.constant 0 : index
    %c0_17 = arith.constant 0 : index
    %31 = vector.load %arg4[%c0_16, %c0_17] : memref<32x96xbf16, #tpu.memory_space<vmem>>, vector<32x96xbf16>
    %cst_18 = arith.constant dense<0.000000e+00> : vector<8x96xf32>
    %32 = tpu.matmul %30, %31, %cst_18 {dimension_numbers = #tpu.dot_dimension_numbers<[1], [0], [0], [1], [0, 0, 1, 1], [], []>} : vector<8x32xbf16>, vector<32x96xbf16>, vector<8x96xf32> -> vector<8x96xf32>
    %c0_19 = arith.constant 0 : index
    %c0_20 = arith.constant 0 : index
    %33 = vector.load %arg5[%c0_19, %c0_20] : memref<1x96xf32, #tpu.memory_space<vmem>>, vector<1x96xf32>
    %34 = vector.broadcast %33 : vector<1x96xf32> to vector<8x96xf32>
    %35 = arith.addf %32, %34 : vector<8x96xf32>
    %36 = vector.extract_strided_slice %35 {offsets = [0, 0], sizes = [8, 32], strides = [1, 1]} : vector<8x96xf32> to vector<8x32xf32>
    %37 = vector.extract_strided_slice %35 {offsets = [0, 32], sizes = [8, 32], strides = [1, 1]} : vector<8x96xf32> to vector<8x32xf32>
    %38 = vector.extract_strided_slice %35 {offsets = [0, 64], sizes = [8, 32], strides = [1, 1]} : vector<8x96xf32> to vector<8x32xf32>
    %39 = arith.truncf %36 : vector<8x32xf32> to vector<8x32xbf16>
    %40 = arith.truncf %37 : vector<8x32xf32> to vector<8x32xbf16>
    %41 = arith.truncf %38 : vector<8x32xf32> to vector<8x32xbf16>
    %42 = vector.extract_strided_slice %39 {offsets = [0, 0], sizes = [8, 8], strides = [1, 1]} : vector<8x32xbf16> to vector<8x8xbf16>
    %43 = vector.extract_strided_slice %40 {offsets = [0, 0], sizes = [8, 8], strides = [1, 1]} : vector<8x32xbf16> to vector<8x8xbf16>
    %44 = vector.extract_strided_slice %41 {offsets = [0, 0], sizes = [8, 8], strides = [1, 1]} : vector<8x32xbf16> to vector<8x8xbf16>
    %cst_21 = arith.constant dense<0.000000e+00> : vector<8x8xf32>
    %45 = tpu.matmul %42, %43, %cst_21 {dimension_numbers = #tpu.dot_dimension_numbers<[1], [1], [0], [0], [0, 0, 1, 0], [], []>} : vector<8x8xbf16>, vector<8x8xbf16>, vector<8x8xf32> -> vector<8x8xf32>
    %46 = arith.addf %45, %1 : vector<8x8xf32>
    %cst_22 = arith.constant dense<0xFF800000> : vector<8xf32>
    %47 = vector.multi_reduction <maximumf>, %46, %cst_22 [1] : vector<8x8xf32> to vector<8xf32>
    %48 = vector.shape_cast %47 : vector<8xf32> to vector<8x1xf32>
    %49 = vector.broadcast %48 : vector<8x1xf32> to vector<8x8xf32>
    %50 = arith.subf %46, %49 : vector<8x8xf32>
    %51 = math.exp %50 : vector<8x8xf32>
    %cst_23 = arith.constant dense<0.000000e+00> : vector<8xf32>
    %52 = vector.multi_reduction <add>, %51, %cst_23 [1] : vector<8x8xf32> to vector<8xf32>
    %53 = vector.shape_cast %52 : vector<8xf32> to vector<8x1xf32>
    %54 = tpu.reciprocal %53 {approx = true} : vector<8x1xf32> -> vector<8x1xf32>
    %55 = vector.broadcast %54 : vector<8x1xf32> to vector<8x8xf32>
    %56 = arith.mulf %51, %55 : vector<8x8xf32>
    %57 = arith.truncf %56 : vector<8x8xf32> to vector<8x8xbf16>
    %cst_24 = arith.constant dense<0.000000e+00> : vector<8x8xf32>
    %58 = tpu.matmul %57, %44, %cst_24 {dimension_numbers = #tpu.dot_dimension_numbers<[1], [0], [0], [1], [0, 0, 1, 1], [], []>} : vector<8x8xbf16>, vector<8x8xbf16>, vector<8x8xf32> -> vector<8x8xf32>
    %c0_25 = arith.constant 0 : index
    %c0_26 = arith.constant 0 : index
    %59 = vector.load %arg25[%c0_25, %c0_26] : memref<8x32xf32, #tpu.memory_space<vmem>>, vector<8x8xf32>
    tpu.vector_store %arg25[%c0_25, %c0_26], %58 {strides = array<i32>} : memref<8x32xf32, #tpu.memory_space<vmem>>, vector<8x8xf32>,
    %60 = vector.extract_strided_slice %39 {offsets = [0, 8], sizes = [8, 8], strides = [1, 1]} : vector<8x32xbf16> to vector<8x8xbf16>
    %61 = vector.extract_strided_slice %40 {offsets = [0, 8], sizes = [8, 8], strides = [1, 1]} : vector<8x32xbf16> to vector<8x8xbf16>
    %62 = vector.extract_strided_slice %41 {offsets = [0, 8], sizes = [8, 8], strides = [1, 1]} : vector<8x32xbf16> to vector<8x8xbf16>
    %cst_27 = arith.constant dense<0.000000e+00> : vector<8x8xf32>
    %63 = tpu.matmul %60, %61, %cst_27 {dimension_numbers = #tpu.dot_dimension_numbers<[1], [1], [0], [0], [0, 0, 1, 0], [], []>} : vector<8x8xbf16>, vector<8x8xbf16>, vector<8x8xf32> -> vector<8x8xf32>
    %64 = arith.addf %63, %1 : vector<8x8xf32>
    %cst_28 = arith.constant dense<0xFF800000> : vector<8xf32>
    %65 = vector.multi_reduction <maximumf>, %64, %cst_28 [1] : vector<8x8xf32> to vector<8xf32>
    %66 = vector.shape_cast %65 : vector<8xf32> to vector<8x1xf32>
    %67 = vector.broadcast %66 : vector<8x1xf32> to vector<8x8xf32>
    %68 = arith.subf %64, %67 : vector<8x8xf32>
    %69 = math.exp %68 : vector<8x8xf32>
    %cst_29 = arith.constant dense<0.000000e+00> : vector<8xf32>
    %70 = vector.multi_reduction <add>, %69, %cst_29 [1] : vector<8x8xf32> to vector<8xf32>
    %71 = vector.shape_cast %70 : vector<8xf32> to vector<8x1xf32>
    %72 = tpu.reciprocal %71 {approx = true} : vector<8x1xf32> -> vector<8x1xf32>
    %73 = vector.broadcast %72 : vector<8x1xf32> to vector<8x8xf32>
    %74 = arith.mulf %69, %73 : vector<8x8xf32>
    %75 = arith.truncf %74 : vector<8x8xf32> to vector<8x8xbf16>
    %cst_30 = arith.constant dense<0.000000e+00> : vector<8x8xf32>
    %76 = tpu.matmul %75, %62, %cst_30 {dimension_numbers = #tpu.dot_dimension_numbers<[1], [0], [0], [1], [0, 0, 1, 1], [], []>} : vector<8x8xbf16>, vector<8x8xbf16>, vector<8x8xf32> -> vector<8x8xf32>
    %c0_31 = arith.constant 0 : index
    %c8 = arith.constant 8 : index
    %77 = vector.load %arg25[%c0_31, %c8] : memref<8x32xf32, #tpu.memory_space<vmem>>, vector<8x8xf32>
    tpu.vector_store %arg25[%c0_31, %c8], %76 {strides = array<i32>} : memref<8x32xf32, #tpu.memory_space<vmem>>, vector<8x8xf32>,
    %78 = vector.extract_strided_slice %39 {offsets = [0, 16], sizes = [8, 8], strides = [1, 1]} : vector<8x32xbf16> to vector<8x8xbf16>
    %79 = vector.extract_strided_slice %40 {offsets = [0, 16], sizes = [8, 8], strides = [1, 1]} : vector<8x32xbf16> to vector<8x8xbf16>
    %80 = vector.extract_strided_slice %41 {offsets = [0, 16], sizes = [8, 8], strides = [1, 1]} : vector<8x32xbf16> to vector<8x8xbf16>
    %cst_32 = arith.constant dense<0.000000e+00> : vector<8x8xf32>
    %81 = tpu.matmul %78, %79, %cst_32 {dimension_numbers = #tpu.dot_dimension_numbers<[1], [1], [0], [0], [0, 0, 1, 0], [], []>} : vector<8x8xbf16>, vector<8x8xbf16>, vector<8x8xf32> -> vector<8x8xf32>
    %82 = arith.addf %81, %1 : vector<8x8xf32>
    %cst_33 = arith.constant dense<0xFF800000> : vector<8xf32>
    %83 = vector.multi_reduction <maximumf>, %82, %cst_33 [1] : vector<8x8xf32> to vector<8xf32>
    %84 = vector.shape_cast %83 : vector<8xf32> to vector<8x1xf32>
    %85 = vector.broadcast %84 : vector<8x1xf32> to vector<8x8xf32>
    %86 = arith.subf %82, %85 : vector<8x8xf32>
    %87 = math.exp %86 : vector<8x8xf32>
    %cst_34 = arith.constant dense<0.000000e+00> : vector<8xf32>
    %88 = vector.multi_reduction <add>, %87, %cst_34 [1] : vector<8x8xf32> to vector<8xf32>
    %89 = vector.shape_cast %88 : vector<8xf32> to vector<8x1xf32>
    %90 = tpu.reciprocal %89 {approx = true} : vector<8x1xf32> -> vector<8x1xf32>
    %91 = vector.broadcast %90 : vector<8x1xf32> to vector<8x8xf32>
    %92 = arith.mulf %87, %91 : vector<8x8xf32>
    %93 = arith.truncf %92 : vector<8x8xf32> to vector<8x8xbf16>
    %cst_35 = arith.constant dense<0.000000e+00> : vector<8x8xf32>
    %94 = tpu.matmul %93, %80, %cst_35 {dimension_numbers = #tpu.dot_dimension_numbers<[1], [0], [0], [1], [0, 0, 1, 1], [], []>} : vector<8x8xbf16>, vector<8x8xbf16>, vector<8x8xf32> -> vector<8x8xf32>
    %c0_36 = arith.constant 0 : index
    %c16 = arith.constant 16 : index
    %95 = vector.load %arg25[%c0_36, %c16] : memref<8x32xf32, #tpu.memory_space<vmem>>, vector<8x8xf32>
    tpu.vector_store %arg25[%c0_36, %c16], %94 {strides = array<i32>} : memref<8x32xf32, #tpu.memory_space<vmem>>, vector<8x8xf32>,
    %96 = vector.extract_strided_slice %39 {offsets = [0, 24], sizes = [8, 8], strides = [1, 1]} : vector<8x32xbf16> to vector<8x8xbf16>
    %97 = vector.extract_strided_slice %40 {offsets = [0, 24], sizes = [8, 8], strides = [1, 1]} : vector<8x32xbf16> to vector<8x8xbf16>
    %98 = vector.extract_strided_slice %41 {offsets = [0, 24], sizes = [8, 8], strides = [1, 1]} : vector<8x32xbf16> to vector<8x8xbf16>
    %cst_37 = arith.constant dense<0.000000e+00> : vector<8x8xf32>
    %99 = tpu.matmul %96, %97, %cst_37 {dimension_numbers = #tpu.dot_dimension_numbers<[1], [1], [0], [0], [0, 0, 1, 0], [], []>} : vector<8x8xbf16>, vector<8x8xbf16>, vector<8x8xf32> -> vector<8x8xf32>
    %100 = arith.addf %99, %1 : vector<8x8xf32>
    %cst_38 = arith.constant dense<0xFF800000> : vector<8xf32>
    %101 = vector.multi_reduction <maximumf>, %100, %cst_38 [1] : vector<8x8xf32> to vector<8xf32>
    %102 = vector.shape_cast %101 : vector<8xf32> to vector<8x1xf32>
    %103 = vector.broadcast %102 : vector<8x1xf32> to vector<8x8xf32>
    %104 = arith.subf %100, %103 : vector<8x8xf32>
    %105 = math.exp %104 : vector<8x8xf32>
    %cst_39 = arith.constant dense<0.000000e+00> : vector<8xf32>
    %106 = vector.multi_reduction <add>, %105, %cst_39 [1] : vector<8x8xf32> to vector<8xf32>
    %107 = vector.shape_cast %106 : vector<8xf32> to vector<8x1xf32>
    %108 = tpu.reciprocal %107 {approx = true} : vector<8x1xf32> -> vector<8x1xf32>
    %109 = vector.broadcast %108 : vector<8x1xf32> to vector<8x8xf32>
    %110 = arith.mulf %105, %109 : vector<8x8xf32>
    %111 = arith.truncf %110 : vector<8x8xf32> to vector<8x8xbf16>
    %cst_40 = arith.constant dense<0.000000e+00> : vector<8x8xf32>
    %112 = tpu.matmul %111, %98, %cst_40 {dimension_numbers = #tpu.dot_dimension_numbers<[1], [0], [0], [1], [0, 0, 1, 1], [], []>} : vector<8x8xbf16>, vector<8x8xbf16>, vector<8x8xf32> -> vector<8x8xf32>
    %c0_41 = arith.constant 0 : index
    %c24 = arith.constant 24 : index
    %113 = vector.load %arg25[%c0_41, %c24] : memref<8x32xf32, #tpu.memory_space<vmem>>, vector<8x8xf32>
    tpu.vector_store %arg25[%c0_41, %c24], %112 {strides = array<i32>} : memref<8x32xf32, #tpu.memory_space<vmem>>, vector<8x8xf32>,
    %c0_42 = arith.constant 0 : index
    %c0_43 = arith.constant 0 : index
    %114 = vector.load %arg25[%c0_42, %c0_43] : memref<8x32xf32, #tpu.memory_space<vmem>>, vector<8x32xf32>
    %115 = arith.truncf %114 : vector<8x32xf32> to vector<8x32xbf16>
    %c0_44 = arith.constant 0 : index
    %c0_45 = arith.constant 0 : index
    %116 = vector.load %arg6[%c0_44, %c0_45] : memref<32x32xbf16, #tpu.memory_space<vmem>>, vector<32x32xbf16>
    %cst_46 = arith.constant dense<0.000000e+00> : vector<8x32xf32>
    %117 = tpu.matmul %115, %116, %cst_46 {dimension_numbers = #tpu.dot_dimension_numbers<[1], [0], [0], [1], [0, 0, 1, 1], [], []>} : vector<8x32xbf16>, vector<32x32xbf16>, vector<8x32xf32> -> vector<8x32xf32>
    %c0_47 = arith.constant 0 : index
    %c0_48 = arith.constant 0 : index
    %118 = vector.load %arg7[%c0_47, %c0_48] : memref<1x32xf32, #tpu.memory_space<vmem>>, vector<1x32xf32>
    %119 = vector.broadcast %118 : vector<1x32xf32> to vector<8x32xf32>
    %120 = arith.addf %117, %119 : vector<8x32xf32>
    %121 = arith.addf %3, %120 : vector<8x32xf32>
    %c0_49 = arith.constant 0 : index
    %c0_50 = arith.constant 0 : index
    %122 = vector.load %arg16[%c0_49, %c0_50] : memref<1x32xf32, #tpu.memory_space<vmem>>, vector<1x32xf32>
    %c0_51 = arith.constant 0 : index
    %c0_52 = arith.constant 0 : index
    %123 = vector.load %arg17[%c0_51, %c0_52] : memref<1x32xf32, #tpu.memory_space<vmem>>, vector<1x32xf32>
    %cst_53 = arith.constant dense<0.000000e+00> : vector<8xf32>
    %124 = vector.multi_reduction <add>, %121, %cst_53 [1] : vector<8x32xf32> to vector<8xf32>
    %125 = vector.shape_cast %124 : vector<8xf32> to vector<8x1xf32>
    %cst_54 = arith.constant 3.125000e-02 : f32
    %126 = vector.broadcast %cst_54 : f32 to vector<8x1xf32>
    %127 = arith.mulf %125, %126 : vector<8x1xf32>
    %128 = vector.broadcast %127 : vector<8x1xf32> to vector<8x32xf32>
    %129 = arith.subf %121, %128 : vector<8x32xf32>
    %130 = arith.mulf %129, %129 : vector<8x32xf32>
    %cst_55 = arith.constant dense<0.000000e+00> : vector<8xf32>
    %131 = vector.multi_reduction <add>, %130, %cst_55 [1] : vector<8x32xf32> to vector<8xf32>
    %132 = vector.shape_cast %131 : vector<8xf32> to vector<8x1xf32>
    %cst_56 = arith.constant 0.0322580636 : f32
    %133 = vector.broadcast %cst_56 : f32 to vector<8x1xf32>
    %134 = arith.mulf %132, %133 : vector<8x1xf32>
    %135 = math.sqrt %134 : vector<8x1xf32>
    %cst_57 = arith.constant 9.99999997E-7 : f32
    %136 = vector.broadcast %cst_57 : f32 to vector<8x1xf32>
    %137 = arith.addf %135, %136 : vector<8x1xf32>
    %cst_58 = arith.constant 1.000000e+00 : f32
    %138 = vector.broadcast %cst_58 : f32 to vector<8x1xf32>
    %139 = arith.divf %138, %137 : vector<8x1xf32>
    %140 = vector.broadcast %139 : vector<8x1xf32> to vector<8x32xf32>
    %141 = arith.mulf %129, %140 : vector<8x32xf32>
    %142 = vector.broadcast %122 : vector<1x32xf32> to vector<8x32xf32>
    %143 = arith.mulf %142, %141 : vector<8x32xf32>
    %144 = vector.broadcast %123 : vector<1x32xf32> to vector<8x32xf32>
    %145 = arith.addf %143, %144 : vector<8x32xf32>
    %146 = arith.truncf %145 : vector<8x32xf32> to vector<8x32xbf16>
    %c0_59 = arith.constant 0 : index
    %c0_60 = arith.constant 0 : index
    %147 = vector.load %arg10[%c0_59, %c0_60] : memref<32x32xbf16, #tpu.memory_space<vmem>>, vector<32x32xbf16>
    %cst_61 = arith.constant dense<0.000000e+00> : vector<8x32xf32>
    %148 = tpu.matmul %146, %147, %cst_61 {dimension_numbers = #tpu.dot_dimension_numbers<[1], [0], [0], [1], [0, 0, 1, 1], [], []>} : vector<8x32xbf16>, vector<32x32xbf16>, vector<8x32xf32> -> vector<8x32xf32>
    %c0_62 = arith.constant 0 : index
    %c0_63 = arith.constant 0 : index
    %149 = vector.load %arg11[%c0_62, %c0_63] : memref<1x32xf32, #tpu.memory_space<vmem>>, vector<1x32xf32>
    %150 = vector.broadcast %149 : vector<1x32xf32> to vector<8x32xf32>
    %151 = arith.addf %148, %150 : vector<8x32xf32>
    %152 = arith.truncf %5 : vector<8x32xf32> to vector<8x32xbf16>
    %c0_64 = arith.constant 0 : index
    %c0_65 = arith.constant 0 : index
    %153 = vector.load %arg12[%c0_64, %c0_65] : memref<32x64xbf16, #tpu.memory_space<vmem>>, vector<32x64xbf16>
    %cst_66 = arith.constant dense<0.000000e+00> : vector<8x64xf32>
    %154 = tpu.matmul %152, %153, %cst_66 {dimension_numbers = #tpu.dot_dimension_numbers<[1], [0], [0], [1], [0, 0, 1, 1], [], []>} : vector<8x32xbf16>, vector<32x64xbf16>, vector<8x64xf32> -> vector<8x64xf32>
    %c0_67 = arith.constant 0 : index
    %c0_68 = arith.constant 0 : index
    %155 = vector.load %arg13[%c0_67, %c0_68] : memref<1x64xf32, #tpu.memory_space<vmem>>, vector<1x64xf32>
    %156 = vector.broadcast %155 : vector<1x64xf32> to vector<8x64xf32>
    %157 = arith.addf %154, %156 : vector<8x64xf32>
    %158 = vector.extract_strided_slice %157 {offsets = [0, 0], sizes = [8, 32], strides = [1, 1]} : vector<8x64xf32> to vector<8x32xf32>
    %159 = vector.extract_strided_slice %157 {offsets = [0, 32], sizes = [8, 32], strides = [1, 1]} : vector<8x64xf32> to vector<8x32xf32>
    %160 = arith.truncf %151 : vector<8x32xf32> to vector<8x32xbf16>
    %161 = arith.truncf %158 : vector<8x32xf32> to vector<8x32xbf16>
    %162 = arith.truncf %159 : vector<8x32xf32> to vector<8x32xbf16>
    %163 = vector.extract_strided_slice %160 {offsets = [0, 0], sizes = [8, 8], strides = [1, 1]} : vector<8x32xbf16> to vector<8x8xbf16>
    %164 = vector.extract_strided_slice %161 {offsets = [0, 0], sizes = [8, 8], strides = [1, 1]} : vector<8x32xbf16> to vector<8x8xbf16>
    %165 = vector.extract_strided_slice %162 {offsets = [0, 0], sizes = [8, 8], strides = [1, 1]} : vector<8x32xbf16> to vector<8x8xbf16>
    %cst_69 = arith.constant dense<0.000000e+00> : vector<8x8xf32>
    %166 = tpu.matmul %163, %164, %cst_69 {dimension_numbers = #tpu.dot_dimension_numbers<[1], [1], [0], [0], [0, 0, 1, 0], [], []>} : vector<8x8xbf16>, vector<8x8xbf16>, vector<8x8xf32> -> vector<8x8xf32>
    %cst_70 = arith.constant dense<0xFF800000> : vector<8xf32>
    %167 = vector.multi_reduction <maximumf>, %166, %cst_70 [1] : vector<8x8xf32> to vector<8xf32>
    %168 = vector.shape_cast %167 : vector<8xf32> to vector<8x1xf32>
    %169 = vector.broadcast %168 : vector<8x1xf32> to vector<8x8xf32>
    %170 = arith.subf %166, %169 : vector<8x8xf32>
    %171 = math.exp %170 : vector<8x8xf32>
    %cst_71 = arith.constant dense<0.000000e+00> : vector<8xf32>
    %172 = vector.multi_reduction <add>, %171, %cst_71 [1] : vector<8x8xf32> to vector<8xf32>
    %173 = vector.shape_cast %172 : vector<8xf32> to vector<8x1xf32>
    %174 = tpu.reciprocal %173 {approx = true} : vector<8x1xf32> -> vector<8x1xf32>
    %175 = vector.broadcast %174 : vector<8x1xf32> to vector<8x8xf32>
    %176 = arith.mulf %171, %175 : vector<8x8xf32>
    %177 = arith.truncf %176 : vector<8x8xf32> to vector<8x8xbf16>
    %cst_72 = arith.constant dense<0.000000e+00> : vector<8x8xf32>
    %178 = tpu.matmul %177, %165, %cst_72 {dimension_numbers = #tpu.dot_dimension_numbers<[1], [0], [0], [1], [0, 0, 1, 1], [], []>} : vector<8x8xbf16>, vector<8x8xbf16>, vector<8x8xf32> -> vector<8x8xf32>
    %c0_73 = arith.constant 0 : index
    %c0_74 = arith.constant 0 : index
    %179 = vector.load %arg25[%c0_73, %c0_74] : memref<8x32xf32, #tpu.memory_space<vmem>>, vector<8x8xf32>
    tpu.vector_store %arg25[%c0_73, %c0_74], %178 {strides = array<i32>} : memref<8x32xf32, #tpu.memory_space<vmem>>, vector<8x8xf32>,
    %180 = vector.extract_strided_slice %160 {offsets = [0, 8], sizes = [8, 8], strides = [1, 1]} : vector<8x32xbf16> to vector<8x8xbf16>
    %181 = vector.extract_strided_slice %161 {offsets = [0, 8], sizes = [8, 8], strides = [1, 1]} : vector<8x32xbf16> to vector<8x8xbf16>
    %182 = vector.extract_strided_slice %162 {offsets = [0, 8], sizes = [8, 8], strides = [1, 1]} : vector<8x32xbf16> to vector<8x8xbf16>
    %cst_75 = arith.constant dense<0.000000e+00> : vector<8x8xf32>
    %183 = tpu.matmul %180, %181, %cst_75 {dimension_numbers = #tpu.dot_dimension_numbers<[1], [1], [0], [0], [0, 0, 1, 0], [], []>} : vector<8x8xbf16>, vector<8x8xbf16>, vector<8x8xf32> -> vector<8x8xf32>
    %cst_76 = arith.constant dense<0xFF800000> : vector<8xf32>
    %184 = vector.multi_reduction <maximumf>, %183, %cst_76 [1] : vector<8x8xf32> to vector<8xf32>
    %185 = vector.shape_cast %184 : vector<8xf32> to vector<8x1xf32>
    %186 = vector.broadcast %185 : vector<8x1xf32> to vector<8x8xf32>
    %187 = arith.subf %183, %186 : vector<8x8xf32>
    %188 = math.exp %187 : vector<8x8xf32>
    %cst_77 = arith.constant dense<0.000000e+00> : vector<8xf32>
    %189 = vector.multi_reduction <add>, %188, %cst_77 [1] : vector<8x8xf32> to vector<8xf32>
    %190 = vector.shape_cast %189 : vector<8xf32> to vector<8x1xf32>
    %191 = tpu.reciprocal %190 {approx = true} : vector<8x1xf32> -> vector<8x1xf32>
    %192 = vector.broadcast %191 : vector<8x1xf32> to vector<8x8xf32>
    %193 = arith.mulf %188, %192 : vector<8x8xf32>
    %194 = arith.truncf %193 : vector<8x8xf32> to vector<8x8xbf16>
    %cst_78 = arith.constant dense<0.000000e+00> : vector<8x8xf32>
    %195 = tpu.matmul %194, %182, %cst_78 {dimension_numbers = #tpu.dot_dimension_numbers<[1], [0], [0], [1], [0, 0, 1, 1], [], []>} : vector<8x8xbf16>, vector<8x8xbf16>, vector<8x8xf32> -> vector<8x8xf32>
    %c0_79 = arith.constant 0 : index
    %c8_80 = arith.constant 8 : index
    %196 = vector.load %arg25[%c0_79, %c8_80] : memref<8x32xf32, #tpu.memory_space<vmem>>, vector<8x8xf32>
    tpu.vector_store %arg25[%c0_79, %c8_80], %195 {strides = array<i32>} : memref<8x32xf32, #tpu.memory_space<vmem>>, vector<8x8xf32>,
    %197 = vector.extract_strided_slice %160 {offsets = [0, 16], sizes = [8, 8], strides = [1, 1]} : vector<8x32xbf16> to vector<8x8xbf16>
    %198 = vector.extract_strided_slice %161 {offsets = [0, 16], sizes = [8, 8], strides = [1, 1]} : vector<8x32xbf16> to vector<8x8xbf16>
    %199 = vector.extract_strided_slice %162 {offsets = [0, 16], sizes = [8, 8], strides = [1, 1]} : vector<8x32xbf16> to vector<8x8xbf16>
    %cst_81 = arith.constant dense<0.000000e+00> : vector<8x8xf32>
    %200 = tpu.matmul %197, %198, %cst_81 {dimension_numbers = #tpu.dot_dimension_numbers<[1], [1], [0], [0], [0, 0, 1, 0], [], []>} : vector<8x8xbf16>, vector<8x8xbf16>, vector<8x8xf32> -> vector<8x8xf32>
    %cst_82 = arith.constant dense<0xFF800000> : vector<8xf32>
    %201 = vector.multi_reduction <maximumf>, %200, %cst_82 [1] : vector<8x8xf32> to vector<8xf32>
    %202 = vector.shape_cast %201 : vector<8xf32> to vector<8x1xf32>
    %203 = vector.broadcast %202 : vector<8x1xf32> to vector<8x8xf32>
    %204 = arith.subf %200, %203 : vector<8x8xf32>
    %205 = math.exp %204 : vector<8x8xf32>
    %cst_83 = arith.constant dense<0.000000e+00> : vector<8xf32>
    %206 = vector.multi_reduction <add>, %205, %cst_83 [1] : vector<8x8xf32> to vector<8xf32>
    %207 = vector.shape_cast %206 : vector<8xf32> to vector<8x1xf32>
    %208 = tpu.reciprocal %207 {approx = true} : vector<8x1xf32> -> vector<8x1xf32>
    %209 = vector.broadcast %208 : vector<8x1xf32> to vector<8x8xf32>
    %210 = arith.mulf %205, %209 : vector<8x8xf32>
    %211 = arith.truncf %210 : vector<8x8xf32> to vector<8x8xbf16>
    %cst_84 = arith.constant dense<0.000000e+00> : vector<8x8xf32>
    %212 = tpu.matmul %211, %199, %cst_84 {dimension_numbers = #tpu.dot_dimension_numbers<[1], [0], [0], [1], [0, 0, 1, 1], [], []>} : vector<8x8xbf16>, vector<8x8xbf16>, vector<8x8xf32> -> vector<8x8xf32>
    %c0_85 = arith.constant 0 : index
    %c16_86 = arith.constant 16 : index
    %213 = vector.load %arg25[%c0_85, %c16_86] : memref<8x32xf32, #tpu.memory_space<vmem>>, vector<8x8xf32>
    tpu.vector_store %arg25[%c0_85, %c16_86], %212 {strides = array<i32>} : memref<8x32xf32, #tpu.memory_space<vmem>>, vector<8x8xf32>,
    %214 = vector.extract_strided_slice %160 {offsets = [0, 24], sizes = [8, 8], strides = [1, 1]} : vector<8x32xbf16> to vector<8x8xbf16>
    %215 = vector.extract_strided_slice %161 {offsets = [0, 24], sizes = [8, 8], strides = [1, 1]} : vector<8x32xbf16> to vector<8x8xbf16>
    %216 = vector.extract_strided_slice %162 {offsets = [0, 24], sizes = [8, 8], strides = [1, 1]} : vector<8x32xbf16> to vector<8x8xbf16>
    %cst_87 = arith.constant dense<0.000000e+00> : vector<8x8xf32>
    %217 = tpu.matmul %214, %215, %cst_87 {dimension_numbers = #tpu.dot_dimension_numbers<[1], [1], [0], [0], [0, 0, 1, 0], [], []>} : vector<8x8xbf16>, vector<8x8xbf16>, vector<8x8xf32> -> vector<8x8xf32>
    %cst_88 = arith.constant dense<0xFF800000> : vector<8xf32>
    %218 = vector.multi_reduction <maximumf>, %217, %cst_88 [1] : vector<8x8xf32> to vector<8xf32>
    %219 = vector.shape_cast %218 : vector<8xf32> to vector<8x1xf32>
    %220 = vector.broadcast %219 : vector<8x1xf32> to vector<8x8xf32>
    %221 = arith.subf %217, %220 : vector<8x8xf32>
    %222 = math.exp %221 : vector<8x8xf32>
    %cst_89 = arith.constant dense<0.000000e+00> : vector<8xf32>
    %223 = vector.multi_reduction <add>, %222, %cst_89 [1] : vector<8x8xf32> to vector<8xf32>
    %224 = vector.shape_cast %223 : vector<8xf32> to vector<8x1xf32>
    %225 = tpu.reciprocal %224 {approx = true} : vector<8x1xf32> -> vector<8x1xf32>
    %226 = vector.broadcast %225 : vector<8x1xf32> to vector<8x8xf32>
    %227 = arith.mulf %222, %226 : vector<8x8xf32>
    %228 = arith.truncf %227 : vector<8x8xf32> to vector<8x8xbf16>
    %cst_90 = arith.constant dense<0.000000e+00> : vector<8x8xf32>
    %229 = tpu.matmul %228, %216, %cst_90 {dimension_numbers = #tpu.dot_dimension_numbers<[1], [0], [0], [1], [0, 0, 1, 1], [], []>} : vector<8x8xbf16>, vector<8x8xbf16>, vector<8x8xf32> -> vector<8x8xf32>
    %c0_91 = arith.constant 0 : index
    %c24_92 = arith.constant 24 : index
    %230 = vector.load %arg25[%c0_91, %c24_92] : memref<8x32xf32, #tpu.memory_space<vmem>>, vector<8x8xf32>
    tpu.vector_store %arg25[%c0_91, %c24_92], %229 {strides = array<i32>} : memref<8x32xf32, #tpu.memory_space<vmem>>, vector<8x8xf32>,
    %c0_93 = arith.constant 0 : index
    %c0_94 = arith.constant 0 : index
    %231 = vector.load %arg25[%c0_93, %c0_94] : memref<8x32xf32, #tpu.memory_space<vmem>>, vector<8x32xf32>
    %232 = arith.truncf %231 : vector<8x32xf32> to vector<8x32xbf16>
    %c0_95 = arith.constant 0 : index
    %c0_96 = arith.constant 0 : index
    %233 = vector.load %arg14[%c0_95, %c0_96] : memref<32x32xbf16, #tpu.memory_space<vmem>>, vector<32x32xbf16>
    %cst_97 = arith.constant dense<0.000000e+00> : vector<8x32xf32>
    %234 = tpu.matmul %232, %233, %cst_97 {dimension_numbers = #tpu.dot_dimension_numbers<[1], [0], [0], [1], [0, 0, 1, 1], [], []>} : vector<8x32xbf16>, vector<32x32xbf16>, vector<8x32xf32> -> vector<8x32xf32>
    %c0_98 = arith.constant 0 : index
    %c0_99 = arith.constant 0 : index
    %235 = vector.load %arg15[%c0_98, %c0_99] : memref<1x32xf32, #tpu.memory_space<vmem>>, vector<1x32xf32>
    %236 = vector.broadcast %235 : vector<1x32xf32> to vector<8x32xf32>
    %237 = arith.addf %234, %236 : vector<8x32xf32>
    %238 = arith.addf %121, %237 : vector<8x32xf32>
    %c0_100 = arith.constant 0 : index
    %c0_101 = arith.constant 0 : index
    %239 = vector.load %arg22[%c0_100, %c0_101] : memref<1x32xf32, #tpu.memory_space<vmem>>, vector<1x32xf32>
    %c0_102 = arith.constant 0 : index
    %c0_103 = arith.constant 0 : index
    %240 = vector.load %arg23[%c0_102, %c0_103] : memref<1x32xf32, #tpu.memory_space<vmem>>, vector<1x32xf32>
    %cst_104 = arith.constant dense<0.000000e+00> : vector<8xf32>
    %241 = vector.multi_reduction <add>, %238, %cst_104 [1] : vector<8x32xf32> to vector<8xf32>
    %242 = vector.shape_cast %241 : vector<8xf32> to vector<8x1xf32>
    %cst_105 = arith.constant 3.125000e-02 : f32
    %243 = vector.broadcast %cst_105 : f32 to vector<8x1xf32>
    %244 = arith.mulf %242, %243 : vector<8x1xf32>
    %245 = vector.broadcast %244 : vector<8x1xf32> to vector<8x32xf32>
    %246 = arith.subf %238, %245 : vector<8x32xf32>
    %247 = arith.mulf %246, %246 : vector<8x32xf32>
    %cst_106 = arith.constant dense<0.000000e+00> : vector<8xf32>
    %248 = vector.multi_reduction <add>, %247, %cst_106 [1] : vector<8x32xf32> to vector<8xf32>
    %249 = vector.shape_cast %248 : vector<8xf32> to vector<8x1xf32>
    %cst_107 = arith.constant 0.0322580636 : f32
    %250 = vector.broadcast %cst_107 : f32 to vector<8x1xf32>
    %251 = arith.mulf %249, %250 : vector<8x1xf32>
    %252 = math.sqrt %251 : vector<8x1xf32>
    %cst_108 = arith.constant 9.99999997E-7 : f32
    %253 = vector.broadcast %cst_108 : f32 to vector<8x1xf32>
    %254 = arith.addf %252, %253 : vector<8x1xf32>
    %cst_109 = arith.constant 1.000000e+00 : f32
    %255 = vector.broadcast %cst_109 : f32 to vector<8x1xf32>
    %256 = arith.divf %255, %254 : vector<8x1xf32>
    %257 = vector.broadcast %256 : vector<8x1xf32> to vector<8x32xf32>
    %258 = arith.mulf %246, %257 : vector<8x32xf32>
    %259 = vector.broadcast %239 : vector<1x32xf32> to vector<8x32xf32>
    %260 = arith.mulf %259, %258 : vector<8x32xf32>
    %261 = vector.broadcast %240 : vector<1x32xf32> to vector<8x32xf32>
    %262 = arith.addf %260, %261 : vector<8x32xf32>
    %263 = arith.truncf %262 : vector<8x32xf32> to vector<8x32xbf16>
    %c0_110 = arith.constant 0 : index
    %c0_111 = arith.constant 0 : index
    %264 = vector.load %arg21[%c0_110, %c0_111] : memref<1x32xf32, #tpu.memory_space<vmem>>, vector<1x32xf32>
    %265 = vector.broadcast %264 : vector<1x32xf32> to vector<8x32xf32>
    %266 = arith.addf %238, %265 : vector<8x32xf32>
    %c0_112 = arith.constant 0 : index
    %c0_113 = arith.constant 0 : index
    %267 = vector.load %arg18[%c0_112, %c0_113] : memref<32x64xbf16, #tpu.memory_space<vmem>>, vector<32x64xbf16>
    %cst_114 = arith.constant dense<0.000000e+00> : vector<8x64xf32>
    %268 = tpu.matmul %263, %267, %cst_114 {dimension_numbers = #tpu.dot_dimension_numbers<[1], [0], [0], [1], [0, 0, 1, 1], [], []>} : vector<8x32xbf16>, vector<32x64xbf16>, vector<8x64xf32> -> vector<8x64xf32>
    %c0_115 = arith.constant 0 : index
    %c0_116 = arith.constant 0 : index
    %269 = vector.load %arg19[%c0_115, %c0_116] : memref<1x64xf32, #tpu.memory_space<vmem>>, vector<1x64xf32>
    %270 = vector.broadcast %269 : vector<1x64xf32> to vector<8x64xf32>
    %271 = arith.addf %268, %270 : vector<8x64xf32>
    %cst_117 = arith.constant 0.000000e+00 : f32
    %272 = vector.broadcast %cst_117 : f32 to vector<8x64xf32>
    %273 = arith.maximumf %271, %272 : vector<8x64xf32>
    %274 = arith.truncf %273 : vector<8x64xf32> to vector<8x64xbf16>
    %c0_118 = arith.constant 0 : index
    %c0_119 = arith.constant 0 : index
    %275 = vector.load %arg20[%c0_118, %c0_119] : memref<64x32xbf16, #tpu.memory_space<vmem>>, vector<64x32xbf16>
    %cst_120 = arith.constant dense<0.000000e+00> : vector<8x32xf32>
    %276 = tpu.matmul %274, %275, %cst_120 {dimension_numbers = #tpu.dot_dimension_numbers<[1], [0], [0], [1], [0, 0, 1, 1], [], []>} : vector<8x64xbf16>, vector<64x32xbf16>, vector<8x32xf32> -> vector<8x32xf32>
    %277 = arith.addf %266, %276 : vector<8x32xf32>
    %c0_121 = arith.constant 0 : index
    %c0_122 = arith.constant 0 : index
    %c0_123 = arith.constant 0 : index
    %278 = vector.load %arg24[%c0_121, %c0_122, %c0_123] : memref<2x8x32xf32, #tpu.memory_space<vmem>>, vector<1x8x32xf32>
    %279 = vector.shape_cast %278 : vector<1x8x32xf32> to vector<8x32xf32>
    %280 = vector.shape_cast %277 : vector<8x32xf32> to vector<1x8x32xf32>
    tpu.vector_store %arg24[%c0_121, %c0_122, %c0_123], %280 {strides = array<i32>} : memref<2x8x32xf32, #tpu.memory_space<vmem>>, vector<1x8x32xf32>,
    %c1 = arith.constant 1 : index
    %c0_124 = arith.constant 0 : index
    %c0_125 = arith.constant 0 : index
    %281 = vector.load %arg1[%c1, %c0_124, %c0_125] : memref<2x8x32xf32, #tpu.memory_space<vmem>>, vector<1x8x32xf32>
    %282 = vector.shape_cast %281 : vector<1x8x32xf32> to vector<8x32xf32>
    %c1_126 = arith.constant 1 : index
    %c0_127 = arith.constant 0 : index
    %c0_128 = arith.constant 0 : index
    %283 = vector.load %arg2[%c1_126, %c0_127, %c0_128] : memref<2x8x32xf32, #tpu.memory_space<vmem>>, vector<1x8x32xf32>
    %284 = vector.shape_cast %283 : vector<1x8x32xf32> to vector<8x32xf32>
    %c0_129 = arith.constant 0 : index
    %c0_130 = arith.constant 0 : index
    %285 = vector.load %arg8[%c0_129, %c0_130] : memref<1x32xf32, #tpu.memory_space<vmem>>, vector<1x32xf32>
    %c0_131 = arith.constant 0 : index
    %c0_132 = arith.constant 0 : index
    %286 = vector.load %arg9[%c0_131, %c0_132] : memref<1x32xf32, #tpu.memory_space<vmem>>, vector<1x32xf32>
    %cst_133 = arith.constant dense<0.000000e+00> : vector<8xf32>
    %287 = vector.multi_reduction <add>, %282, %cst_133 [1] : vector<8x32xf32> to vector<8xf32>
    %288 = vector.shape_cast %287 : vector<8xf32> to vector<8x1xf32>
    %cst_134 = arith.constant 3.125000e-02 : f32
    %289 = vector.broadcast %cst_134 : f32 to vector<8x1xf32>
    %290 = arith.mulf %288, %289 : vector<8x1xf32>
    %291 = vector.broadcast %290 : vector<8x1xf32> to vector<8x32xf32>
    %292 = arith.subf %282, %291 : vector<8x32xf32>
    %293 = arith.mulf %292, %292 : vector<8x32xf32>
    %cst_135 = arith.constant dense<0.000000e+00> : vector<8xf32>
    %294 = vector.multi_reduction <add>, %293, %cst_135 [1] : vector<8x32xf32> to vector<8xf32>
    %295 = vector.shape_cast %294 : vector<8xf32> to vector<8x1xf32>
    %cst_136 = arith.constant 0.0322580636 : f32
    %296 = vector.broadcast %cst_136 : f32 to vector<8x1xf32>
    %297 = arith.mulf %295, %296 : vector<8x1xf32>
    %298 = math.sqrt %297 : vector<8x1xf32>
    %cst_137 = arith.constant 9.99999997E-7 : f32
    %299 = vector.broadcast %cst_137 : f32 to vector<8x1xf32>
    %300 = arith.addf %298, %299 : vector<8x1xf32>
    %cst_138 = arith.constant 1.000000e+00 : f32
    %301 = vector.broadcast %cst_138 : f32 to vector<8x1xf32>
    %302 = arith.divf %301, %300 : vector<8x1xf32>
    %303 = vector.broadcast %302 : vector<8x1xf32> to vector<8x32xf32>
    %304 = arith.mulf %292, %303 : vector<8x32xf32>
    %305 = vector.broadcast %285 : vector<1x32xf32> to vector<8x32xf32>
    %306 = arith.mulf %305, %304 : vector<8x32xf32>
    %307 = vector.broadcast %286 : vector<1x32xf32> to vector<8x32xf32>
    %308 = arith.addf %306, %307 : vector<8x32xf32>
    %309 = arith.truncf %308 : vector<8x32xf32> to vector<8x32xbf16>
    %c0_139 = arith.constant 0 : index
    %c0_140 = arith.constant 0 : index
    %310 = vector.load %arg4[%c0_139, %c0_140] : memref<32x96xbf16, #tpu.memory_space<vmem>>, vector<32x96xbf16>
    %cst_141 = arith.constant dense<0.000000e+00> : vector<8x96xf32>
    %311 = tpu.matmul %309, %310, %cst_141 {dimension_numbers = #tpu.dot_dimension_numbers<[1], [0], [0], [1], [0, 0, 1, 1], [], []>} : vector<8x32xbf16>, vector<32x96xbf16>, vector<8x96xf32> -> vector<8x96xf32>
    %c0_142 = arith.constant 0 : index
    %c0_143 = arith.constant 0 : index
    %312 = vector.load %arg5[%c0_142, %c0_143] : memref<1x96xf32, #tpu.memory_space<vmem>>, vector<1x96xf32>
    %313 = vector.broadcast %312 : vector<1x96xf32> to vector<8x96xf32>
    %314 = arith.addf %311, %313 : vector<8x96xf32>
    %315 = vector.extract_strided_slice %314 {offsets = [0, 0], sizes = [8, 32], strides = [1, 1]} : vector<8x96xf32> to vector<8x32xf32>
    %316 = vector.extract_strided_slice %314 {offsets = [0, 32], sizes = [8, 32], strides = [1, 1]} : vector<8x96xf32> to vector<8x32xf32>
    %317 = vector.extract_strided_slice %314 {offsets = [0, 64], sizes = [8, 32], strides = [1, 1]} : vector<8x96xf32> to vector<8x32xf32>
    %318 = arith.truncf %315 : vector<8x32xf32> to vector<8x32xbf16>
    %319 = arith.truncf %316 : vector<8x32xf32> to vector<8x32xbf16>
    %320 = arith.truncf %317 : vector<8x32xf32> to vector<8x32xbf16>
    %321 = vector.extract_strided_slice %318 {offsets = [0, 0], sizes = [8, 8], strides = [1, 1]} : vector<8x32xbf16> to vector<8x8xbf16>
    %322 = vector.extract_strided_slice %319 {offsets = [0, 0], sizes = [8, 8], strides = [1, 1]} : vector<8x32xbf16> to vector<8x8xbf16>
    %323 = vector.extract_strided_slice %320 {offsets = [0, 0], sizes = [8, 8], strides = [1, 1]} : vector<8x32xbf16> to vector<8x8xbf16>
    %cst_144 = arith.constant dense<0.000000e+00> : vector<8x8xf32>
    %324 = tpu.matmul %321, %322, %cst_144 {dimension_numbers = #tpu.dot_dimension_numbers<[1], [1], [0], [0], [0, 0, 1, 0], [], []>} : vector<8x8xbf16>, vector<8x8xbf16>, vector<8x8xf32> -> vector<8x8xf32>
    %325 = arith.addf %324, %1 : vector<8x8xf32>
    %cst_145 = arith.constant dense<0xFF800000> : vector<8xf32>
    %326 = vector.multi_reduction <maximumf>, %325, %cst_145 [1] : vector<8x8xf32> to vector<8xf32>
    %327 = vector.shape_cast %326 : vector<8xf32> to vector<8x1xf32>
    %328 = vector.broadcast %327 : vector<8x1xf32> to vector<8x8xf32>
    %329 = arith.subf %325, %328 : vector<8x8xf32>
    %330 = math.exp %329 : vector<8x8xf32>
    %cst_146 = arith.constant dense<0.000000e+00> : vector<8xf32>
    %331 = vector.multi_reduction <add>, %330, %cst_146 [1] : vector<8x8xf32> to vector<8xf32>
    %332 = vector.shape_cast %331 : vector<8xf32> to vector<8x1xf32>
    %333 = tpu.reciprocal %332 {approx = true} : vector<8x1xf32> -> vector<8x1xf32>
    %334 = vector.broadcast %333 : vector<8x1xf32> to vector<8x8xf32>
    %335 = arith.mulf %330, %334 : vector<8x8xf32>
    %336 = arith.truncf %335 : vector<8x8xf32> to vector<8x8xbf16>
    %cst_147 = arith.constant dense<0.000000e+00> : vector<8x8xf32>
    %337 = tpu.matmul %336, %323, %cst_147 {dimension_numbers = #tpu.dot_dimension_numbers<[1], [0], [0], [1], [0, 0, 1, 1], [], []>} : vector<8x8xbf16>, vector<8x8xbf16>, vector<8x8xf32> -> vector<8x8xf32>
    %c0_148 = arith.constant 0 : index
    %c0_149 = arith.constant 0 : index
    %338 = vector.load %arg25[%c0_148, %c0_149] : memref<8x32xf32, #tpu.memory_space<vmem>>, vector<8x8xf32>
    tpu.vector_store %arg25[%c0_148, %c0_149], %337 {strides = array<i32>} : memref<8x32xf32, #tpu.memory_space<vmem>>, vector<8x8xf32>,
    %339 = vector.extract_strided_slice %318 {offsets = [0, 8], sizes = [8, 8], strides = [1, 1]} : vector<8x32xbf16> to vector<8x8xbf16>
    %340 = vector.extract_strided_slice %319 {offsets = [0, 8], sizes = [8, 8], strides = [1, 1]} : vector<8x32xbf16> to vector<8x8xbf16>
    %341 = vector.extract_strided_slice %320 {offsets = [0, 8], sizes = [8, 8], strides = [1, 1]} : vector<8x32xbf16> to vector<8x8xbf16>
    %cst_150 = arith.constant dense<0.000000e+00> : vector<8x8xf32>
    %342 = tpu.matmul %339, %340, %cst_150 {dimension_numbers = #tpu.dot_dimension_numbers<[1], [1], [0], [0], [0, 0, 1, 0], [], []>} : vector<8x8xbf16>, vector<8x8xbf16>, vector<8x8xf32> -> vector<8x8xf32>
    %343 = arith.addf %342, %1 : vector<8x8xf32>
    %cst_151 = arith.constant dense<0xFF800000> : vector<8xf32>
    %344 = vector.multi_reduction <maximumf>, %343, %cst_151 [1] : vector<8x8xf32> to vector<8xf32>
    %345 = vector.shape_cast %344 : vector<8xf32> to vector<8x1xf32>
    %346 = vector.broadcast %345 : vector<8x1xf32> to vector<8x8xf32>
    %347 = arith.subf %343, %346 : vector<8x8xf32>
    %348 = math.exp %347 : vector<8x8xf32>
    %cst_152 = arith.constant dense<0.000000e+00> : vector<8xf32>
    %349 = vector.multi_reduction <add>, %348, %cst_152 [1] : vector<8x8xf32> to vector<8xf32>
    %350 = vector.shape_cast %349 : vector<8xf32> to vector<8x1xf32>
    %351 = tpu.reciprocal %350 {approx = true} : vector<8x1xf32> -> vector<8x1xf32>
    %352 = vector.broadcast %351 : vector<8x1xf32> to vector<8x8xf32>
    %353 = arith.mulf %348, %352 : vector<8x8xf32>
    %354 = arith.truncf %353 : vector<8x8xf32> to vector<8x8xbf16>
    %cst_153 = arith.constant dense<0.000000e+00> : vector<8x8xf32>
    %355 = tpu.matmul %354, %341, %cst_153 {dimension_numbers = #tpu.dot_dimension_numbers<[1], [0], [0], [1], [0, 0, 1, 1], [], []>} : vector<8x8xbf16>, vector<8x8xbf16>, vector<8x8xf32> -> vector<8x8xf32>
    %c0_154 = arith.constant 0 : index
    %c8_155 = arith.constant 8 : index
    %356 = vector.load %arg25[%c0_154, %c8_155] : memref<8x32xf32, #tpu.memory_space<vmem>>, vector<8x8xf32>
    tpu.vector_store %arg25[%c0_154, %c8_155], %355 {strides = array<i32>} : memref<8x32xf32, #tpu.memory_space<vmem>>, vector<8x8xf32>,
    %357 = vector.extract_strided_slice %318 {offsets = [0, 16], sizes = [8, 8], strides = [1, 1]} : vector<8x32xbf16> to vector<8x8xbf16>
    %358 = vector.extract_strided_slice %319 {offsets = [0, 16], sizes = [8, 8], strides = [1, 1]} : vector<8x32xbf16> to vector<8x8xbf16>
    %359 = vector.extract_strided_slice %320 {offsets = [0, 16], sizes = [8, 8], strides = [1, 1]} : vector<8x32xbf16> to vector<8x8xbf16>
    %cst_156 = arith.constant dense<0.000000e+00> : vector<8x8xf32>
    %360 = tpu.matmul %357, %358, %cst_156 {dimension_numbers = #tpu.dot_dimension_numbers<[1], [1], [0], [0], [0, 0, 1, 0], [], []>} : vector<8x8xbf16>, vector<8x8xbf16>, vector<8x8xf32> -> vector<8x8xf32>
    %361 = arith.addf %360, %1 : vector<8x8xf32>
    %cst_157 = arith.constant dense<0xFF800000> : vector<8xf32>
    %362 = vector.multi_reduction <maximumf>, %361, %cst_157 [1] : vector<8x8xf32> to vector<8xf32>
    %363 = vector.shape_cast %362 : vector<8xf32> to vector<8x1xf32>
    %364 = vector.broadcast %363 : vector<8x1xf32> to vector<8x8xf32>
    %365 = arith.subf %361, %364 : vector<8x8xf32>
    %366 = math.exp %365 : vector<8x8xf32>
    %cst_158 = arith.constant dense<0.000000e+00> : vector<8xf32>
    %367 = vector.multi_reduction <add>, %366, %cst_158 [1] : vector<8x8xf32> to vector<8xf32>
    %368 = vector.shape_cast %367 : vector<8xf32> to vector<8x1xf32>
    %369 = tpu.reciprocal %368 {approx = true} : vector<8x1xf32> -> vector<8x1xf32>
    %370 = vector.broadcast %369 : vector<8x1xf32> to vector<8x8xf32>
    %371 = arith.mulf %366, %370 : vector<8x8xf32>
    %372 = arith.truncf %371 : vector<8x8xf32> to vector<8x8xbf16>
    %cst_159 = arith.constant dense<0.000000e+00> : vector<8x8xf32>
    %373 = tpu.matmul %372, %359, %cst_159 {dimension_numbers = #tpu.dot_dimension_numbers<[1], [0], [0], [1], [0, 0, 1, 1], [], []>} : vector<8x8xbf16>, vector<8x8xbf16>, vector<8x8xf32> -> vector<8x8xf32>
    %c0_160 = arith.constant 0 : index
    %c16_161 = arith.constant 16 : index
    %374 = vector.load %arg25[%c0_160, %c16_161] : memref<8x32xf32, #tpu.memory_space<vmem>>, vector<8x8xf32>
    tpu.vector_store %arg25[%c0_160, %c16_161], %373 {strides = array<i32>} : memref<8x32xf32, #tpu.memory_space<vmem>>, vector<8x8xf32>,
    %375 = vector.extract_strided_slice %318 {offsets = [0, 24], sizes = [8, 8], strides = [1, 1]} : vector<8x32xbf16> to vector<8x8xbf16>
    %376 = vector.extract_strided_slice %319 {offsets = [0, 24], sizes = [8, 8], strides = [1, 1]} : vector<8x32xbf16> to vector<8x8xbf16>
    %377 = vector.extract_strided_slice %320 {offsets = [0, 24], sizes = [8, 8], strides = [1, 1]} : vector<8x32xbf16> to vector<8x8xbf16>
    %cst_162 = arith.constant dense<0.000000e+00> : vector<8x8xf32>
    %378 = tpu.matmul %375, %376, %cst_162 {dimension_numbers = #tpu.dot_dimension_numbers<[1], [1], [0], [0], [0, 0, 1, 0], [], []>} : vector<8x8xbf16>, vector<8x8xbf16>, vector<8x8xf32> -> vector<8x8xf32>
    %379 = arith.addf %378, %1 : vector<8x8xf32>
    %cst_163 = arith.constant dense<0xFF800000> : vector<8xf32>
    %380 = vector.multi_reduction <maximumf>, %379, %cst_163 [1] : vector<8x8xf32> to vector<8xf32>
    %381 = vector.shape_cast %380 : vector<8xf32> to vector<8x1xf32>
    %382 = vector.broadcast %381 : vector<8x1xf32> to vector<8x8xf32>
    %383 = arith.subf %379, %382 : vector<8x8xf32>
    %384 = math.exp %383 : vector<8x8xf32>
    %cst_164 = arith.constant dense<0.000000e+00> : vector<8xf32>
    %385 = vector.multi_reduction <add>, %384, %cst_164 [1] : vector<8x8xf32> to vector<8xf32>
    %386 = vector.shape_cast %385 : vector<8xf32> to vector<8x1xf32>
    %387 = tpu.reciprocal %386 {approx = true} : vector<8x1xf32> -> vector<8x1xf32>
    %388 = vector.broadcast %387 : vector<8x1xf32> to vector<8x8xf32>
    %389 = arith.mulf %384, %388 : vector<8x8xf32>
    %390 = arith.truncf %389 : vector<8x8xf32> to vector<8x8xbf16>
    %cst_165 = arith.constant dense<0.000000e+00> : vector<8x8xf32>
    %391 = tpu.matmul %390, %377, %cst_165 {dimension_numbers = #tpu.dot_dimension_numbers<[1], [0], [0], [1], [0, 0, 1, 1], [], []>} : vector<8x8xbf16>, vector<8x8xbf16>, vector<8x8xf32> -> vector<8x8xf32>
    %c0_166 = arith.constant 0 : index
    %c24_167 = arith.constant 24 : index
    %392 = vector.load %arg25[%c0_166, %c24_167] : memref<8x32xf32, #tpu.memory_space<vmem>>, vector<8x8xf32>
    tpu.vector_store %arg25[%c0_166, %c24_167], %391 {strides = array<i32>} : memref<8x32xf32, #tpu.memory_space<vmem>>, vector<8x8xf32>,
    %c0_168 = arith.constant 0 : index
    %c0_169 = arith.constant 0 : index
    %393 = vector.load %arg25[%c0_168, %c0_169] : memref<8x32xf32, #tpu.memory_space<vmem>>, vector<8x32xf32>
    %394 = arith.truncf %393 : vector<8x32xf32> to vector<8x32xbf16>
    %c0_170 = arith.constant 0 : index
    %c0_171 = arith.constant 0 : index
    %395 = vector.load %arg6[%c0_170, %c0_171] : memref<32x32xbf16, #tpu.memory_space<vmem>>, vector<32x32xbf16>
    %cst_172 = arith.constant dense<0.000000e+00> : vector<8x32xf32>
    %396 = tpu.matmul %394, %395, %cst_172 {dimension_numbers = #tpu.dot_dimension_numbers<[1], [0], [0], [1], [0, 0, 1, 1], [], []>} : vector<8x32xbf16>, vector<32x32xbf16>, vector<8x32xf32> -> vector<8x32xf32>
    %c0_173 = arith.constant 0 : index
    %c0_174 = arith.constant 0 : index
    %397 = vector.load %arg7[%c0_173, %c0_174] : memref<1x32xf32, #tpu.memory_space<vmem>>, vector<1x32xf32>
    %398 = vector.broadcast %397 : vector<1x32xf32> to vector<8x32xf32>
    %399 = arith.addf %396, %398 : vector<8x32xf32>
    %400 = arith.addf %282, %399 : vector<8x32xf32>
    %c0_175 = arith.constant 0 : index
    %c0_176 = arith.constant 0 : index
    %401 = vector.load %arg16[%c0_175, %c0_176] : memref<1x32xf32, #tpu.memory_space<vmem>>, vector<1x32xf32>
    %c0_177 = arith.constant 0 : index
    %c0_178 = arith.constant 0 : index
    %402 = vector.load %arg17[%c0_177, %c0_178] : memref<1x32xf32, #tpu.memory_space<vmem>>, vector<1x32xf32>
    %cst_179 = arith.constant dense<0.000000e+00> : vector<8xf32>
    %403 = vector.multi_reduction <add>, %400, %cst_179 [1] : vector<8x32xf32> to vector<8xf32>
    %404 = vector.shape_cast %403 : vector<8xf32> to vector<8x1xf32>
    %cst_180 = arith.constant 3.125000e-02 : f32
    %405 = vector.broadcast %cst_180 : f32 to vector<8x1xf32>
    %406 = arith.mulf %404, %405 : vector<8x1xf32>
    %407 = vector.broadcast %406 : vector<8x1xf32> to vector<8x32xf32>
    %408 = arith.subf %400, %407 : vector<8x32xf32>
    %409 = arith.mulf %408, %408 : vector<8x32xf32>
    %cst_181 = arith.constant dense<0.000000e+00> : vector<8xf32>
    %410 = vector.multi_reduction <add>, %409, %cst_181 [1] : vector<8x32xf32> to vector<8xf32>
    %411 = vector.shape_cast %410 : vector<8xf32> to vector<8x1xf32>
    %cst_182 = arith.constant 0.0322580636 : f32
    %412 = vector.broadcast %cst_182 : f32 to vector<8x1xf32>
    %413 = arith.mulf %411, %412 : vector<8x1xf32>
    %414 = math.sqrt %413 : vector<8x1xf32>
    %cst_183 = arith.constant 9.99999997E-7 : f32
    %415 = vector.broadcast %cst_183 : f32 to vector<8x1xf32>
    %416 = arith.addf %414, %415 : vector<8x1xf32>
    %cst_184 = arith.constant 1.000000e+00 : f32
    %417 = vector.broadcast %cst_184 : f32 to vector<8x1xf32>
    %418 = arith.divf %417, %416 : vector<8x1xf32>
    %419 = vector.broadcast %418 : vector<8x1xf32> to vector<8x32xf32>
    %420 = arith.mulf %408, %419 : vector<8x32xf32>
    %421 = vector.broadcast %401 : vector<1x32xf32> to vector<8x32xf32>
    %422 = arith.mulf %421, %420 : vector<8x32xf32>
    %423 = vector.broadcast %402 : vector<1x32xf32> to vector<8x32xf32>
    %424 = arith.addf %422, %423 : vector<8x32xf32>
    %425 = arith.truncf %424 : vector<8x32xf32> to vector<8x32xbf16>
    %c0_185 = arith.constant 0 : index
    %c0_186 = arith.constant 0 : index
    %426 = vector.load %arg10[%c0_185, %c0_186] : memref<32x32xbf16, #tpu.memory_space<vmem>>, vector<32x32xbf16>
    %cst_187 = arith.constant dense<0.000000e+00> : vector<8x32xf32>
    %427 = tpu.matmul %425, %426, %cst_187 {dimension_numbers = #tpu.dot_dimension_numbers<[1], [0], [0], [1], [0, 0, 1, 1], [], []>} : vector<8x32xbf16>, vector<32x32xbf16>, vector<8x32xf32> -> vector<8x32xf32>
    %c0_188 = arith.constant 0 : index
    %c0_189 = arith.constant 0 : index
    %428 = vector.load %arg11[%c0_188, %c0_189] : memref<1x32xf32, #tpu.memory_space<vmem>>, vector<1x32xf32>
    %429 = vector.broadcast %428 : vector<1x32xf32> to vector<8x32xf32>
    %430 = arith.addf %427, %429 : vector<8x32xf32>
    %431 = arith.truncf %284 : vector<8x32xf32> to vector<8x32xbf16>
    %c0_190 = arith.constant 0 : index
    %c0_191 = arith.constant 0 : index
    %432 = vector.load %arg12[%c0_190, %c0_191] : memref<32x64xbf16, #tpu.memory_space<vmem>>, vector<32x64xbf16>
    %cst_192 = arith.constant dense<0.000000e+00> : vector<8x64xf32>
    %433 = tpu.matmul %431, %432, %cst_192 {dimension_numbers = #tpu.dot_dimension_numbers<[1], [0], [0], [1], [0, 0, 1, 1], [], []>} : vector<8x32xbf16>, vector<32x64xbf16>, vector<8x64xf32> -> vector<8x64xf32>
    %c0_193 = arith.constant 0 : index
    %c0_194 = arith.constant 0 : index
    %434 = vector.load %arg13[%c0_193, %c0_194] : memref<1x64xf32, #tpu.memory_space<vmem>>, vector<1x64xf32>
    %435 = vector.broadcast %434 : vector<1x64xf32> to vector<8x64xf32>
    %436 = arith.addf %433, %435 : vector<8x64xf32>
    %437 = vector.extract_strided_slice %436 {offsets = [0, 0], sizes = [8, 32], strides = [1, 1]} : vector<8x64xf32> to vector<8x32xf32>
    %438 = vector.extract_strided_slice %436 {offsets = [0, 32], sizes = [8, 32], strides = [1, 1]} : vector<8x64xf32> to vector<8x32xf32>
    %439 = arith.truncf %430 : vector<8x32xf32> to vector<8x32xbf16>
    %440 = arith.truncf %437 : vector<8x32xf32> to vector<8x32xbf16>
    %441 = arith.truncf %438 : vector<8x32xf32> to vector<8x32xbf16>
    %442 = vector.extract_strided_slice %439 {offsets = [0, 0], sizes = [8, 8], strides = [1, 1]} : vector<8x32xbf16> to vector<8x8xbf16>
    %443 = vector.extract_strided_slice %440 {offsets = [0, 0], sizes = [8, 8], strides = [1, 1]} : vector<8x32xbf16> to vector<8x8xbf16>
    %444 = vector.extract_strided_slice %441 {offsets = [0, 0], sizes = [8, 8], strides = [1, 1]} : vector<8x32xbf16> to vector<8x8xbf16>
    %cst_195 = arith.constant dense<0.000000e+00> : vector<8x8xf32>
    %445 = tpu.matmul %442, %443, %cst_195 {dimension_numbers = #tpu.dot_dimension_numbers<[1], [1], [0], [0], [0, 0, 1, 0], [], []>} : vector<8x8xbf16>, vector<8x8xbf16>, vector<8x8xf32> -> vector<8x8xf32>
    %cst_196 = arith.constant dense<0xFF800000> : vector<8xf32>
    %446 = vector.multi_reduction <maximumf>, %445, %cst_196 [1] : vector<8x8xf32> to vector<8xf32>
    %447 = vector.shape_cast %446 : vector<8xf32> to vector<8x1xf32>
    %448 = vector.broadcast %447 : vector<8x1xf32> to vector<8x8xf32>
    %449 = arith.subf %445, %448 : vector<8x8xf32>
    %450 = math.exp %449 : vector<8x8xf32>
    %cst_197 = arith.constant dense<0.000000e+00> : vector<8xf32>
    %451 = vector.multi_reduction <add>, %450, %cst_197 [1] : vector<8x8xf32> to vector<8xf32>
    %452 = vector.shape_cast %451 : vector<8xf32> to vector<8x1xf32>
    %453 = tpu.reciprocal %452 {approx = true} : vector<8x1xf32> -> vector<8x1xf32>
    %454 = vector.broadcast %453 : vector<8x1xf32> to vector<8x8xf32>
    %455 = arith.mulf %450, %454 : vector<8x8xf32>
    %456 = arith.truncf %455 : vector<8x8xf32> to vector<8x8xbf16>
    %cst_198 = arith.constant dense<0.000000e+00> : vector<8x8xf32>
    %457 = tpu.matmul %456, %444, %cst_198 {dimension_numbers = #tpu.dot_dimension_numbers<[1], [0], [0], [1], [0, 0, 1, 1], [], []>} : vector<8x8xbf16>, vector<8x8xbf16>, vector<8x8xf32> -> vector<8x8xf32>
    %c0_199 = arith.constant 0 : index
    %c0_200 = arith.constant 0 : index
    %458 = vector.load %arg25[%c0_199, %c0_200] : memref<8x32xf32, #tpu.memory_space<vmem>>, vector<8x8xf32>
    tpu.vector_store %arg25[%c0_199, %c0_200], %457 {strides = array<i32>} : memref<8x32xf32, #tpu.memory_space<vmem>>, vector<8x8xf32>,
    %459 = vector.extract_strided_slice %439 {offsets = [0, 8], sizes = [8, 8], strides = [1, 1]} : vector<8x32xbf16> to vector<8x8xbf16>
    %460 = vector.extract_strided_slice %440 {offsets = [0, 8], sizes = [8, 8], strides = [1, 1]} : vector<8x32xbf16> to vector<8x8xbf16>
    %461 = vector.extract_strided_slice %441 {offsets = [0, 8], sizes = [8, 8], strides = [1, 1]} : vector<8x32xbf16> to vector<8x8xbf16>
    %cst_201 = arith.constant dense<0.000000e+00> : vector<8x8xf32>
    %462 = tpu.matmul %459, %460, %cst_201 {dimension_numbers = #tpu.dot_dimension_numbers<[1], [1], [0], [0], [0, 0, 1, 0], [], []>} : vector<8x8xbf16>, vector<8x8xbf16>, vector<8x8xf32> -> vector<8x8xf32>
    %cst_202 = arith.constant dense<0xFF800000> : vector<8xf32>
    %463 = vector.multi_reduction <maximumf>, %462, %cst_202 [1] : vector<8x8xf32> to vector<8xf32>
    %464 = vector.shape_cast %463 : vector<8xf32> to vector<8x1xf32>
    %465 = vector.broadcast %464 : vector<8x1xf32> to vector<8x8xf32>
    %466 = arith.subf %462, %465 : vector<8x8xf32>
    %467 = math.exp %466 : vector<8x8xf32>
    %cst_203 = arith.constant dense<0.000000e+00> : vector<8xf32>
    %468 = vector.multi_reduction <add>, %467, %cst_203 [1] : vector<8x8xf32> to vector<8xf32>
    %469 = vector.shape_cast %468 : vector<8xf32> to vector<8x1xf32>
    %470 = tpu.reciprocal %469 {approx = true} : vector<8x1xf32> -> vector<8x1xf32>
    %471 = vector.broadcast %470 : vector<8x1xf32> to vector<8x8xf32>
    %472 = arith.mulf %467, %471 : vector<8x8xf32>
    %473 = arith.truncf %472 : vector<8x8xf32> to vector<8x8xbf16>
    %cst_204 = arith.constant dense<0.000000e+00> : vector<8x8xf32>
    %474 = tpu.matmul %473, %461, %cst_204 {dimension_numbers = #tpu.dot_dimension_numbers<[1], [0], [0], [1], [0, 0, 1, 1], [], []>} : vector<8x8xbf16>, vector<8x8xbf16>, vector<8x8xf32> -> vector<8x8xf32>
    %c0_205 = arith.constant 0 : index
    %c8_206 = arith.constant 8 : index
    %475 = vector.load %arg25[%c0_205, %c8_206] : memref<8x32xf32, #tpu.memory_space<vmem>>, vector<8x8xf32>
    tpu.vector_store %arg25[%c0_205, %c8_206], %474 {strides = array<i32>} : memref<8x32xf32, #tpu.memory_space<vmem>>, vector<8x8xf32>,
    %476 = vector.extract_strided_slice %439 {offsets = [0, 16], sizes = [8, 8], strides = [1, 1]} : vector<8x32xbf16> to vector<8x8xbf16>
    %477 = vector.extract_strided_slice %440 {offsets = [0, 16], sizes = [8, 8], strides = [1, 1]} : vector<8x32xbf16> to vector<8x8xbf16>
    %478 = vector.extract_strided_slice %441 {offsets = [0, 16], sizes = [8, 8], strides = [1, 1]} : vector<8x32xbf16> to vector<8x8xbf16>
    %cst_207 = arith.constant dense<0.000000e+00> : vector<8x8xf32>
    %479 = tpu.matmul %476, %477, %cst_207 {dimension_numbers = #tpu.dot_dimension_numbers<[1], [1], [0], [0], [0, 0, 1, 0], [], []>} : vector<8x8xbf16>, vector<8x8xbf16>, vector<8x8xf32> -> vector<8x8xf32>
    %cst_208 = arith.constant dense<0xFF800000> : vector<8xf32>
    %480 = vector.multi_reduction <maximumf>, %479, %cst_208 [1] : vector<8x8xf32> to vector<8xf32>
    %481 = vector.shape_cast %480 : vector<8xf32> to vector<8x1xf32>
    %482 = vector.broadcast %481 : vector<8x1xf32> to vector<8x8xf32>
    %483 = arith.subf %479, %482 : vector<8x8xf32>
    %484 = math.exp %483 : vector<8x8xf32>
    %cst_209 = arith.constant dense<0.000000e+00> : vector<8xf32>
    %485 = vector.multi_reduction <add>, %484, %cst_209 [1] : vector<8x8xf32> to vector<8xf32>
    %486 = vector.shape_cast %485 : vector<8xf32> to vector<8x1xf32>
    %487 = tpu.reciprocal %486 {approx = true} : vector<8x1xf32> -> vector<8x1xf32>
    %488 = vector.broadcast %487 : vector<8x1xf32> to vector<8x8xf32>
    %489 = arith.mulf %484, %488 : vector<8x8xf32>
    %490 = arith.truncf %489 : vector<8x8xf32> to vector<8x8xbf16>
    %cst_210 = arith.constant dense<0.000000e+00> : vector<8x8xf32>
    %491 = tpu.matmul %490, %478, %cst_210 {dimension_numbers = #tpu.dot_dimension_numbers<[1], [0], [0], [1], [0, 0, 1, 1], [], []>} : vector<8x8xbf16>, vector<8x8xbf16>, vector<8x8xf32> -> vector<8x8xf32>
    %c0_211 = arith.constant 0 : index
    %c16_212 = arith.constant 16 : index
    %492 = vector.load %arg25[%c0_211, %c16_212] : memref<8x32xf32, #tpu.memory_space<vmem>>, vector<8x8xf32>
    tpu.vector_store %arg25[%c0_211, %c16_212], %491 {strides = array<i32>} : memref<8x32xf32, #tpu.memory_space<vmem>>, vector<8x8xf32>,
    %493 = vector.extract_strided_slice %439 {offsets = [0, 24], sizes = [8, 8], strides = [1, 1]} : vector<8x32xbf16> to vector<8x8xbf16>
    %494 = vector.extract_strided_slice %440 {offsets = [0, 24], sizes = [8, 8], strides = [1, 1]} : vector<8x32xbf16> to vector<8x8xbf16>
    %495 = vector.extract_strided_slice %441 {offsets = [0, 24], sizes = [8, 8], strides = [1, 1]} : vector<8x32xbf16> to vector<8x8xbf16>
    %cst_213 = arith.constant dense<0.000000e+00> : vector<8x8xf32>
    %496 = tpu.matmul %493, %494, %cst_213 {dimension_numbers = #tpu.dot_dimension_numbers<[1], [1], [0], [0], [0, 0, 1, 0], [], []>} : vector<8x8xbf16>, vector<8x8xbf16>, vector<8x8xf32> -> vector<8x8xf32>
    %cst_214 = arith.constant dense<0xFF800000> : vector<8xf32>
    %497 = vector.multi_reduction <maximumf>, %496, %cst_214 [1] : vector<8x8xf32> to vector<8xf32>
    %498 = vector.shape_cast %497 : vector<8xf32> to vector<8x1xf32>
    %499 = vector.broadcast %498 : vector<8x1xf32> to vector<8x8xf32>
    %500 = arith.subf %496, %499 : vector<8x8xf32>
    %501 = math.exp %500 : vector<8x8xf32>
    %cst_215 = arith.constant dense<0.000000e+00> : vector<8xf32>
    %502 = vector.multi_reduction <add>, %501, %cst_215 [1] : vector<8x8xf32> to vector<8xf32>
    %503 = vector.shape_cast %502 : vector<8xf32> to vector<8x1xf32>
    %504 = tpu.reciprocal %503 {approx = true} : vector<8x1xf32> -> vector<8x1xf32>
    %505 = vector.broadcast %504 : vector<8x1xf32> to vector<8x8xf32>
    %506 = arith.mulf %501, %505 : vector<8x8xf32>
    %507 = arith.truncf %506 : vector<8x8xf32> to vector<8x8xbf16>
    %cst_216 = arith.constant dense<0.000000e+00> : vector<8x8xf32>
    %508 = tpu.matmul %507, %495, %cst_216 {dimension_numbers = #tpu.dot_dimension_numbers<[1], [0], [0], [1], [0, 0, 1, 1], [], []>} : vector<8x8xbf16>, vector<8x8xbf16>, vector<8x8xf32> -> vector<8x8xf32>
    %c0_217 = arith.constant 0 : index
    %c24_218 = arith.constant 24 : index
    %509 = vector.load %arg25[%c0_217, %c24_218] : memref<8x32xf32, #tpu.memory_space<vmem>>, vector<8x8xf32>
    tpu.vector_store %arg25[%c0_217, %c24_218], %508 {strides = array<i32>} : memref<8x32xf32, #tpu.memory_space<vmem>>, vector<8x8xf32>,
    %c0_219 = arith.constant 0 : index
    %c0_220 = arith.constant 0 : index
    %510 = vector.load %arg25[%c0_219, %c0_220] : memref<8x32xf32, #tpu.memory_space<vmem>>, vector<8x32xf32>
    %511 = arith.truncf %510 : vector<8x32xf32> to vector<8x32xbf16>
    %c0_221 = arith.constant 0 : index
    %c0_222 = arith.constant 0 : index
    %512 = vector.load %arg14[%c0_221, %c0_222] : memref<32x32xbf16, #tpu.memory_space<vmem>>, vector<32x32xbf16>
    %cst_223 = arith.constant dense<0.000000e+00> : vector<8x32xf32>
    %513 = tpu.matmul %511, %512, %cst_223 {dimension_numbers = #tpu.dot_dimension_numbers<[1], [0], [0], [1], [0, 0, 1, 1], [], []>} : vector<8x32xbf16>, vector<32x32xbf16>, vector<8x32xf32> -> vector<8x32xf32>
    %c0_224 = arith.constant 0 : index
    %c0_225 = arith.constant 0 : index
    %514 = vector.load %arg15[%c0_224, %c0_225] : memref<1x32xf32, #tpu.memory_space<vmem>>, vector<1x32xf32>
    %515 = vector.broadcast %514 : vector<1x32xf32> to vector<8x32xf32>
    %516 = arith.addf %513, %515 : vector<8x32xf32>
    %517 = arith.addf %400, %516 : vector<8x32xf32>
    %c0_226 = arith.constant 0 : index
    %c0_227 = arith.constant 0 : index
    %518 = vector.load %arg22[%c0_226, %c0_227] : memref<1x32xf32, #tpu.memory_space<vmem>>, vector<1x32xf32>
    %c0_228 = arith.constant 0 : index
    %c0_229 = arith.constant 0 : index
    %519 = vector.load %arg23[%c0_228, %c0_229] : memref<1x32xf32, #tpu.memory_space<vmem>>, vector<1x32xf32>
    %cst_230 = arith.constant dense<0.000000e+00> : vector<8xf32>
    %520 = vector.multi_reduction <add>, %517, %cst_230 [1] : vector<8x32xf32> to vector<8xf32>
    %521 = vector.shape_cast %520 : vector<8xf32> to vector<8x1xf32>
    %cst_231 = arith.constant 3.125000e-02 : f32
    %522 = vector.broadcast %cst_231 : f32 to vector<8x1xf32>
    %523 = arith.mulf %521, %522 : vector<8x1xf32>
    %524 = vector.broadcast %523 : vector<8x1xf32> to vector<8x32xf32>
    %525 = arith.subf %517, %524 : vector<8x32xf32>
    %526 = arith.mulf %525, %525 : vector<8x32xf32>
    %cst_232 = arith.constant dense<0.000000e+00> : vector<8xf32>
    %527 = vector.multi_reduction <add>, %526, %cst_232 [1] : vector<8x32xf32> to vector<8xf32>
    %528 = vector.shape_cast %527 : vector<8xf32> to vector<8x1xf32>
    %cst_233 = arith.constant 0.0322580636 : f32
    %529 = vector.broadcast %cst_233 : f32 to vector<8x1xf32>
    %530 = arith.mulf %528, %529 : vector<8x1xf32>
    %531 = math.sqrt %530 : vector<8x1xf32>
    %cst_234 = arith.constant 9.99999997E-7 : f32
    %532 = vector.broadcast %cst_234 : f32 to vector<8x1xf32>
    %533 = arith.addf %531, %532 : vector<8x1xf32>
    %cst_235 = arith.constant 1.000000e+00 : f32
    %534 = vector.broadcast %cst_235 : f32 to vector<8x1xf32>
    %535 = arith.divf %534, %533 : vector<8x1xf32>
    %536 = vector.broadcast %535 : vector<8x1xf32> to vector<8x32xf32>
    %537 = arith.mulf %525, %536 : vector<8x32xf32>
    %538 = vector.broadcast %518 : vector<1x32xf32> to vector<8x32xf32>
    %539 = arith.mulf %538, %537 : vector<8x32xf32>
    %540 = vector.broadcast %519 : vector<1x32xf32> to vector<8x32xf32>
    %541 = arith.addf %539, %540 : vector<8x32xf32>
    %542 = arith.truncf %541 : vector<8x32xf32> to vector<8x32xbf16>
    %c0_236 = arith.constant 0 : index
    %c0_237 = arith.constant 0 : index
    %543 = vector.load %arg21[%c0_236, %c0_237] : memref<1x32xf32, #tpu.memory_space<vmem>>, vector<1x32xf32>
    %544 = vector.broadcast %543 : vector<1x32xf32> to vector<8x32xf32>
    %545 = arith.addf %517, %544 : vector<8x32xf32>
    %c0_238 = arith.constant 0 : index
    %c0_239 = arith.constant 0 : index
    %546 = vector.load %arg18[%c0_238, %c0_239] : memref<32x64xbf16, #tpu.memory_space<vmem>>, vector<32x64xbf16>
    %cst_240 = arith.constant dense<0.000000e+00> : vector<8x64xf32>
    %547 = tpu.matmul %542, %546, %cst_240 {dimension_numbers = #tpu.dot_dimension_numbers<[1], [0], [0], [1], [0, 0, 1, 1], [], []>} : vector<8x32xbf16>, vector<32x64xbf16>, vector<8x64xf32> -> vector<8x64xf32>
    %c0_241 = arith.constant 0 : index
    %c0_242 = arith.constant 0 : index
    %548 = vector.load %arg19[%c0_241, %c0_242] : memref<1x64xf32, #tpu.memory_space<vmem>>, vector<1x64xf32>
    %549 = vector.broadcast %548 : vector<1x64xf32> to vector<8x64xf32>
    %550 = arith.addf %547, %549 : vector<8x64xf32>
    %cst_243 = arith.constant 0.000000e+00 : f32
    %551 = vector.broadcast %cst_243 : f32 to vector<8x64xf32>
    %552 = arith.maximumf %550, %551 : vector<8x64xf32>
    %553 = arith.truncf %552 : vector<8x64xf32> to vector<8x64xbf16>
    %c0_244 = arith.constant 0 : index
    %c0_245 = arith.constant 0 : index
    %554 = vector.load %arg20[%c0_244, %c0_245] : memref<64x32xbf16, #tpu.memory_space<vmem>>, vector<64x32xbf16>
    %cst_246 = arith.constant dense<0.000000e+00> : vector<8x32xf32>
    %555 = tpu.matmul %553, %554, %cst_246 {dimension_numbers = #tpu.dot_dimension_numbers<[1], [0], [0], [1], [0, 0, 1, 1], [], []>} : vector<8x64xbf16>, vector<64x32xbf16>, vector<8x32xf32> -> vector<8x32xf32>
    %556 = arith.addf %545, %555 : vector<8x32xf32>
    %c1_247 = arith.constant 1 : index
    %c0_248 = arith.constant 0 : index
    %c0_249 = arith.constant 0 : index
    %557 = vector.load %arg24[%c1_247, %c0_248, %c0_249] : memref<2x8x32xf32, #tpu.memory_space<vmem>>, vector<1x8x32xf32>
    %558 = vector.shape_cast %557 : vector<1x8x32xf32> to vector<8x32xf32>
    %559 = vector.shape_cast %556 : vector<8x32xf32> to vector<1x8x32xf32>
    tpu.vector_store %arg24[%c1_247, %c0_248, %c0_249], %559 {strides = array<i32>} : memref<2x8x32xf32, #tpu.memory_space<vmem>>, vector<1x8x32xf32>,
    return
  }
  func.func @transform_0(%arg0: i32) -> (i32, i32, i32) {
    %c0_i32 = arith.constant 0 : i32
    %c0_i32_0 = arith.constant 0 : i32
    %c0_i32_1 = arith.constant 0 : i32
    return %arg0, %c0_i32, %c0_i32_0 : i32, i32, i32
  }
  func.func @transform_1(%arg0: i32) -> (i32, i32, i32) {
    %c0_i32 = arith.constant 0 : i32
    %c0_i32_0 = arith.constant 0 : i32
    %c0_i32_1 = arith.constant 0 : i32
    return %arg0, %c0_i32, %c0_i32_0 : i32, i32, i32
  }
  func.func @transform_2(%arg0: i32) -> (i32, i32) {
    %c0_i32 = arith.constant 0 : i32
    %c0_i32_0 = arith.constant 0 : i32
    %c0_i32_1 = arith.constant 0 : i32
    return %c0_i32, %c0_i32_0 : i32, i32
  }
  func.func @transform_3(%arg0: i32) -> (i32, i32) {
    %c0_i32 = arith.constant 0 : i32
    %c0_i32_0 = arith.constant 0 : i32
    %c0_i32_1 = arith.constant 0 : i32
    return %c0_i32, %c0_i32_0 : i32, i32
  }
  func.func @transform_4(%arg0: i32) -> (i32, i32) {
    %c0_i32 = arith.constant 0 : i32
    %c0_i32_0 = arith.constant 0 : i32
    %c0_i32_1 = arith.constant 0 : i32
    return %c0_i32, %c0_i32_0 : i32, i32
  }
  func.func @transform_5(%arg0: i32) -> (i32, i32) {
    %c0_i32 = arith.constant 0 : i32
    %c0_i32_0 = arith.constant 0 : i32
    %c0_i32_1 = arith.constant 0 : i32
    return %c0_i32, %c0_i32_0 : i32, i32
  }
  func.func @transform_6(%arg0: i32) -> (i32, i32) {
    %c0_i32 = arith.constant 0 : i32
    %c0_i32_0 = arith.constant 0 : i32
    %c0_i32_1 = arith.constant 0 : i32
    return %c0_i32, %c0_i32_0 : i32, i32
  }
  func.func @transform_7(%arg0: i32) -> (i32, i32) {
    %c0_i32 = arith.constant 0 : i32
    %c0_i32_0 = arith.constant 0 : i32
    %c0_i32_1 = arith.constant 0 : i32
    return %c0_i32, %c0_i32_0 : i32, i32
  }
  func.func @transform_8(%arg0: i32) -> (i32, i32) {
    %c0_i32 = arith.constant 0 : i32
    %c0_i32_0 = arith.constant 0 : i32
    %c0_i32_1 = arith.constant 0 : i32
    return %c0_i32, %c0_i32_0 : i32, i32
  }
  func.func @transform_9(%arg0: i32) -> (i32, i32) {
    %c0_i32 = arith.constant 0 : i32
    %c0_i32_0 = arith.constant 0 : i32
    %c0_i32_1 = arith.constant 0 : i32
    return %c0_i32, %c0_i32_0 : i32, i32
  }
  func.func @transform_10(%arg0: i32) -> (i32, i32) {
    %c0_i32 = arith.constant 0 : i32
    %c0_i32_0 = arith.constant 0 : i32
    %c0_i32_1 = arith.constant 0 : i32
    return %c0_i32, %c0_i32_0 : i32, i32
  }
  func.func @transform_11(%arg0: i32) -> (i32, i32) {
    %c0_i32 = arith.constant 0 : i32
    %c0_i32_0 = arith.constant 0 : i32
    %c0_i32_1 = arith.constant 0 : i32
    return %c0_i32, %c0_i32_0 : i32, i32
  }
  func.func @transform_12(%arg0: i32) -> (i32, i32) {
    %c0_i32 = arith.constant 0 : i32
    %c0_i32_0 = arith.constant 0 : i32
    %c0_i32_1 = arith.constant 0 : i32
    return %c0_i32, %c0_i32_0 : i32, i32
  }
  func.func @transform_13(%arg0: i32) -> (i32, i32) {
    %c0_i32 = arith.constant 0 : i32
    %c0_i32_0 = arith.constant 0 : i32
    %c0_i32_1 = arith.constant 0 : i32
    return %c0_i32, %c0_i32_0 : i32, i32
  }
  func.func @transform_14(%arg0: i32) -> (i32, i32) {
    %c0_i32 = arith.constant 0 : i32
    %c0_i32_0 = arith.constant 0 : i32
    %c0_i32_1 = arith.constant 0 : i32
    return %c0_i32, %c0_i32_0 : i32, i32
  }
  func.func @transform_15(%arg0: i32) -> (i32, i32) {
    %c0_i32 = arith.constant 0 : i32
    %c0_i32_0 = arith.constant 0 : i32
    %c0_i32_1 = arith.constant 0 : i32
    return %c0_i32, %c0_i32_0 : i32, i32
  }
  func.func @transform_16(%arg0: i32) -> (i32, i32) {
    %c0_i32 = arith.constant 0 : i32
    %c0_i32_0 = arith.constant 0 : i32
    %c0_i32_1 = arith.constant 0 : i32
    return %c0_i32, %c0_i32_0 : i32, i32
  }
  func.func @transform_17(%arg0: i32) -> (i32, i32) {
    %c0_i32 = arith.constant 0 : i32
    %c0_i32_0 = arith.constant 0 : i32
    %c0_i32_1 = arith.constant 0 : i32
    return %c0_i32, %c0_i32_0 : i32, i32
  }
  func.func @transform_18(%arg0: i32) -> (i32, i32) {
    %c0_i32 = arith.constant 0 : i32
    %c0_i32_0 = arith.constant 0 : i32
    %c0_i32_1 = arith.constant 0 : i32
    return %c0_i32, %c0_i32_0 : i32, i32
  }
  func.func @transform_19(%arg0: i32) -> (i32, i32) {
    %c0_i32 = arith.constant 0 : i32
    %c0_i32_0 = arith.constant 0 : i32
    %c0_i32_1 = arith.constant 0 : i32
    return %c0_i32, %c0_i32_0 : i32, i32
  }
  func.func @transform_20(%arg0: i32) -> (i32, i32) {
    %c0_i32 = arith.constant 0 : i32
    %c0_i32_0 = arith.constant 0 : i32
    %c0_i32_1 = arith.constant 0 : i32
    return %c0_i32, %c0_i32_0 : i32, i32
  }
  func.func @transform_21(%arg0: i32) -> (i32, i32) {
    %c0_i32 = arith.constant 0 : i32
    %c0_i32_0 = arith.constant 0 : i32
    %c0_i32_1 = arith.constant 0 : i32
    return %c0_i32, %c0_i32_0 : i32, i32
  }
  func.func @transform_22(%arg0: i32) -> (i32, i32) {
    %c0_i32 = arith.constant 0 : i32
    %c0_i32_0 = arith.constant 0 : i32
    %c0_i32_1 = arith.constant 0 : i32
    return %c0_i32, %c0_i32_0 : i32, i32
  }
  func.func @transform_23(%arg0: i32) -> (i32, i32, i32) {
    %c0_i32 = arith.constant 0 : i32
    %c0_i32_0 = arith.constant 0 : i32
    %c0_i32_1 = arith.constant 0 : i32
    return %arg0, %c0_i32, %c0_i32_0 : i32, i32, i32
  }
}

</mosaic_0001>

<llo_original>
// kernel: tpu_custom_call.1
$region0: #{tpu_custom_call.1}
  #allocation0 [shape = 'u32[]', space=smem, size = 0x4, offset = 0x4, fixed_abs, tag = 'smem constant byte address 0x4 - core index']
  #allocation1 [shape = 'u32[72,128]{1,0:T(1,128)}', space=vmem, size = 0x9000, scoped, tag = 'internal scratch']
  #allocation2 [shape = 'f32[8,32]{1,0:T(8,128)}', space=vmem, size = 0x1000, scoped, tag = 'scratch operand']
  %s0 = inlined_call_operand.vmem [shape: f32[2,8,32], index: 0, kind: input, shape index: {}]
  %s1 = inlined_call_operand.vmem [shape: f32[2,8,32], index: 1, kind: input, shape index: {}]
  %s2 = inlined_call_operand.hbm [shape: bf16[8,8], index: 2, kind: input, shape index: {}]
  %s3 = inlined_call_operand.vmem [shape: bf16[32,96], index: 3, kind: input, shape index: {}]
  %s4 = inlined_call_operand.vmem [shape: f32[1,96], index: 4, kind: input, shape index: {}]
  %s5 = inlined_call_operand.hbm [shape: bf16[32,32], index: 5, kind: input, shape index: {}]
  %s6 = inlined_call_operand.vmem [shape: f32[1,32], index: 6, kind: input, shape index: {}]
  %s7 = inlined_call_operand.hbm [shape: f32[1,32], index: 7, kind: input, shape index: {}]
  %s8 = inlined_call_operand.hbm [shape: f32[1,32], index: 8, kind: input, shape index: {}]
  %s9 = inlined_call_operand.hbm [shape: bf16[32,32], index: 9, kind: input, shape index: {}]
  %s10 = inlined_call_operand.hbm [shape: f32[1,32], index: 10, kind: input, shape index: {}]
  %s11 = inlined_call_operand.hbm [shape: bf16[32,64], index: 11, kind: input, shape index: {}]
  %s12 = inlined_call_operand.hbm [shape: f32[1,64], index: 12, kind: input, shape index: {}]
  %s13 = inlined_call_operand.hbm [shape: bf16[32,32], index: 13, kind: input, shape index: {}]
  %s14 = inlined_call_operand.hbm [shape: f32[1,32], index: 14, kind: input, shape index: {}]
  %s15 = inlined_call_operand.hbm [shape: f32[1,32], index: 15, kind: input, shape index: {}]
  %s16 = inlined_call_operand.hbm [shape: f32[1,32], index: 16, kind: input, shape index: {}]
  %s17 = inlined_call_operand.hbm [shape: bf16[32,64], index: 17, kind: input, shape index: {}]
  %s18 = inlined_call_operand.hbm [shape: f32[1,64], index: 18, kind: input, shape index: {}]
  %s19 = inlined_call_operand.vmem [shape: bf16[64,32], index: 19, kind: input, shape index: {}]
  %s20 = inlined_call_operand.vmem [shape: f32[1,32], index: 20, kind: input, shape index: {}]
  %s21 = inlined_call_operand.vmem [shape: f32[1,32], index: 21, kind: input, shape index: {}]
  %s22 = inlined_call_operand.vmem [shape: f32[1,32], index: 22, kind: input, shape index: {}]
  %s23 = inlined_call_operand.hbm [shape: f32[2,8,32], index: 23, kind: output, shape index: {}]
  %s24 = sld [smem:[#allocation0]]
  $region158: #{tpu_custom_call.1} parent=0
    _
  %s26 = ssub.s32 1, %s24
  %s27 = scalar_select 0, %s26, %s24
  $region1: #{tpu_custom_call.1} parent=0
    #allocation3 [shape = 'u8[2048]{0}', space=vmem, size = 0x800, scoped, tag = 'input window, operand 2, single buffered']
    #allocation4 [shape = 's32[1]{0}', space=sflag, size = 0x4, scoped, tag = 'scoped memory for tpu_custom_call.1']
    #allocation5 [shape = 's32[1]{0}', space=sflag, size = 0x4, scoped, tag = 'scoped memory for tpu_custom_call.1']
    #allocation6 [shape = 'u8[8192]{0}', space=vmem, size = 0x2000, scoped, tag = 'input window, operand 5, single buffered']
    #allocation7 [shape = 's32[1]{0}', space=sflag, size = 0x4, scoped, tag = 'scoped memory for tpu_custom_call.1']
    #allocation8 [shape = 'u8[512]{0}', space=vmem, size = 0x400, scoped, tag = 'input window, operand 7, single buffered']
    #allocation9 [shape = 'u8[512]{0}', space=vmem, size = 0x400, scoped, tag = 'input window, operand 8, single buffered']
    #allocation10 [shape = 's32[1]{0}', space=sflag, size = 0x4, scoped, tag = 'scoped memory for tpu_custom_call.1']
    #allocation11 [shape = 'u8[8192]{0}', space=vmem, size = 0x2000, scoped, tag = 'input window, operand 9, single buffered']
    #allocation12 [shape = 'u8[512]{0}', space=vmem, size = 0x400, scoped, tag = 'input window, operand 10, single buffered']
    #allocation13 [shape = 's32[1]{0}', space=sflag, size = 0x4, scoped, tag = 'scoped memory for tpu_custom_call.1']
    #allocation14 [shape = 'u8[8192]{0}', space=vmem, size = 0x2000, scoped, tag = 'input window, operand 11, single buffered']
    #allocation15 [shape = 'u8[512]{0}', space=vmem, size = 0x400, scoped, tag = 'input window, operand 12, single buffered']
    #allocation16 [shape = 's32[1]{0}', space=sflag, size = 0x4, scoped, tag = 'scoped memory for tpu_custom_call.1']
    #allocation17 [shape = 'u8[8192]{0}', space=vmem, size = 0x2000, scoped, tag = 'input window, operand 13, single buffered']
    #allocation18 [shape = 'u8[512]{0}', space=vmem, size = 0x400, scoped, tag = 'input window, operand 14, single buffered']
    #allocation19 [shape = 's32[1]{0}', space=sflag, size = 0x4, scoped, tag = 'scoped memory for tpu_custom_call.1']
    #allocation20 [shape = 'u8[512]{0}', space=vmem, size = 0x400, scoped, tag = 'input window, operand 15, single buffered']
    #allocation21 [shape = 'u8[512]{0}', space=vmem, size = 0x400, scoped, tag = 'input window, operand 16, single buffered']
    #allocation22 [shape = 's32[1]{0}', space=sflag, size = 0x4, scoped, tag = 'scoped memory for tpu_custom_call.1']
    #allocation23 [shape = 'u8[8192]{0}', space=vmem, size = 0x2000, scoped, tag = 'input window, operand 17, single buffered']
    #allocation24 [shape = 'u8[512]{0}', space=vmem, size = 0x400, scoped, tag = 'input window, operand 18, single buffered']
    #allocation25 [shape = 's32[1]{0}', space=sflag, size = 0x4, scoped, tag = 'scoped memory for tpu_custom_call.1']
    #allocation26 [shape = 'u8[8192]{0}', space=vmem, size = 0x2000, scoped, tag = 'output window, operand 0, single buffered']
    %28 = vsyncpa [#allocation4], 0
    %29 = vsyncpa [#allocation7], 0
    %30 = vsyncpa [#allocation10], 0
    %31 = vsyncpa [#allocation13], 0
    %32 = vsyncpa [#allocation16], 0
    %33 = vsyncpa [#allocation19], 0
    %34 = vsyncpa [#allocation22], 0
    %35 = vsyncpa [#allocation25], 0
    %36 = vsyncpa [#allocation5], 0
    // Predicated region
    $region2: #{tpu_custom_call.1} parent=1 // pred_check
      _
    $region3: #{tpu_custom_call.1} parent=1 // pred_check_branch
      %38 = sbr.rel (0) target = $region5
    $region4: #{tpu_custom_call.1} parent=1 // pred_region
      _
    $region5: #{tpu_custom_call.1} parent=1 // pred_fallthru
      _
    // Predicated region
    $region6: #{tpu_custom_call.1} parent=1 // pred_check
      _
    $region7: #{tpu_custom_call.1} parent=1 // pred_check_branch
      %40 = sbr.rel (0) target = $region9
    $region8: #{tpu_custom_call.1} parent=1 // pred_region
      _
    $region9: #{tpu_custom_call.1} parent=1 // pred_fallthru
      _
    // Predicated region
    $region10: #{tpu_custom_call.1} parent=1 // pred_check
      _
    $region11: #{tpu_custom_call.1} parent=1 // pred_check_branch
      %42 = sbr.rel (0) target = $region13
    $region12: #{tpu_custom_call.1} parent=1 // pred_region
      %44 = vsyncadd [#allocation4], 0
      %s46 = sshll.u32 %s2, 4
      %s47 = int_to_ptr.hbm [resolvable:$true] %s46
      %s48 = sshll.u32 [#allocation3], 4
      %s49 = int_to_ptr.vmem [resolvable:$true] %s48
      %51 = dma.hbm_to_vmem [thread:$0]  %s47, 64, %s49, [#allocation4]
    $region13: #{tpu_custom_call.1} parent=1 // pred_fallthru
      _
    // Predicated region
    $region14: #{tpu_custom_call.1} parent=1 // pred_check
      _
    $region15: #{tpu_custom_call.1} parent=1 // pred_check_branch
      %53 = sbr.rel (0) target = $region17
    $region16: #{tpu_custom_call.1} parent=1 // pred_region
      _
    $region17: #{tpu_custom_call.1} parent=1 // pred_fallthru
      _
    // Predicated region
    $region18: #{tpu_custom_call.1} parent=1 // pred_check
      _
    $region19: #{tpu_custom_call.1} parent=1 // pred_check_branch
      %55 = sbr.rel (0) target = $region21
    $region20: #{tpu_custom_call.1} parent=1 // pred_region
      _
    $region21: #{tpu_custom_call.1} parent=1 // pred_fallthru
      _
    // Predicated region
    $region22: #{tpu_custom_call.1} parent=1 // pred_check
      _
    $region23: #{tpu_custom_call.1} parent=1 // pred_check_branch
      %57 = sbr.rel (0) target = $region25
    $region24: #{tpu_custom_call.1} parent=1 // pred_region
      %59 = vsyncadd [#allocation7], 0
      %s60 = sshll.u32 %s5, 4
      %s61 = int_to_ptr.hbm [resolvable:$true] %s60
      %s62 = sshll.u32 [#allocation6], 4
      %s63 = int_to_ptr.vmem [resolvable:$true] %s62
      %68 = dma.hbm_to_vmem [thread:$0]  %s61, 256, %s63, [#allocation7], 64, 64, 4
    $region25: #{tpu_custom_call.1} parent=1 // pred_fallthru
      _
    // Predicated region
    $region26: #{tpu_custom_call.1} parent=1 // pred_check
      _
    $region27: #{tpu_custom_call.1} parent=1 // pred_check_branch
      %70 = sbr.rel (0) target = $region29
    $region28: #{tpu_custom_call.1} parent=1 // pred_region
      _
    $region29: #{tpu_custom_call.1} parent=1 // pred_fallthru
      _
    // Predicated region
    $region30: #{tpu_custom_call.1} parent=1 // pred_check
      _
    $region31: #{tpu_custom_call.1} parent=1 // pred_check_branch
      %72 = sbr.rel (0) target = $region33
    $region32: #{tpu_custom_call.1} parent=1 // pred_region
      %74 = vsyncadd [#allocation7], 0
      %s76 = sshll.u32 %s7, 4
      %s77 = int_to_ptr.hbm [resolvable:$true] %s76
      %s78 = sshll.u32 [#allocation8], 4
      %s79 = int_to_ptr.vmem [resolvable:$true] %s78
      %81 = dma.hbm_to_vmem [thread:$0]  %s77, 16, %s79, [#allocation7]
    $region33: #{tpu_custom_call.1} parent=1 // pred_fallthru
      _
    // Predicated region
    $region34: #{tpu_custom_call.1} parent=1 // pred_check
      _
    $region35: #{tpu_custom_call.1} parent=1 // pred_check_branch
      %83 = sbr.rel (0) target = $region37
    $region36: #{tpu_custom_call.1} parent=1 // pred_region
      %85 = vsyncadd [#allocation10], 0
      %s87 = sshll.u32 %s8, 4
      %s88 = int_to_ptr.hbm [resolvable:$true] %s87
      %s89 = sshll.u32 [#allocation9], 4
      %s90 = int_to_ptr.vmem [resolvable:$true] %s89
      %92 = dma.hbm_to_vmem [thread:$0]  %s88, 16, %s90, [#allocation10]
    $region37: #{tpu_custom_call.1} parent=1 // pred_fallthru
      _
    // Predicated region
    $region38: #{tpu_custom_call.1} parent=1 // pred_check
      _
    $region39: #{tpu_custom_call.1} parent=1 // pred_check_branch
      %94 = sbr.rel (0) target = $region41
    $region40: #{tpu_custom_call.1} parent=1 // pred_region
      %96 = vsyncadd [#allocation10], 0
      %s97 = sshll.u32 %s9, 4
      %s98 = int_to_ptr.hbm [resolvable:$true] %s97
      %s99 = sshll.u32 [#allocation11], 4
      %s100 = int_to_ptr.vmem [resolvable:$true] %s99
      %105 = dma.hbm_to_vmem [thread:$0]  %s98, 256, %s100, [#allocation10], 64, 64, 4
    $region41: #{tpu_custom_call.1} parent=1 // pred_fallthru
      _
    // Predicated region
    $region42: #{tpu_custom_call.1} parent=1 // pred_check
      _
    $region43: #{tpu_custom_call.1} parent=1 // pred_check_branch
      %107 = sbr.rel (0) target = $region45
    $region44: #{tpu_custom_call.1} parent=1 // pred_region
      %109 = vsyncadd [#allocation13], 0
      %s111 = sshll.u32 %s10, 4
      %s112 = int_to_ptr.hbm [resolvable:$true] %s111
      %s113 = sshll.u32 [#allocation12], 4
      %s114 = int_to_ptr.vmem [resolvable:$true] %s113
      %116 = dma.hbm_to_vmem [thread:$0]  %s112, 16, %s114, [#allocation13]
    $region45: #{tpu_custom_call.1} parent=1 // pred_fallthru
      _
    // Predicated region
    $region46: #{tpu_custom_call.1} parent=1 // pred_check
      _
    $region47: #{tpu_custom_call.1} parent=1 // pred_check_branch
      %118 = sbr.rel (0) target = $region49
    $region48: #{tpu_custom_call.1} parent=1 // pred_region
      %120 = vsyncadd [#allocation13], 0
      %s121 = sshll.u32 %s11, 4
      %s122 = int_to_ptr.hbm [resolvable:$true] %s121
      %s123 = sshll.u32 [#allocation14], 4
      %s124 = int_to_ptr.vmem [resolvable:$true] %s123
      %129 = dma.hbm_to_vmem [thread:$0]  %s122, 256, %s124, [#allocation13], 64, 64, 4
    $region49: #{tpu_custom_call.1} parent=1 // pred_fallthru
      _
    // Predicated region
    $region50: #{tpu_custom_call.1} parent=1 // pred_check
      _
    $region51: #{tpu_custom_call.1} parent=1 // pred_check_branch
      %131 = sbr.rel (0) target = $region53
    $region52: #{tpu_custom_call.1} parent=1 // pred_region
      %133 = vsyncadd [#allocation16], 0
      %s135 = sshll.u32 %s12, 4
      %s136 = int_to_ptr.hbm [resolvable:$true] %s135
      %s137 = sshll.u32 [#allocation15], 4
      %s138 = int_to_ptr.vmem [resolvable:$true] %s137
      %140 = dma.hbm_to_vmem [thread:$0]  %s136, 16, %s138, [#allocation16]
    $region53: #{tpu_custom_call.1} parent=1 // pred_fallthru
      _
    // Predicated region
    $region54: #{tpu_custom_call.1} parent=1 // pred_check
      _
    $region55: #{tpu_custom_call.1} parent=1 // pred_check_branch
      %142 = sbr.rel (0) target = $region57
    $region56: #{tpu_custom_call.1} parent=1 // pred_region
      %144 = vsyncadd [#allocation16], 0
      %s145 = sshll.u32 %s13, 4
      %s146 = int_to_ptr.hbm [resolvable:$true] %s145
      %s147 = sshll.u32 [#allocation17], 4
      %s148 = int_to_ptr.vmem [resolvable:$true] %s147
      %153 = dma.hbm_to_vmem [thread:$0]  %s146, 256, %s148, [#allocation16], 64, 64, 4
    $region57: #{tpu_custom_call.1} parent=1 // pred_fallthru
      _
    // Predicated region
    $region58: #{tpu_custom_call.1} parent=1 // pred_check
      _
    $region59: #{tpu_custom_call.1} parent=1 // pred_check_branch
      %155 = sbr.rel (0) target = $region61
    $region60: #{tpu_custom_call.1} parent=1 // pred_region
      %157 = vsyncadd [#allocation19], 0
      %s159 = sshll.u32 %s14, 4
      %s160 = int_to_ptr.hbm [resolvable:$true] %s159
      %s161 = sshll.u32 [#allocation18], 4
      %s162 = int_to_ptr.vmem [resolvable:$true] %s161
      %164 = dma.hbm_to_vmem [thread:$0]  %s160, 16, %s162, [#allocation19]
    $region61: #{tpu_custom_call.1} parent=1 // pred_fallthru
      _
    // Predicated region
    $region62: #{tpu_custom_call.1} parent=1 // pred_check
      _
    $region63: #{tpu_custom_call.1} parent=1 // pred_check_branch
      %166 = sbr.rel (0) target = $region65
    $region64: #{tpu_custom_call.1} parent=1 // pred_region
      %168 = vsyncadd [#allocation19], 0
      %s170 = sshll.u32 %s15, 4
      %s171 = int_to_ptr.hbm [resolvable:$true] %s170
      %s172 = sshll.u32 [#allocation20], 4
      %s173 = int_to_ptr.vmem [resolvable:$true] %s172
      %175 = dma.hbm_to_vmem [thread:$0]  %s171, 16, %s173, [#allocation19]
    $region65: #{tpu_custom_call.1} parent=1 // pred_fallthru
      _
    // Predicated region
    $region66: #{tpu_custom_call.1} parent=1 // pred_check
      _
    $region67: #{tpu_custom_call.1} parent=1 // pred_check_branch
      %177 = sbr.rel (0) target = $region69
    $region68: #{tpu_custom_call.1} parent=1 // pred_region
      %179 = vsyncadd [#allocation22], 0
      %s181 = sshll.u32 %s16, 4
      %s182 = int_to_ptr.hbm [resolvable:$true] %s181
      %s183 = sshll.u32 [#allocation21], 4
      %s184 = int_to_ptr.vmem [resolvable:$true] %s183
      %186 = dma.hbm_to_vmem [thread:$0]  %s182, 16, %s184, [#allocation22]
    $region69: #{tpu_custom_call.1} parent=1 // pred_fallthru
      _
    // Predicated region
    $region70: #{tpu_custom_call.1} parent=1 // pred_check
      _
    $region71: #{tpu_custom_call.1} parent=1 // pred_check_branch
      %188 = sbr.rel (0) target = $region73
    $region72: #{tpu_custom_call.1} parent=1 // pred_region
      %190 = vsyncadd [#allocation22], 0
      %s191 = sshll.u32 %s17, 4
      %s192 = int_to_ptr.hbm [resolvable:$true] %s191
      %s193 = sshll.u32 [#allocation23], 4
      %s194 = int_to_ptr.vmem [resolvable:$true] %s193
      %199 = dma.hbm_to_vmem [thread:$0]  %s192, 256, %s194, [#allocation22], 64, 64, 4
    $region73: #{tpu_custom_call.1} parent=1 // pred_fallthru
      _
    // Predicated region
    $region74: #{tpu_custom_call.1} parent=1 // pred_check
      _
    $region75: #{tpu_custom_call.1} parent=1 // pred_check_branch
      %201 = sbr.rel (0) target = $region77
    $region76: #{tpu_custom_call.1} parent=1 // pred_region
      %203 = vsyncadd [#allocation25], 0
      %s205 = sshll.u32 %s18, 4
      %s206 = int_to_ptr.hbm [resolvable:$true] %s205
      %s207 = sshll.u32 [#allocation24], 4
      %s208 = int_to_ptr.vmem [resolvable:$true] %s207
      %210 = dma.hbm_to_vmem [thread:$0]  %s206, 16, %s208, [#allocation25]
    $region77: #{tpu_custom_call.1} parent=1 // pred_fallthru
      _
    // Predicated region
    $region78: #{tpu_custom_call.1} parent=1 // pred_check
      _
    $region79: #{tpu_custom_call.1} parent=1 // pred_check_branch
      %212 = sbr.rel (0) target = $region81
    $region80: #{tpu_custom_call.1} parent=1 // pred_region
      _
    $region81: #{tpu_custom_call.1} parent=1 // pred_fallthru
      _
    // Predicated region
    $region82: #{tpu_custom_call.1} parent=1 // pred_check
      _
    $region83: #{tpu_custom_call.1} parent=1 // pred_check_branch
      %214 = sbr.rel (0) target = $region85
    $region84: #{tpu_custom_call.1} parent=1 // pred_region
      _
    $region85: #{tpu_custom_call.1} parent=1 // pred_fallthru
      _
    // Predicated region
    $region86: #{tpu_custom_call.1} parent=1 // pred_check
      _
    $region87: #{tpu_custom_call.1} parent=1 // pred_check_branch
      %216 = sbr.rel (0) target = $region89
    $region88: #{tpu_custom_call.1} parent=1 // pred_region
      _
    $region89: #{tpu_custom_call.1} parent=1 // pred_fallthru
      _
    // Predicated region
    $region90: #{tpu_custom_call.1} parent=1 // pred_check
      _
    $region91: #{tpu_custom_call.1} parent=1 // pred_check_branch
      %218 = sbr.rel (0) target = $region93
    $region92: #{tpu_custom_call.1} parent=1 // pred_region
      _
    $region93: #{tpu_custom_call.1} parent=1 // pred_fallthru
      _
    // Predicated region
    $region94: #{tpu_custom_call.1} parent=1 // pred_check
      _
    $region95: #{tpu_custom_call.1} parent=1 // pred_check_branch
      %220 = sbr.rel (0) target = $region97
    $region96: #{tpu_custom_call.1} parent=1 // pred_region
      %222 = dma.done [#allocation4], 64
    $region97: #{tpu_custom_call.1} parent=1 // pred_fallthru
      _
    // Predicated region
    $region98: #{tpu_custom_call.1} parent=1 // pred_check
      _
    $region99: #{tpu_custom_call.1} parent=1 // pred_check_branch
      %224 = sbr.rel (0) target = $region101
    $region100: #{tpu_custom_call.1} parent=1 // pred_region
      %226 = dma.done [#allocation7], 256
    $region101: #{tpu_custom_call.1} parent=1 // pred_fallthru
      _
    // Predicated region
    $region102: #{tpu_custom_call.1} parent=1 // pred_check
      _
    $region103: #{tpu_custom_call.1} parent=1 // pred_check_branch
      %228 = sbr.rel (0) target = $region105
    $region104: #{tpu_custom_call.1} parent=1 // pred_region
      %230 = dma.done [#allocation7], 16
    $region105: #{tpu_custom_call.1} parent=1 // pred_fallthru
      _
    // Predicated region
    $region106: #{tpu_custom_call.1} parent=1 // pred_check
      _
    $region107: #{tpu_custom_call.1} parent=1 // pred_check_branch
      %232 = sbr.rel (0) target = $region109
    $region108: #{tpu_custom_call.1} parent=1 // pred_region
      %234 = dma.done [#allocation10], 16
    $region109: #{tpu_custom_call.1} parent=1 // pred_fallthru
      _
    // Predicated region
    $region110: #{tpu_custom_call.1} parent=1 // pred_check
      _
    $region111: #{tpu_custom_call.1} parent=1 // pred_check_branch
      %236 = sbr.rel (0) target = $region113
    $region112: #{tpu_custom_call.1} parent=1 // pred_region
      %238 = dma.done [#allocation10], 256
    $region113: #{tpu_custom_call.1} parent=1 // pred_fallthru
      _
    // Predicated region
    $region114: #{tpu_custom_call.1} parent=1 // pred_check
      _
    $region115: #{tpu_custom_call.1} parent=1 // pred_check_branch
      %240 = sbr.rel (0) target = $region117
    $region116: #{tpu_custom_call.1} parent=1 // pred_region
      %242 = dma.done [#allocation13], 16
    $region117: #{tpu_custom_call.1} parent=1 // pred_fallthru
      _
    // Predicated region
    $region118: #{tpu_custom_call.1} parent=1 // pred_check
      _
    $region119: #{tpu_custom_call.1} parent=1 // pred_check_branch
      %244 = sbr.rel (0) target = $region121
    $region120: #{tpu_custom_call.1} parent=1 // pred_region
      %246 = dma.done [#allocation13], 256
    $region121: #{tpu_custom_call.1} parent=1 // pred_fallthru
      _
    // Predicated region
    $region122: #{tpu_custom_call.1} parent=1 // pred_check
      _
    $region123: #{tpu_custom_call.1} parent=1 // pred_check_branch
      %248 = sbr.rel (0) target = $region125
    $region124: #{tpu_custom_call.1} parent=1 // pred_region
      %250 = dma.done [#allocation16], 16
    $region125: #{tpu_custom_call.1} parent=1 // pred_fallthru
      _
    // Predicated region
    $region126: #{tpu_custom_call.1} parent=1 // pred_check
      _
    $region127: #{tpu_custom_call.1} parent=1 // pred_check_branch
      %252 = sbr.rel (0) target = $region129
    $region128: #{tpu_custom_call.1} parent=1 // pred_region
      %254 = dma.done [#allocation16], 256
    $region129: #{tpu_custom_call.1} parent=1 // pred_fallthru
      _
    // Predicated region
    $region130: #{tpu_custom_call.1} parent=1 // pred_check
      _
    $region131: #{tpu_custom_call.1} parent=1 // pred_check_branch
      %256 = sbr.rel (0) target = $region133
    $region132: #{tpu_custom_call.1} parent=1 // pred_region
      %258 = dma.done [#allocation19], 16
    $region133: #{tpu_custom_call.1} parent=1 // pred_fallthru
      _
    // Predicated region
    $region134: #{tpu_custom_call.1} parent=1 // pred_check
      _
    $region135: #{tpu_custom_call.1} parent=1 // pred_check_branch
      %260 = sbr.rel (0) target = $region137
    $region136: #{tpu_custom_call.1} parent=1 // pred_region
      %262 = dma.done [#allocation19], 16
    $region137: #{tpu_custom_call.1} parent=1 // pred_fallthru
      _
    // Predicated region
    $region138: #{tpu_custom_call.1} parent=1 // pred_check
      _
    $region139: #{tpu_custom_call.1} parent=1 // pred_check_branch
      %264 = sbr.rel (0) target = $region141
    $region140: #{tpu_custom_call.1} parent=1 // pred_region
      %266 = dma.done [#allocation22], 16
    $region141: #{tpu_custom_call.1} parent=1 // pred_fallthru
      _
    // Predicated region
    $region142: #{tpu_custom_call.1} parent=1 // pred_check
      _
    $region143: #{tpu_custom_call.1} parent=1 // pred_check_branch
      %268 = sbr.rel (0) target = $region145
    $region144: #{tpu_custom_call.1} parent=1 // pred_region
      %270 = dma.done [#allocation22], 256
    $region145: #{tpu_custom_call.1} parent=1 // pred_fallthru
      _
    // Predicated region
    $region146: #{tpu_custom_call.1} parent=1 // pred_check
      _
    $region147: #{tpu_custom_call.1} parent=1 // pred_check_branch
      %272 = sbr.rel (0) target = $region149
    $region148: #{tpu_custom_call.1} parent=1 // pred_region
      %274 = dma.done [#allocation25], 16
    $region149: #{tpu_custom_call.1} parent=1 // pred_fallthru
      _
    %v276 = vld [vmem:[#allocation3] sm:$0xf]
    %v277 = vunpack.c.l.bf16 %v276
    %v278 = vld [vmem:[%s0] sm:$0xff]
    %v279 = vld [vmem:[%s1] sm:$0xff]
    %v280 = vld [vmem:[#allocation8] sm:$0x1]
    %v281 = vld [vmem:[#allocation9] sm:$0x1]
    %vm282 = vcmask 261120
    %v283 = vsel %vm282, %v278, 0.0
    %284 = vadd.xlane.f32.xlu0 %v283
    %v285 = vpop.xlane.xlu0 %284
    %v286 = vmul.f32 %v285, 0.03125
    %v287 = vsub.f32 %v278, %v286
    %v288 = vmul.f32 %v287, %v287
    %v289 = vsel %vm282, %v288, 0.0
    %290 = vadd.xlane.f32.xlu0 %v289
    %v291 = vpop.xlane.xlu0 %290
    %v292 = vmul.f32 %v291, 0.032258064
    %v293 = vrsqrt.pop %v292
    %v294 = vmul.f32 %v293, %v292
    %v295 = vmul.f32 %v294, %v293
    %v296 = vmul.f32 0.5, %v295
    %v297 = vsub.f32 1.5, %v296
    %v298 = vmul.f32 %v293, %v297
    %v299 = vmul.f32 %v292, %v298
    %vm300 = vcmp.eq.f32.partialorder %v292, inf
    %v301 = vsel %vm300, %v292, %v299
    %vm302 = vcmp.eq.f32.partialorder %v292, 0.0
    %v303 = vand.u32 %v292, 2147483648
    %v304 = vsel %vm302, %v303, %v301
    %v305 = vadd.f32 %v304, 1e-06
    %v306 = vrcp.pop %v305
    %v307 = vmul.f32 %v305, %v306
    %v308 = vsub.f32 1.0, %v307
    %v309 = vmul.f32 %v306, %v308
    %v310 = vadd.f32 %v306, %v309
    %vm311 = vweird.f32 %v305
    %vm312 = vweird.f32 %v306
    %vm313 = vmor %vm311, %vm312
    %v314 = vsel %vm313, %v306, %v310
    %v315 = vand.u32 2147483647, %v305
    %vm316 = vcmp.eq.f32.partialorder %v315, 8.507059e+37
    %v317 = vand.u32 %v305, 2147483648
    %v318 = vor.u32 1.1754944e-38, %v317
    %v319 = vsel %vm316, %v318, %v314
    %v320 = vmul.f32 1.0, %v319
    %v321 = vmul.f32 %v287, %v320
    %v323 = vperm.slane %v280, 0
    %v325 = vmul.f32 %v323, %v321
    %v327 = vperm.slane %v281, 0
    %v329 = vadd.f32 %v325, %v327
    %v330 = vpack.c.bf16 %v329, %v329
    %v331 = vld [vmem:[%s3] sm:$0xf]
    %v332 = vld [vmem:[%s3 + $0x4] sm:$0xf]
    %v333 = vld [vmem:[%s3 + $0x8] sm:$0xf]
    %v334 = vld [vmem:[%s3 + $0xc] sm:$0xf]
    %v335 = vld [vmem:[%s4] sm:$0x1]
    %v337 = vperm.slane %v335, 0
    %v343 = vunpack.c.l.b16 %v331
    %v344 = vunpack.c.l.b16 %v332
    %v345 = vunpack.c.l.b16 %v333
    %v346 = vunpack.c.l.b16 %v334
    %v347 = vpack.c.b16 %v344, %v343
    %v348 = vpack.c.b16 %v346, %v345
    %v352 = vsel %vm282, %v330, 0
    %354 = vmatpush.bf16.msra.mxu0 0
    %355 = vmatpush.bf16.msra.mxu0 0
    %356 = vmatpush.bf16.msra.mxu0 0
    %357 = vmatpush.bf16.msra.mxu0 0
    %358 = vmatpush.bf16.msra.mxu0 0
    %359 = vmatpush.bf16.msra.mxu0 0
    %360 = vmatpush.bf16.msra.mxu0 %v348
    %361 = vmatpush.bf16.msra.mxu0 %v347
    %362 = vmatmul.bf16.gmra.mxu0 %v352
    %v363 = vpop.f32.mrf.mxu0
    %v364 = vadd.f32 %v337, %v363
    %v365 = vpop.f32.mrf.mxu0
    %366 = vdwg.mxu0
    %v367 = vpack.c.bf16 %v364, %v364
    %v369 = vunpack.c.l.b16 %v367
    %v370 = vpack.c.b16 %v369, %v369
    %371 = vrot.lane.b32.xlu0 %v370, 96
    %v372 = vpop.permute.xlu0 %371
    %vm373 = vcmask 64512
    %v375 = vsel %vm373, %v367, 0
    %v378 = vsel %vm373, %v372, 0
    %380 = vmatpush.bf16.xpose.msra.mxu0 0
    %381 = vmatpush.bf16.xpose.msra.mxu0 0
    %382 = vmatpush.bf16.xpose.msra.mxu0 0
    %383 = vmatpush.bf16.xpose.msra.mxu0 0
    %384 = vmatpush.bf16.xpose.msra.mxu0 0
    %385 = vmatpush.bf16.xpose.msra.mxu0 0
    %386 = vmatpush.bf16.xpose.msra.mxu0 0
    %387 = vmatpush.bf16.xpose.msra.mxu0 %v378
    %388 = vmatmul.bf16.gmra.mxu0 %v375
    %v389 = vpop.f32.mrf.mxu0
    %v390 = vadd.f32 %v277, %v389
    %v391 = vpop.f32.mrf.mxu0
    %392 = vdwg.mxu0
    %v393 = vsel %vm373, %v390, -inf
    %394 = vmax.xlane.f32.xlu0 %v393
    %v395 = vpop.xlane.xlu0 %394
    %v396 = vsub.f32 %v390, %v395
    %v397 = vmul.f32 %v396, 1.442695
    %v398 = vpow.pop %v397
    %v399 = vsel %vm373, %v398, 0.0
    %400 = vadd.xlane.f32.xlu0 %v399
    %v401 = vpop.xlane.xlu0 %400
    %v402 = vrcp.pop %v401
    %v403 = vmul.f32 %v398, %v402
    %v404 = vpack.c.bf16 %v403, %v403
    %405 = vrot.lane.b32.xlu0 %v370, 64
    %v406 = vpop.permute.xlu0 %405
    %v408 = vsel %vm373, %v404, 0
    %vm410 = vcmask 1043456
    %v412 = vsel %vm410, %v406, 0
    %414 = vmatpush.bf16.msra.mxu0 0
    %415 = vmatpush.bf16.msra.mxu0 0
    %416 = vmatpush.bf16.msra.mxu0 0
    %417 = vmatpush.bf16.msra.mxu0 0
    %418 = vmatpush.bf16.msra.mxu0 0
    %419 = vmatpush.bf16.msra.mxu0 0
    %420 = vmatpush.bf16.msra.mxu0 0
    %421 = vmatpush.bf16.msra.mxu0 %v412
    %422 = vmatmul.bf16.gmra.mxu0 %v408
    %v423 = vpop.f32.mrf.mxu0
    %v424 = vadd.f32 0.0, %v423
    %v425 = vpop.f32.mrf.mxu0
    %426 = vdwg.mxu0
    %427 = vst.msk [vmem:[#allocation2] sm:$0xff] %vm373, %v424
    %428 = vrot.lane.b32.xlu0 %v370, 120
    %v429 = vpop.permute.xlu0 %428
    %430 = vrot.lane.b32.xlu0 %v370, 88
    %v431 = vpop.permute.xlu0 %430
    %v433 = vsel %vm373, %v429, 0
    %v436 = vsel %vm373, %v431, 0
    %438 = vmatpush.bf16.xpose.msra.mxu0 0
    %439 = vmatpush.bf16.xpose.msra.mxu0 0
    %440 = vmatpush.bf16.xpose.msra.mxu0 0
    %441 = vmatpush.bf16.xpose.msra.mxu0 0
    %442 = vmatpush.bf16.xpose.msra.mxu0 0
    %443 = vmatpush.bf16.xpose.msra.mxu0 0
    %444 = vmatpush.bf16.xpose.msra.mxu0 0
    %445 = vmatpush.bf16.xpose.msra.mxu0 %v436
    %446 = vmatmul.bf16.gmra.mxu0 %v433
    %v447 = vpop.f32.mrf.mxu0
    %v448 = vadd.f32 %v277, %v447
    %v449 = vpop.f32.mrf.mxu0
    %450 = vdwg.mxu0
    %v451 = vsel %vm373, %v448, -inf
    %452 = vmax.xlane.f32.xlu0 %v451
    %v453 = vpop.xlane.xlu0 %452
    %v454 = vsub.f32 %v448, %v453
    %v455 = vmul.f32 %v454, 1.442695
    %v456 = vpow.pop %v455
    %v457 = vsel %vm373, %v456, 0.0
    %458 = vadd.xlane.f32.xlu0 %v457
    %v459 = vpop.xlane.xlu0 %458
    %v460 = vrcp.pop %v459
    %v461 = vmul.f32 %v456, %v460
    %v462 = vpack.c.bf16 %v461, %v461
    %463 = vrot.lane.b32.xlu0 %v370, 56
    %v464 = vpop.permute.xlu0 %463
    %v466 = vsel %vm373, %v462, 0
    %v469 = vsel %vm410, %v464, 0
    %471 = vmatpush.bf16.msra.mxu0 0
    %472 = vmatpush.bf16.msra.mxu0 0
    %473 = vmatpush.bf16.msra.mxu0 0
    %474 = vmatpush.bf16.msra.mxu0 0
    %475 = vmatpush.bf16.msra.mxu0 0
    %476 = vmatpush.bf16.msra.mxu0 0
    %477 = vmatpush.bf16.msra.mxu0 0
    %478 = vmatpush.bf16.msra.mxu0 %v469
    %479 = vmatmul.bf16.gmra.mxu0 %v466
    %v480 = vpop.f32.mrf.mxu0
    %v481 = vadd.f32 0.0, %v480
    %v482 = vpop.f32.mrf.mxu0
    %483 = vdwg.mxu0
    %485 = vrot.lane.b32.xlu0 %v481, 8
    %v486 = vpop.permute.xlu0 %485
    %vm488 = vcmask 130112
    %489 = vst.msk [vmem:[#allocation2] sm:$0xff] %vm488, %v486
    %490 = vrot.lane.b32.xlu0 %v370, 112
    %v491 = vpop.permute.xlu0 %490
    %492 = vrot.lane.b32.xlu0 %v370, 80
    %v493 = vpop.permute.xlu0 %492
    %v495 = vsel %vm373, %v491, 0
    %v498 = vsel %vm373, %v493, 0
    %500 = vmatpush.bf16.xpose.msra.mxu0 0
    %501 = vmatpush.bf16.xpose.msra.mxu0 0
    %502 = vmatpush.bf16.xpose.msra.mxu0 0
    %503 = vmatpush.bf16.xpose.msra.mxu0 0
    %504 = vmatpush.bf16.xpose.msra.mxu0 0
    %505 = vmatpush.bf16.xpose.msra.mxu0 0
    %506 = vmatpush.bf16.xpose.msra.mxu0 0
    %507 = vmatpush.bf16.xpose.msra.mxu0 %v498
    %508 = vmatmul.bf16.gmra.mxu0 %v495
    %v509 = vpop.f32.mrf.mxu0
    %v510 = vadd.f32 %v277, %v509
    %v511 = vpop.f32.mrf.mxu0
    %512 = vdwg.mxu0
    %v513 = vsel %vm373, %v510, -inf
    %514 = vmax.xlane.f32.xlu0 %v513
    %v515 = vpop.xlane.xlu0 %514
    %v516 = vsub.f32 %v510, %v515
    %v517 = vmul.f32 %v516, 1.442695
    %v518 = vpow.pop %v517
    %v519 = vsel %vm373, %v518, 0.0
    %520 = vadd.xlane.f32.xlu0 %v519
    %v521 = vpop.xlane.xlu0 %520
    %v522 = vrcp.pop %v521
    %v523 = vmul.f32 %v518, %v522
    %v524 = vpack.c.bf16 %v523, %v523
    %525 = vrot.lane.b32.xlu0 %v370, 48
    %v526 = vpop.permute.xlu0 %525
    %v528 = vsel %vm373, %v524, 0
    %v531 = vsel %vm410, %v526, 0
    %533 = vmatpush.bf16.msra.mxu0 0
    %534 = vmatpush.bf16.msra.mxu0 0
    %535 = vmatpush.bf16.msra.mxu0 0
    %536 = vmatpush.bf16.msra.mxu0 0
    %537 = vmatpush.bf16.msra.mxu0 0
    %538 = vmatpush.bf16.msra.mxu0 0
    %539 = vmatpush.bf16.msra.mxu0 0
    %540 = vmatpush.bf16.msra.mxu0 %v531
    %541 = vmatmul.bf16.gmra.mxu0 %v528
    %v542 = vpop.f32.mrf.mxu0
    %v543 = vadd.f32 0.0, %v542
    %v544 = vpop.f32.mrf.mxu0
    %545 = vdwg.mxu0
    %547 = vrot.lane.b32.xlu0 %v543, 16
    %v548 = vpop.permute.xlu0 %547
    %vm550 = vcmask 195712
    %551 = vst.msk [vmem:[#allocation2] sm:$0xff] %vm550, %v548
    %552 = vrot.lane.b32.xlu0 %v370, 104
    %v553 = vpop.permute.xlu0 %552
    %554 = vrot.lane.b32.xlu0 %v370, 72
    %v555 = vpop.permute.xlu0 %554
    %v557 = vsel %vm373, %v553, 0
    %v560 = vsel %vm373, %v555, 0
    %562 = vmatpush.bf16.xpose.msra.mxu0 0
    %563 = vmatpush.bf16.xpose.msra.mxu0 0
    %564 = vmatpush.bf16.xpose.msra.mxu0 0
    %565 = vmatpush.bf16.xpose.msra.mxu0 0
    %566 = vmatpush.bf16.xpose.msra.mxu0 0
    %567 = vmatpush.bf16.xpose.msra.mxu0 0
    %568 = vmatpush.bf16.xpose.msra.mxu0 0
    %569 = vmatpush.bf16.xpose.msra.mxu0 %v560
    %570 = vmatmul.bf16.gmra.mxu0 %v557
    %v571 = vpop.f32.mrf.mxu0
    %v572 = vadd.f32 %v277, %v571
    %v573 = vpop.f32.mrf.mxu0
    %574 = vdwg.mxu0
    %v575 = vsel %vm373, %v572, -inf
    %576 = vmax.xlane.f32.xlu0 %v575
    %v577 = vpop.xlane.xlu0 %576
    %v578 = vsub.f32 %v572, %v577
    %v579 = vmul.f32 %v578, 1.442695
    %v580 = vpow.pop %v579
    %v581 = vsel %vm373, %v580, 0.0
    %582 = vadd.xlane.f32.xlu0 %v581
    %v583 = vpop.xlane.xlu0 %582
    %v584 = vrcp.pop %v583
    %v585 = vmul.f32 %v580, %v584
    %v586 = vpack.c.bf16 %v585, %v585
    %587 = vrot.lane.b32.xlu0 %v370, 40
    %v588 = vpop.permute.xlu0 %587
    %v590 = vsel %vm373, %v586, 0
    %v593 = vsel %vm410, %v588, 0
    %595 = vmatpush.bf16.msra.mxu0 0
    %596 = vmatpush.bf16.msra.mxu0 0
    %597 = vmatpush.bf16.msra.mxu0 0
    %598 = vmatpush.bf16.msra.mxu0 0
    %599 = vmatpush.bf16.msra.mxu0 0
    %600 = vmatpush.bf16.msra.mxu0 0
    %601 = vmatpush.bf16.msra.mxu0 0
    %602 = vmatpush.bf16.msra.mxu0 %v593
    %603 = vmatmul.bf16.gmra.mxu0 %v590
    %v604 = vpop.f32.mrf.mxu0
    %v605 = vadd.f32 0.0, %v604
    %v606 = vpop.f32.mrf.mxu0
    %607 = vdwg.mxu0
    %609 = vrot.lane.b32.xlu0 %v605, 24
    %v610 = vpop.permute.xlu0 %609
    %vm612 = vcmask 261312
    %613 = vst.msk [vmem:[#allocation2] sm:$0xff] %vm612, %v610
    %v614 = vld [vmem:[#allocation2] sm:$0xff]
    %v615 = vpack.c.bf16 %v614, %v614
    %v616 = vld [vmem:[#allocation6] sm:$0xf]
    %v617 = vld [vmem:[#allocation6 + $0x4] sm:$0xf]
    %v618 = vld [vmem:[#allocation6 + $0x8] sm:$0xf]
    %v619 = vld [vmem:[#allocation6 + $0xc] sm:$0xf]
    %v620 = vld [vmem:[%s6] sm:$0x1]
    %v622 = vperm.slane %v620, 0
    %v628 = vunpack.c.l.b16 %v616
    %v629 = vunpack.c.l.b16 %v617
    %v630 = vunpack.c.l.b16 %v618
    %v631 = vunpack.c.l.b16 %v619
    %v632 = vpack.c.b16 %v629, %v628
    %v633 = vpack.c.b16 %v631, %v630
    %v637 = vsel %vm282, %v615, 0
    %639 = vmatpush.bf16.msra.mxu0 0
    %640 = vmatpush.bf16.msra.mxu0 0
    %641 = vmatpush.bf16.msra.mxu0 0
    %642 = vmatpush.bf16.msra.mxu0 0
    %643 = vmatpush.bf16.msra.mxu0 0
    %644 = vmatpush.bf16.msra.mxu0 0
    %645 = vmatpush.bf16.msra.mxu0 %v633
    %646 = vmatpush.bf16.msra.mxu0 %v632
    %647 = vmatmul.bf16.gmra.mxu0 %v637
    %v648 = vpop.f32.mrf.mxu0
    %v649 = vadd.f32 %v622, %v648
    %v650 = vpop.f32.mrf.mxu0
    %651 = vdwg.mxu0
    %v652 = vadd.f32 %v278, %v649
    %v653 = vld [vmem:[#allocation20] sm:$0x1]
    %v654 = vld [vmem:[#allocation21] sm:$0x1]
    %v655 = vsel %vm282, %v652, 0.0
    %656 = vadd.xlane.f32.xlu0 %v655
    %v657 = vpop.xlane.xlu0 %656
    %v658 = vmul.f32 %v657, 0.03125
    %v659 = vsub.f32 %v652, %v658
    %v660 = vmul.f32 %v659, %v659
    %v661 = vsel %vm282, %v660, 0.0
    %662 = vadd.xlane.f32.xlu0 %v661
    %v663 = vpop.xlane.xlu0 %662
    %v664 = vmul.f32 %v663, 0.032258064
    %v665 = vrsqrt.pop %v664
    %v666 = vmul.f32 %v665, %v664
    %v667 = vmul.f32 %v666, %v665
    %v668 = vmul.f32 0.5, %v667
    %v669 = vsub.f32 1.5, %v668
    %v670 = vmul.f32 %v665, %v669
    %v671 = vmul.f32 %v664, %v670
    %vm672 = vcmp.eq.f32.partialorder %v664, inf
    %v673 = vsel %vm672, %v664, %v671
    %vm674 = vcmp.eq.f32.partialorder %v664, 0.0
    %v675 = vand.u32 %v664, 2147483648
    %v676 = vsel %vm674, %v675, %v673
    %v677 = vadd.f32 %v676, 1e-06
    %v678 = vrcp.pop %v677
    %v679 = vmul.f32 %v677, %v678
    %v680 = vsub.f32 1.0, %v679
    %v681 = vmul.f32 %v678, %v680
    %v682 = vadd.f32 %v678, %v681
    %vm683 = vweird.f32 %v677
    %vm684 = vweird.f32 %v678
    %vm685 = vmor %vm683, %vm684
    %v686 = vsel %vm685, %v678, %v682
    %v687 = vand.u32 2147483647, %v677
    %vm688 = vcmp.eq.f32.partialorder %v687, 8.507059e+37
    %v689 = vand.u32 %v677, 2147483648
    %v690 = vor.u32 1.1754944e-38, %v689
    %v691 = vsel %vm688, %v690, %v686
    %v692 = vmul.f32 1.0, %v691
    %v693 = vmul.f32 %v659, %v692
    %v695 = vperm.slane %v653, 0
    %v697 = vmul.f32 %v695, %v693
    %v699 = vperm.slane %v654, 0
    %v701 = vadd.f32 %v697, %v699
    %v702 = vpack.c.bf16 %v701, %v701
    %v703 = vld [vmem:[#allocation11] sm:$0xf]
    %v704 = vld [vmem:[#allocation11 + $0x4] sm:$0xf]
    %v705 = vld [vmem:[#allocation11 + $0x8] sm:$0xf]
    %v706 = vld [vmem:[#allocation11 + $0xc] sm:$0xf]
    %v707 = vld [vmem:[#allocation12] sm:$0x1]
    %v709 = vperm.slane %v707, 0
    %v715 = vunpack.c.l.b16 %v703
    %v716 = vunpack.c.l.b16 %v704
    %v717 = vunpack.c.l.b16 %v705
    %v718 = vunpack.c.l.b16 %v706
    %v719 = vpack.c.b16 %v716, %v715
    %v720 = vpack.c.b16 %v718, %v717
    %v724 = vsel %vm282, %v702, 0
    %726 = vmatpush.bf16.msra.mxu0 0
    %727 = vmatpush.bf16.msra.mxu0 0
    %728 = vmatpush.bf16.msra.mxu0 0
    %729 = vmatpush.bf16.msra.mxu0 0
    %730 = vmatpush.bf16.msra.mxu0 0
    %731 = vmatpush.bf16.msra.mxu0 0
    %732 = vmatpush.bf16.msra.mxu0 %v720
    %733 = vmatpush.bf16.msra.mxu0 %v719
    %734 = vmatmul.bf16.gmra.mxu0 %v724
    %v735 = vpop.f32.mrf.mxu0
    %v736 = vadd.f32 %v709, %v735
    %v737 = vpop.f32.mrf.mxu0
    %738 = vdwg.mxu0
    %v739 = vpack.c.bf16 %v279, %v279
    %v740 = vld [vmem:[#allocation14] sm:$0xf]
    %v741 = vld [vmem:[#allocation14 + $0x4] sm:$0xf]
    %v742 = vld [vmem:[#allocation14 + $0x8] sm:$0xf]
    %v743 = vld [vmem:[#allocation14 + $0xc] sm:$0xf]
    %v744 = vld [vmem:[#allocation15] sm:$0x1]
    %v746 = vperm.slane %v744, 0
    %v752 = vunpack.c.l.b16 %v740
    %v753 = vunpack.c.l.b16 %v741
    %v754 = vunpack.c.l.b16 %v742
    %v755 = vunpack.c.l.b16 %v743
    %v756 = vpack.c.b16 %v753, %v752
    %v757 = vpack.c.b16 %v755, %v754
    %v761 = vsel %vm282, %v739, 0
    %763 = vmatpush.bf16.msra.mxu0 0
    %764 = vmatpush.bf16.msra.mxu0 0
    %765 = vmatpush.bf16.msra.mxu0 0
    %766 = vmatpush.bf16.msra.mxu0 0
    %767 = vmatpush.bf16.msra.mxu0 0
    %768 = vmatpush.bf16.msra.mxu0 0
    %769 = vmatpush.bf16.msra.mxu0 %v757
    %770 = vmatpush.bf16.msra.mxu0 %v756
    %771 = vmatmul.bf16.gmra.mxu0 %v761
    %v772 = vpop.f32.mrf.mxu0
    %v773 = vadd.f32 %v746, %v772
    %v774 = vpop.f32.mrf.mxu0
    %775 = vdwg.mxu0
    %v776 = vpack.c.bf16 %v736, %v736
    %v777 = vpack.c.bf16 %v773, %v773
    %v779 = vsel %vm373, %v776, 0
    %v782 = vsel %vm373, %v777, 0
    %784 = vmatpush.bf16.xpose.msra.mxu0 0
    %785 = vmatpush.bf16.xpose.msra.mxu0 0
    %786 = vmatpush.bf16.xpose.msra.mxu0 0
    %787 = vmatpush.bf16.xpose.msra.mxu0 0
    %788 = vmatpush.bf16.xpose.msra.mxu0 0
    %789 = vmatpush.bf16.xpose.msra.mxu0 0
    %790 = vmatpush.bf16.xpose.msra.mxu0 0
    %791 = vmatpush.bf16.xpose.msra.mxu0 %v782
    %792 = vmatmul.bf16.gmra.mxu0 %v779
    %v793 = vpop.f32.mrf.mxu0
    %v794 = vadd.f32 0.0, %v793
    %v795 = vpop.f32.mrf.mxu0
    %796 = vdwg.mxu0
    %v797 = vsel %vm373, %v794, -inf
    %798 = vmax.xlane.f32.xlu0 %v797
    %v799 = vpop.xlane.xlu0 %798
    %v800 = vsub.f32 %v794, %v799
    %v801 = vmul.f32 %v800, 1.442695
    %v802 = vpow.pop %v801
    %v803 = vsel %vm373, %v802, 0.0
    %804 = vadd.xlane.f32.xlu0 %v803
    %v805 = vpop.xlane.xlu0 %804
    %v806 = vrcp.pop %v805
    %v807 = vmul.f32 %v802, %v806
    %v808 = vpack.c.bf16 %v807, %v807
    %v810 = vunpack.c.l.b16 %v777
    %v811 = vpack.c.b16 %v810, %v810
    %812 = vrot.lane.b32.xlu0 %v811, 96
    %v813 = vpop.permute.xlu0 %812
    %v815 = vsel %vm373, %v808, 0
    %v818 = vsel %vm410, %v813, 0
    %820 = vmatpush.bf16.msra.mxu0 0
    %821 = vmatpush.bf16.msra.mxu0 0
    %822 = vmatpush.bf16.msra.mxu0 0
    %823 = vmatpush.bf16.msra.mxu0 0
    %824 = vmatpush.bf16.msra.mxu0 0
    %825 = vmatpush.bf16.msra.mxu0 0
    %826 = vmatpush.bf16.msra.mxu0 0
    %827 = vmatpush.bf16.msra.mxu0 %v818
    %828 = vmatmul.bf16.gmra.mxu0 %v815
    %v829 = vpop.f32.mrf.mxu0
    %v830 = vadd.f32 0.0, %v829
    %v831 = vpop.f32.mrf.mxu0
    %832 = vdwg.mxu0
    %833 = vst.msk [vmem:[#allocation2] sm:$0xff] %vm373, %v830
    %v835 = vunpack.c.l.b16 %v776
    %v836 = vpack.c.b16 %v835, %v835
    %837 = vrot.lane.b32.xlu0 %v836, 120
    %v838 = vpop.permute.xlu0 %837
    %839 = vrot.lane.b32.xlu0 %v811, 120
    %v840 = vpop.permute.xlu0 %839
    %v842 = vsel %vm373, %v838, 0
    %v845 = vsel %vm373, %v840, 0
    %847 = vmatpush.bf16.xpose.msra.mxu0 0
    %848 = vmatpush.bf16.xpose.msra.mxu0 0
    %849 = vmatpush.bf16.xpose.msra.mxu0 0
    %850 = vmatpush.bf16.xpose.msra.mxu0 0
    %851 = vmatpush.bf16.xpose.msra.mxu0 0
    %852 = vmatpush.bf16.xpose.msra.mxu0 0
    %853 = vmatpush.bf16.xpose.msra.mxu0 0
    %854 = vmatpush.bf16.xpose.msra.mxu0 %v845
    %855 = vmatmul.bf16.gmra.mxu0 %v842
    %v856 = vpop.f32.mrf.mxu0
    %v857 = vadd.f32 0.0, %v856
    %v858 = vpop.f32.mrf.mxu0
    %859 = vdwg.mxu0
    %v860 = vsel %vm373, %v857, -inf
    %861 = vmax.xlane.f32.xlu0 %v860
    %v862 = vpop.xlane.xlu0 %861
    %v863 = vsub.f32 %v857, %v862
    %v864 = vmul.f32 %v863, 1.442695
    %v865 = vpow.pop %v864
    %v866 = vsel %vm373, %v865, 0.0
    %867 = vadd.xlane.f32.xlu0 %v866
    %v868 = vpop.xlane.xlu0 %867
    %v869 = vrcp.pop %v868
    %v870 = vmul.f32 %v865, %v869
    %v871 = vpack.c.bf16 %v870, %v870
    %872 = vrot.lane.b32.xlu0 %v811, 88
    %v873 = vpop.permute.xlu0 %872
    %v875 = vsel %vm373, %v871, 0
    %v878 = vsel %vm410, %v873, 0
    %880 = vmatpush.bf16.msra.mxu0 0
    %881 = vmatpush.bf16.msra.mxu0 0
    %882 = vmatpush.bf16.msra.mxu0 0
    %883 = vmatpush.bf16.msra.mxu0 0
    %884 = vmatpush.bf16.msra.mxu0 0
    %885 = vmatpush.bf16.msra.mxu0 0
    %886 = vmatpush.bf16.msra.mxu0 0
    %887 = vmatpush.bf16.msra.mxu0 %v878
    %888 = vmatmul.bf16.gmra.mxu0 %v875
    %v889 = vpop.f32.mrf.mxu0
    %v890 = vadd.f32 0.0, %v889
    %v891 = vpop.f32.mrf.mxu0
    %892 = vdwg.mxu0
    %894 = vrot.lane.b32.xlu0 %v890, 8
    %v895 = vpop.permute.xlu0 %894
    %897 = vst.msk [vmem:[#allocation2] sm:$0xff] %vm488, %v895
    %898 = vrot.lane.b32.xlu0 %v836, 112
    %v899 = vpop.permute.xlu0 %898
    %900 = vrot.lane.b32.xlu0 %v811, 112
    %v901 = vpop.permute.xlu0 %900
    %v903 = vsel %vm373, %v899, 0
    %v906 = vsel %vm373, %v901, 0
    %908 = vmatpush.bf16.xpose.msra.mxu0 0
    %909 = vmatpush.bf16.xpose.msra.mxu0 0
    %910 = vmatpush.bf16.xpose.msra.mxu0 0
    %911 = vmatpush.bf16.xpose.msra.mxu0 0
    %912 = vmatpush.bf16.xpose.msra.mxu0 0
    %913 = vmatpush.bf16.xpose.msra.mxu0 0
    %914 = vmatpush.bf16.xpose.msra.mxu0 0
    %915 = vmatpush.bf16.xpose.msra.mxu0 %v906
    %916 = vmatmul.bf16.gmra.mxu0 %v903
    %v917 = vpop.f32.mrf.mxu0
    %v918 = vadd.f32 0.0, %v917
    %v919 = vpop.f32.mrf.mxu0
    %920 = vdwg.mxu0
    %v921 = vsel %vm373, %v918, -inf
    %922 = vmax.xlane.f32.xlu0 %v921
    %v923 = vpop.xlane.xlu0 %922
    %v924 = vsub.f32 %v918, %v923
    %v925 = vmul.f32 %v924, 1.442695
    %v926 = vpow.pop %v925
    %v927 = vsel %vm373, %v926, 0.0
    %928 = vadd.xlane.f32.xlu0 %v927
    %v929 = vpop.xlane.xlu0 %928
    %v930 = vrcp.pop %v929
    %v931 = vmul.f32 %v926, %v930
    %v932 = vpack.c.bf16 %v931, %v931
    %933 = vrot.lane.b32.xlu0 %v811, 80
    %v934 = vpop.permute.xlu0 %933
    %v936 = vsel %vm373, %v932, 0
    %v939 = vsel %vm410, %v934, 0
    %941 = vmatpush.bf16.msra.mxu0 0
    %942 = vmatpush.bf16.msra.mxu0 0
    %943 = vmatpush.bf16.msra.mxu0 0
    %944 = vmatpush.bf16.msra.mxu0 0
    %945 = vmatpush.bf16.msra.mxu0 0
    %946 = vmatpush.bf16.msra.mxu0 0
    %947 = vmatpush.bf16.msra.mxu0 0
    %948 = vmatpush.bf16.msra.mxu0 %v939
    %949 = vmatmul.bf16.gmra.mxu0 %v936
    %v950 = vpop.f32.mrf.mxu0
    %v951 = vadd.f32 0.0, %v950
    %v952 = vpop.f32.mrf.mxu0
    %953 = vdwg.mxu0
    %955 = vrot.lane.b32.xlu0 %v951, 16
    %v956 = vpop.permute.xlu0 %955
    %958 = vst.msk [vmem:[#allocation2] sm:$0xff] %vm550, %v956
    %959 = vrot.lane.b32.xlu0 %v836, 104
    %v960 = vpop.permute.xlu0 %959
    %961 = vrot.lane.b32.xlu0 %v811, 104
    %v962 = vpop.permute.xlu0 %961
    %v964 = vsel %vm373, %v960, 0
    %v967 = vsel %vm373, %v962, 0
    %969 = vmatpush.bf16.xpose.msra.mxu0 0
    %970 = vmatpush.bf16.xpose.msra.mxu0 0
    %971 = vmatpush.bf16.xpose.msra.mxu0 0
    %972 = vmatpush.bf16.xpose.msra.mxu0 0
    %973 = vmatpush.bf16.xpose.msra.mxu0 0
    %974 = vmatpush.bf16.xpose.msra.mxu0 0
    %975 = vmatpush.bf16.xpose.msra.mxu0 0
    %976 = vmatpush.bf16.xpose.msra.mxu0 %v967
    %977 = vmatmul.bf16.gmra.mxu0 %v964
    %v978 = vpop.f32.mrf.mxu0
    %v979 = vadd.f32 0.0, %v978
    %v980 = vpop.f32.mrf.mxu0
    %981 = vdwg.mxu0
    %v982 = vsel %vm373, %v979, -inf
    %983 = vmax.xlane.f32.xlu0 %v982
    %v984 = vpop.xlane.xlu0 %983
    %v985 = vsub.f32 %v979, %v984
    %v986 = vmul.f32 %v985, 1.442695
    %v987 = vpow.pop %v986
    %v988 = vsel %vm373, %v987, 0.0
    %989 = vadd.xlane.f32.xlu0 %v988
    %v990 = vpop.xlane.xlu0 %989
    %v991 = vrcp.pop %v990
    %v992 = vmul.f32 %v987, %v991
    %v993 = vpack.c.bf16 %v992, %v992
    %994 = vrot.lane.b32.xlu0 %v811, 72
    %v995 = vpop.permute.xlu0 %994
    %v997 = vsel %vm373, %v993, 0
    %v1000 = vsel %vm410, %v995, 0
    %1002 = vmatpush.bf16.msra.mxu0 0
    %1003 = vmatpush.bf16.msra.mxu0 0
    %1004 = vmatpush.bf16.msra.mxu0 0
    %1005 = vmatpush.bf16.msra.mxu0 0
    %1006 = vmatpush.bf16.msra.mxu0 0
    %1007 = vmatpush.bf16.msra.mxu0 0
    %1008 = vmatpush.bf16.msra.mxu0 0
    %1009 = vmatpush.bf16.msra.mxu0 %v1000
    %1010 = vmatmul.bf16.gmra.mxu0 %v997
    %v1011 = vpop.f32.mrf.mxu0
    %v1012 = vadd.f32 0.0, %v1011
    %v1013 = vpop.f32.mrf.mxu0
    %1014 = vdwg.mxu0
    %1016 = vrot.lane.b32.xlu0 %v1012, 24
    %v1017 = vpop.permute.xlu0 %1016
    %1019 = vst.msk [vmem:[#allocation2] sm:$0xff] %vm612, %v1017
    %v1020 = vld [vmem:[#allocation2] sm:$0xff]
    %v1021 = vpack.c.bf16 %v1020, %v1020
    %v1022 = vld [vmem:[#allocation17] sm:$0xf]
    %v1023 = vld [vmem:[#allocation17 + $0x4] sm:$0xf]
    %v1024 = vld [vmem:[#allocation17 + $0x8] sm:$0xf]
    %v1025 = vld [vmem:[#allocation17 + $0xc] sm:$0xf]
    %v1026 = vld [vmem:[#allocation18] sm:$0x1]
    %v1028 = vperm.slane %v1026, 0
    %v1034 = vunpack.c.l.b16 %v1022
    %v1035 = vunpack.c.l.b16 %v1023
    %v1036 = vunpack.c.l.b16 %v1024
    %v1037 = vunpack.c.l.b16 %v1025
    %v1038 = vpack.c.b16 %v1035, %v1034
    %v1039 = vpack.c.b16 %v1037, %v1036
    %v1043 = vsel %vm282, %v1021, 0
    %1045 = vmatpush.bf16.msra.mxu0 0
    %1046 = vmatpush.bf16.msra.mxu0 0
    %1047 = vmatpush.bf16.msra.mxu0 0
    %1048 = vmatpush.bf16.msra.mxu0 0
    %1049 = vmatpush.bf16.msra.mxu0 0
    %1050 = vmatpush.bf16.msra.mxu0 0
    %1051 = vmatpush.bf16.msra.mxu0 %v1039
    %1052 = vmatpush.bf16.msra.mxu0 %v1038
    %1053 = vmatmul.bf16.gmra.mxu0 %v1043
    %v1054 = vpop.f32.mrf.mxu0
    %v1055 = vadd.f32 %v1028, %v1054
    %v1056 = vpop.f32.mrf.mxu0
    %1057 = vdwg.mxu0
    %v1058 = vadd.f32 %v652, %v1055
    %v1059 = vld [vmem:[%s21] sm:$0x1]
    %v1060 = vld [vmem:[%s22] sm:$0x1]
    %v1061 = vsel %vm282, %v1058, 0.0
    %1062 = vadd.xlane.f32.xlu0 %v1061
    %v1063 = vpop.xlane.xlu0 %1062
    %v1064 = vmul.f32 %v1063, 0.03125
    %v1065 = vsub.f32 %v1058, %v1064
    %v1066 = vmul.f32 %v1065, %v1065
    %v1067 = vsel %vm282, %v1066, 0.0
    %1068 = vadd.xlane.f32.xlu0 %v1067
    %v1069 = vpop.xlane.xlu0 %1068
    %v1070 = vmul.f32 %v1069, 0.032258064
    %v1071 = vrsqrt.pop %v1070
    %v1072 = vmul.f32 %v1071, %v1070
    %v1073 = vmul.f32 %v1072, %v1071
    %v1074 = vmul.f32 0.5, %v1073
    %v1075 = vsub.f32 1.5, %v1074
    %v1076 = vmul.f32 %v1071, %v1075
    %v1077 = vmul.f32 %v1070, %v1076
    %vm1078 = vcmp.eq.f32.partialorder %v1070, inf
    %v1079 = vsel %vm1078, %v1070, %v1077
    %vm1080 = vcmp.eq.f32.partialorder %v1070, 0.0
    %v1081 = vand.u32 %v1070, 2147483648
    %v1082 = vsel %vm1080, %v1081, %v1079
    %v1083 = vadd.f32 %v1082, 1e-06
    %v1084 = vrcp.pop %v1083
    %v1085 = vmul.f32 %v1083, %v1084
    %v1086 = vsub.f32 1.0, %v1085
    %v1087 = vmul.f32 %v1084, %v1086
    %v1088 = vadd.f32 %v1084, %v1087
    %vm1089 = vweird.f32 %v1083
    %vm1090 = vweird.f32 %v1084
    %vm1091 = vmor %vm1089, %vm1090
    %v1092 = vsel %vm1091, %v1084, %v1088
    %v1093 = vand.u32 2147483647, %v1083
    %vm1094 = vcmp.eq.f32.partialorder %v1093, 8.507059e+37
    %v1095 = vand.u32 %v1083, 2147483648
    %v1096 = vor.u32 1.1754944e-38, %v1095
    %v1097 = vsel %vm1094, %v1096, %v1092
    %v1098 = vmul.f32 1.0, %v1097
    %v1099 = vmul.f32 %v1065, %v1098
    %v1101 = vperm.slane %v1059, 0
    %v1103 = vmul.f32 %v1101, %v1099
    %v1105 = vperm.slane %v1060, 0
    %v1107 = vadd.f32 %v1103, %v1105
    %v1108 = vpack.c.bf16 %v1107, %v1107
    %v1109 = vld [vmem:[%s20] sm:$0x1]
    %v1111 = vperm.slane %v1109, 0
    %v1113 = vadd.f32 %v1058, %v1111
    %v1114 = vld [vmem:[#allocation23] sm:$0xf]
    %v1115 = vld [vmem:[#allocation23 + $0x4] sm:$0xf]
    %v1116 = vld [vmem:[#allocation23 + $0x8] sm:$0xf]
    %v1117 = vld [vmem:[#allocation23 + $0xc] sm:$0xf]
    %v1118 = vld [vmem:[#allocation24] sm:$0x1]
    %v1120 = vperm.slane %v1118, 0
    %v1126 = vunpack.c.l.b16 %v1114
    %v1127 = vunpack.c.l.b16 %v1115
    %v1128 = vunpack.c.l.b16 %v1116
    %v1129 = vunpack.c.l.b16 %v1117
    %v1130 = vpack.c.b16 %v1127, %v1126
    %v1131 = vpack.c.b16 %v1129, %v1128
    %v1135 = vsel %vm282, %v1108, 0
    %1137 = vmatpush.bf16.msra.mxu0 0
    %1138 = vmatpush.bf16.msra.mxu0 0
    %1139 = vmatpush.bf16.msra.mxu0 0
    %1140 = vmatpush.bf16.msra.mxu0 0
    %1141 = vmatpush.bf16.msra.mxu0 0
    %1142 = vmatpush.bf16.msra.mxu0 0
    %1143 = vmatpush.bf16.msra.mxu0 %v1131
    %1144 = vmatpush.bf16.msra.mxu0 %v1130
    %1145 = vmatmul.bf16.gmra.mxu0 %v1135
    %v1146 = vpop.f32.mrf.mxu0
    %v1147 = vadd.f32 %v1120, %v1146
    %v1148 = vpop.f32.mrf.mxu0
    %1149 = vdwg.mxu0
    %v1150 = vmax.f32 %v1147, 0.0
    %v1151 = vpack.c.bf16 %v1150, %v1150
    %v1152 = vld [vmem:[%s19] sm:$0xf]
    %v1153 = vld [vmem:[%s19 + $0x4] sm:$0xf]
    %v1154 = vld [vmem:[%s19 + $0x8] sm:$0xf]
    %v1155 = vld [vmem:[%s19 + $0xc] sm:$0xf]
    %v1156 = vld [vmem:[%s19 + $0x10] sm:$0xf]
    %v1157 = vld [vmem:[%s19 + $0x14] sm:$0xf]
    %v1158 = vld [vmem:[%s19 + $0x18] sm:$0xf]
    %v1159 = vld [vmem:[%s19 + $0x1c] sm:$0xf]
    %v1168 = vunpack.c.l.b16 %v1152
    %v1169 = vunpack.c.l.b16 %v1153
    %v1170 = vunpack.c.l.b16 %v1154
    %v1171 = vunpack.c.l.b16 %v1155
    %v1172 = vunpack.c.l.b16 %v1156
    %v1173 = vunpack.c.l.b16 %v1157
    %v1174 = vunpack.c.l.b16 %v1158
    %v1175 = vunpack.c.l.b16 %v1159
    %v1176 = vpack.c.b16 %v1169, %v1168
    %v1177 = vpack.c.b16 %v1171, %v1170
    %v1178 = vpack.c.b16 %v1173, %v1172
    %v1179 = vpack.c.b16 %v1175, %v1174
    %vm1184 = vcmask 523264
    %v1186 = vsel %vm1184, %v1151, 0
    %1188 = vmatpush.bf16.msra.mxu0 0
    %1189 = vmatpush.bf16.msra.mxu0 0
    %1190 = vmatpush.bf16.msra.mxu0 0
    %1191 = vmatpush.bf16.msra.mxu0 0
    %1192 = vmatpush.bf16.msra.mxu0 %v1179
    %1193 = vmatpush.bf16.msra.mxu0 %v1178
    %1194 = vmatpush.bf16.msra.mxu0 %v1177
    %1195 = vmatpush.bf16.msra.mxu0 %v1176
    %1196 = vmatmul.bf16.gmra.mxu0 %v1186
    %v1197 = vpop.f32.mrf.mxu0
    %v1198 = vadd.f32 0.0, %v1197
    %v1199 = vpop.f32.mrf.mxu0
    %1200 = vdwg.mxu0
    %v1201 = vadd.f32 %v1113, %v1198
    %1202 = vst.msk [vmem:[#allocation26] sm:$0xff] %vm282, %v1201
    %s1203 = scalar_lea.vmem %s0, 8
    %v1204 = vld [vmem:[%s1203] sm:$0xff]
    %s1205 = scalar_lea.vmem %s1, 8
    %v1206 = vld [vmem:[%s1205] sm:$0xff]
    %v1207 = vld [vmem:[#allocation8] sm:$0x1]
    %v1208 = vld [vmem:[#allocation9] sm:$0x1]
    %v1209 = vsel %vm282, %v1204, 0.0
    %1210 = vadd.xlane.f32.xlu0 %v1209
    %v1211 = vpop.xlane.xlu0 %1210
    %v1212 = vmul.f32 %v1211, 0.03125
    %v1213 = vsub.f32 %v1204, %v1212
    %v1214 = vmul.f32 %v1213, %v1213
    %v1215 = vsel %vm282, %v1214, 0.0
    %1216 = vadd.xlane.f32.xlu0 %v1215
    %v1217 = vpop.xlane.xlu0 %1216
    %v1218 = vmul.f32 %v1217, 0.032258064
    %v1219 = vrsqrt.pop %v1218
    %v1220 = vmul.f32 %v1219, %v1218
    %v1221 = vmul.f32 %v1220, %v1219
    %v1222 = vmul.f32 0.5, %v1221
    %v1223 = vsub.f32 1.5, %v1222
    %v1224 = vmul.f32 %v1219, %v1223
    %v1225 = vmul.f32 %v1218, %v1224
    %vm1226 = vcmp.eq.f32.partialorder %v1218, inf
    %v1227 = vsel %vm1226, %v1218, %v1225
    %vm1228 = vcmp.eq.f32.partialorder %v1218, 0.0
    %v1229 = vand.u32 %v1218, 2147483648
    %v1230 = vsel %vm1228, %v1229, %v1227
    %v1231 = vadd.f32 %v1230, 1e-06
    %v1232 = vrcp.pop %v1231
    %v1233 = vmul.f32 %v1231, %v1232
    %v1234 = vsub.f32 1.0, %v1233
    %v1235 = vmul.f32 %v1232, %v1234
    %v1236 = vadd.f32 %v1232, %v1235
    %vm1237 = vweird.f32 %v1231
    %vm1238 = vweird.f32 %v1232
    %vm1239 = vmor %vm1237, %vm1238
    %v1240 = vsel %vm1239, %v1232, %v1236
    %v1241 = vand.u32 2147483647, %v1231
    %vm1242 = vcmp.eq.f32.partialorder %v1241, 8.507059e+37
    %v1243 = vand.u32 %v1231, 2147483648
    %v1244 = vor.u32 1.1754944e-38, %v1243
    %v1245 = vsel %vm1242, %v1244, %v1240
    %v1246 = vmul.f32 1.0, %v1245
    %v1247 = vmul.f32 %v1213, %v1246
    %v1249 = vperm.slane %v1207, 0
    %v1251 = vmul.f32 %v1249, %v1247
    %v1253 = vperm.slane %v1208, 0
    %v1255 = vadd.f32 %v1251, %v1253
    %v1256 = vpack.c.bf16 %v1255, %v1255
    %v1257 = vld [vmem:[%s3] sm:$0xf]
    %v1258 = vld [vmem:[%s3 + $0x4] sm:$0xf]
    %v1259 = vld [vmem:[%s3 + $0x8] sm:$0xf]
    %v1260 = vld [vmem:[%s3 + $0xc] sm:$0xf]
    %v1261 = vld [vmem:[%s4] sm:$0x1]
    %v1263 = vperm.slane %v1261, 0
    %v1269 = vunpack.c.l.b16 %v1257
    %v1270 = vunpack.c.l.b16 %v1258
    %v1271 = vunpack.c.l.b16 %v1259
    %v1272 = vunpack.c.l.b16 %v1260
    %v1273 = vpack.c.b16 %v1270, %v1269
    %v1274 = vpack.c.b16 %v1272, %v1271
    %v1278 = vsel %vm282, %v1256, 0
    %1280 = vmatpush.bf16.msra.mxu0 0
    %1281 = vmatpush.bf16.msra.mxu0 0
    %1282 = vmatpush.bf16.msra.mxu0 0
    %1283 = vmatpush.bf16.msra.mxu0 0
    %1284 = vmatpush.bf16.msra.mxu0 0
    %1285 = vmatpush.bf16.msra.mxu0 0
    %1286 = vmatpush.bf16.msra.mxu0 %v1274
    %1287 = vmatpush.bf16.msra.mxu0 %v1273
    %1288 = vmatmul.bf16.gmra.mxu0 %v1278
    %v1289 = vpop.f32.mrf.mxu0
    %v1290 = vadd.f32 %v1263, %v1289
    %v1291 = vpop.f32.mrf.mxu0
    %1292 = vdwg.mxu0
    %v1293 = vpack.c.bf16 %v1290, %v1290
    %v1295 = vunpack.c.l.b16 %v1293
    %v1296 = vpack.c.b16 %v1295, %v1295
    %1297 = vrot.lane.b32.xlu0 %v1296, 96
    %v1298 = vpop.permute.xlu0 %1297
    %v1300 = vsel %vm373, %v1293, 0
    %v1303 = vsel %vm373, %v1298, 0
    %1305 = vmatpush.bf16.xpose.msra.mxu0 0
    %1306 = vmatpush.bf16.xpose.msra.mxu0 0
    %1307 = vmatpush.bf16.xpose.msra.mxu0 0
    %1308 = vmatpush.bf16.xpose.msra.mxu0 0
    %1309 = vmatpush.bf16.xpose.msra.mxu0 0
    %1310 = vmatpush.bf16.xpose.msra.mxu0 0
    %1311 = vmatpush.bf16.xpose.msra.mxu0 0
    %1312 = vmatpush.bf16.xpose.msra.mxu0 %v1303
    %1313 = vmatmul.bf16.gmra.mxu0 %v1300
    %v1314 = vpop.f32.mrf.mxu0
    %v1315 = vadd.f32 %v277, %v1314
    %v1316 = vpop.f32.mrf.mxu0
    %1317 = vdwg.mxu0
    %v1318 = vsel %vm373, %v1315, -inf
    %1319 = vmax.xlane.f32.xlu0 %v1318
    %v1320 = vpop.xlane.xlu0 %1319
    %v1321 = vsub.f32 %v1315, %v1320
    %v1322 = vmul.f32 %v1321, 1.442695
    %v1323 = vpow.pop %v1322
    %v1324 = vsel %vm373, %v1323, 0.0
    %1325 = vadd.xlane.f32.xlu0 %v1324
    %v1326 = vpop.xlane.xlu0 %1325
    %v1327 = vrcp.pop %v1326
    %v1328 = vmul.f32 %v1323, %v1327
    %v1329 = vpack.c.bf16 %v1328, %v1328
    %1330 = vrot.lane.b32.xlu0 %v1296, 64
    %v1331 = vpop.permute.xlu0 %1330
    %v1333 = vsel %vm373, %v1329, 0
    %v1336 = vsel %vm410, %v1331, 0
    %1338 = vmatpush.bf16.msra.mxu0 0
    %1339 = vmatpush.bf16.msra.mxu0 0
    %1340 = vmatpush.bf16.msra.mxu0 0
    %1341 = vmatpush.bf16.msra.mxu0 0
    %1342 = vmatpush.bf16.msra.mxu0 0
    %1343 = vmatpush.bf16.msra.mxu0 0
    %1344 = vmatpush.bf16.msra.mxu0 0
    %1345 = vmatpush.bf16.msra.mxu0 %v1336
    %1346 = vmatmul.bf16.gmra.mxu0 %v1333
    %v1347 = vpop.f32.mrf.mxu0
    %v1348 = vadd.f32 0.0, %v1347
    %v1349 = vpop.f32.mrf.mxu0
    %1350 = vdwg.mxu0
    %1351 = vst.msk [vmem:[#allocation2] sm:$0xff] %vm373, %v1348
    %1352 = vrot.lane.b32.xlu0 %v1296, 120
    %v1353 = vpop.permute.xlu0 %1352
    %1354 = vrot.lane.b32.xlu0 %v1296, 88
    %v1355 = vpop.permute.xlu0 %1354
    %v1357 = vsel %vm373, %v1353, 0
    %v1360 = vsel %vm373, %v1355, 0
    %1362 = vmatpush.bf16.xpose.msra.mxu0 0
    %1363 = vmatpush.bf16.xpose.msra.mxu0 0
    %1364 = vmatpush.bf16.xpose.msra.mxu0 0
    %1365 = vmatpush.bf16.xpose.msra.mxu0 0
    %1366 = vmatpush.bf16.xpose.msra.mxu0 0
    %1367 = vmatpush.bf16.xpose.msra.mxu0 0
    %1368 = vmatpush.bf16.xpose.msra.mxu0 0
    %1369 = vmatpush.bf16.xpose.msra.mxu0 %v1360
    %1370 = vmatmul.bf16.gmra.mxu0 %v1357
    %v1371 = vpop.f32.mrf.mxu0
    %v1372 = vadd.f32 %v277, %v1371
    %v1373 = vpop.f32.mrf.mxu0
    %1374 = vdwg.mxu0
    %v1375 = vsel %vm373, %v1372, -inf
    %1376 = vmax.xlane.f32.xlu0 %v1375
    %v1377 = vpop.xlane.xlu0 %1376
    %v1378 = vsub.f32 %v1372, %v1377
    %v1379 = vmul.f32 %v1378, 1.442695
    %v1380 = vpow.pop %v1379
    %v1381 = vsel %vm373, %v1380, 0.0
    %1382 = vadd.xlane.f32.xlu0 %v1381
    %v1383 = vpop.xlane.xlu0 %1382
    %v1384 = vrcp.pop %v1383
    %v1385 = vmul.f32 %v1380, %v1384
    %v1386 = vpack.c.bf16 %v1385, %v1385
    %1387 = vrot.lane.b32.xlu0 %v1296, 56
    %v1388 = vpop.permute.xlu0 %1387
    %v1390 = vsel %vm373, %v1386, 0
    %v1393 = vsel %vm410, %v1388, 0
    %1395 = vmatpush.bf16.msra.mxu0 0
    %1396 = vmatpush.bf16.msra.mxu0 0
    %1397 = vmatpush.bf16.msra.mxu0 0
    %1398 = vmatpush.bf16.msra.mxu0 0
    %1399 = vmatpush.bf16.msra.mxu0 0
    %1400 = vmatpush.bf16.msra.mxu0 0
    %1401 = vmatpush.bf16.msra.mxu0 0
    %1402 = vmatpush.bf16.msra.mxu0 %v1393
    %1403 = vmatmul.bf16.gmra.mxu0 %v1390
    %v1404 = vpop.f32.mrf.mxu0
    %v1405 = vadd.f32 0.0, %v1404
    %v1406 = vpop.f32.mrf.mxu0
    %1407 = vdwg.mxu0
    %1409 = vrot.lane.b32.xlu0 %v1405, 8
    %v1410 = vpop.permute.xlu0 %1409
    %1412 = vst.msk [vmem:[#allocation2] sm:$0xff] %vm488, %v1410
    %1413 = vrot.lane.b32.xlu0 %v1296, 112
    %v1414 = vpop.permute.xlu0 %1413
    %1415 = vrot.lane.b32.xlu0 %v1296, 80
    %v1416 = vpop.permute.xlu0 %1415
    %v1418 = vsel %vm373, %v1414, 0
    %v1421 = vsel %vm373, %v1416, 0
    %1423 = vmatpush.bf16.xpose.msra.mxu0 0
    %1424 = vmatpush.bf16.xpose.msra.mxu0 0
    %1425 = vmatpush.bf16.xpose.msra.mxu0 0
    %1426 = vmatpush.bf16.xpose.msra.mxu0 0
    %1427 = vmatpush.bf16.xpose.msra.mxu0 0
    %1428 = vmatpush.bf16.xpose.msra.mxu0 0
    %1429 = vmatpush.bf16.xpose.msra.mxu0 0
    %1430 = vmatpush.bf16.xpose.msra.mxu0 %v1421
    %1431 = vmatmul.bf16.gmra.mxu0 %v1418
    %v1432 = vpop.f32.mrf.mxu0
    %v1433 = vadd.f32 %v277, %v1432
    %v1434 = vpop.f32.mrf.mxu0
    %1435 = vdwg.mxu0
    %v1436 = vsel %vm373, %v1433, -inf
    %1437 = vmax.xlane.f32.xlu0 %v1436
    %v1438 = vpop.xlane.xlu0 %1437
    %v1439 = vsub.f32 %v1433, %v1438
    %v1440 = vmul.f32 %v1439, 1.442695
    %v1441 = vpow.pop %v1440
    %v1442 = vsel %vm373, %v1441, 0.0
    %1443 = vadd.xlane.f32.xlu0 %v1442
    %v1444 = vpop.xlane.xlu0 %1443
    %v1445 = vrcp.pop %v1444
    %v1446 = vmul.f32 %v1441, %v1445
    %v1447 = vpack.c.bf16 %v1446, %v1446
    %1448 = vrot.lane.b32.xlu0 %v1296, 48
    %v1449 = vpop.permute.xlu0 %1448
    %v1451 = vsel %vm373, %v1447, 0
    %v1454 = vsel %vm410, %v1449, 0
    %1456 = vmatpush.bf16.msra.mxu0 0
    %1457 = vmatpush.bf16.msra.mxu0 0
    %1458 = vmatpush.bf16.msra.mxu0 0
    %1459 = vmatpush.bf16.msra.mxu0 0
    %1460 = vmatpush.bf16.msra.mxu0 0
    %1461 = vmatpush.bf16.msra.mxu0 0
    %1462 = vmatpush.bf16.msra.mxu0 0
    %1463 = vmatpush.bf16.msra.mxu0 %v1454
    %1464 = vmatmul.bf16.gmra.mxu0 %v1451
    %v1465 = vpop.f32.mrf.mxu0
    %v1466 = vadd.f32 0.0, %v1465
    %v1467 = vpop.f32.mrf.mxu0
    %1468 = vdwg.mxu0
    %1470 = vrot.lane.b32.xlu0 %v1466, 16
    %v1471 = vpop.permute.xlu0 %1470
    %1473 = vst.msk [vmem:[#allocation2] sm:$0xff] %vm550, %v1471
    %1474 = vrot.lane.b32.xlu0 %v1296, 104
    %v1475 = vpop.permute.xlu0 %1474
    %1476 = vrot.lane.b32.xlu0 %v1296, 72
    %v1477 = vpop.permute.xlu0 %1476
    %v1479 = vsel %vm373, %v1475, 0
    %v1482 = vsel %vm373, %v1477, 0
    %1484 = vmatpush.bf16.xpose.msra.mxu0 0
    %1485 = vmatpush.bf16.xpose.msra.mxu0 0
    %1486 = vmatpush.bf16.xpose.msra.mxu0 0
    %1487 = vmatpush.bf16.xpose.msra.mxu0 0
    %1488 = vmatpush.bf16.xpose.msra.mxu0 0
    %1489 = vmatpush.bf16.xpose.msra.mxu0 0
    %1490 = vmatpush.bf16.xpose.msra.mxu0 0
    %1491 = vmatpush.bf16.xpose.msra.mxu0 %v1482
    %1492 = vmatmul.bf16.gmra.mxu0 %v1479
    %v1493 = vpop.f32.mrf.mxu0
    %v1494 = vadd.f32 %v277, %v1493
    %v1495 = vpop.f32.mrf.mxu0
    %1496 = vdwg.mxu0
    %v1497 = vsel %vm373, %v1494, -inf
    %1498 = vmax.xlane.f32.xlu0 %v1497
    %v1499 = vpop.xlane.xlu0 %1498
    %v1500 = vsub.f32 %v1494, %v1499
    %v1501 = vmul.f32 %v1500, 1.442695
    %v1502 = vpow.pop %v1501
    %v1503 = vsel %vm373, %v1502, 0.0
    %1504 = vadd.xlane.f32.xlu0 %v1503
    %v1505 = vpop.xlane.xlu0 %1504
    %v1506 = vrcp.pop %v1505
    %v1507 = vmul.f32 %v1502, %v1506
    %v1508 = vpack.c.bf16 %v1507, %v1507
    %1509 = vrot.lane.b32.xlu0 %v1296, 40
    %v1510 = vpop.permute.xlu0 %1509
    %v1512 = vsel %vm373, %v1508, 0
    %v1515 = vsel %vm410, %v1510, 0
    %1517 = vmatpush.bf16.msra.mxu0 0
    %1518 = vmatpush.bf16.msra.mxu0 0
    %1519 = vmatpush.bf16.msra.mxu0 0
    %1520 = vmatpush.bf16.msra.mxu0 0
    %1521 = vmatpush.bf16.msra.mxu0 0
    %1522 = vmatpush.bf16.msra.mxu0 0
    %1523 = vmatpush.bf16.msra.mxu0 0
    %1524 = vmatpush.bf16.msra.mxu0 %v1515
    %1525 = vmatmul.bf16.gmra.mxu0 %v1512
    %v1526 = vpop.f32.mrf.mxu0
    %v1527 = vadd.f32 0.0, %v1526
    %v1528 = vpop.f32.mrf.mxu0
    %1529 = vdwg.mxu0
    %1531 = vrot.lane.b32.xlu0 %v1527, 24
    %v1532 = vpop.permute.xlu0 %1531
    %1534 = vst.msk [vmem:[#allocation2] sm:$0xff] %vm612, %v1532
    %v1535 = vld [vmem:[#allocation2] sm:$0xff]
    %v1536 = vpack.c.bf16 %v1535, %v1535
    %v1537 = vld [vmem:[#allocation6] sm:$0xf]
    %v1538 = vld [vmem:[#allocation6 + $0x4] sm:$0xf]
    %v1539 = vld [vmem:[#allocation6 + $0x8] sm:$0xf]
    %v1540 = vld [vmem:[#allocation6 + $0xc] sm:$0xf]
    %v1541 = vld [vmem:[%s6] sm:$0x1]
    %v1543 = vperm.slane %v1541, 0
    %v1549 = vunpack.c.l.b16 %v1537
    %v1550 = vunpack.c.l.b16 %v1538
    %v1551 = vunpack.c.l.b16 %v1539
    %v1552 = vunpack.c.l.b16 %v1540
    %v1553 = vpack.c.b16 %v1550, %v1549
    %v1554 = vpack.c.b16 %v1552, %v1551
    %v1558 = vsel %vm282, %v1536, 0
    %1560 = vmatpush.bf16.msra.mxu0 0
    %1561 = vmatpush.bf16.msra.mxu0 0
    %1562 = vmatpush.bf16.msra.mxu0 0
    %1563 = vmatpush.bf16.msra.mxu0 0
    %1564 = vmatpush.bf16.msra.mxu0 0
    %1565 = vmatpush.bf16.msra.mxu0 0
    %1566 = vmatpush.bf16.msra.mxu0 %v1554
    %1567 = vmatpush.bf16.msra.mxu0 %v1553
    %1568 = vmatmul.bf16.gmra.mxu0 %v1558
    %v1569 = vpop.f32.mrf.mxu0
    %v1570 = vadd.f32 %v1543, %v1569
    %v1571 = vpop.f32.mrf.mxu0
    %1572 = vdwg.mxu0
    %v1573 = vadd.f32 %v1204, %v1570
    %v1574 = vld [vmem:[#allocation20] sm:$0x1]
    %v1575 = vld [vmem:[#allocation21] sm:$0x1]
    %v1576 = vsel %vm282, %v1573, 0.0
    %1577 = vadd.xlane.f32.xlu0 %v1576
    %v1578 = vpop.xlane.xlu0 %1577
    %v1579 = vmul.f32 %v1578, 0.03125
    %v1580 = vsub.f32 %v1573, %v1579
    %v1581 = vmul.f32 %v1580, %v1580
    %v1582 = vsel %vm282, %v1581, 0.0
    %1583 = vadd.xlane.f32.xlu0 %v1582
    %v1584 = vpop.xlane.xlu0 %1583
    %v1585 = vmul.f32 %v1584, 0.032258064
    %v1586 = vrsqrt.pop %v1585
    %v1587 = vmul.f32 %v1586, %v1585
    %v1588 = vmul.f32 %v1587, %v1586
    %v1589 = vmul.f32 0.5, %v1588
    %v1590 = vsub.f32 1.5, %v1589
    %v1591 = vmul.f32 %v1586, %v1590
    %v1592 = vmul.f32 %v1585, %v1591
    %vm1593 = vcmp.eq.f32.partialorder %v1585, inf
    %v1594 = vsel %vm1593, %v1585, %v1592
    %vm1595 = vcmp.eq.f32.partialorder %v1585, 0.0
    %v1596 = vand.u32 %v1585, 2147483648
    %v1597 = vsel %vm1595, %v1596, %v1594
    %v1598 = vadd.f32 %v1597, 1e-06
    %v1599 = vrcp.pop %v1598
    %v1600 = vmul.f32 %v1598, %v1599
    %v1601 = vsub.f32 1.0, %v1600
    %v1602 = vmul.f32 %v1599, %v1601
    %v1603 = vadd.f32 %v1599, %v1602
    %vm1604 = vweird.f32 %v1598
    %vm1605 = vweird.f32 %v1599
    %vm1606 = vmor %vm1604, %vm1605
    %v1607 = vsel %vm1606, %v1599, %v1603
    %v1608 = vand.u32 2147483647, %v1598
    %vm1609 = vcmp.eq.f32.partialorder %v1608, 8.507059e+37
    %v1610 = vand.u32 %v1598, 2147483648
    %v1611 = vor.u32 1.1754944e-38, %v1610
    %v1612 = vsel %vm1609, %v1611, %v1607
    %v1613 = vmul.f32 1.0, %v1612
    %v1614 = vmul.f32 %v1580, %v1613
    %v1616 = vperm.slane %v1574, 0
    %v1618 = vmul.f32 %v1616, %v1614
    %v1620 = vperm.slane %v1575, 0
    %v1622 = vadd.f32 %v1618, %v1620
    %v1623 = vpack.c.bf16 %v1622, %v1622
    %v1624 = vld [vmem:[#allocation11] sm:$0xf]
    %v1625 = vld [vmem:[#allocation11 + $0x4] sm:$0xf]
    %v1626 = vld [vmem:[#allocation11 + $0x8] sm:$0xf]
    %v1627 = vld [vmem:[#allocation11 + $0xc] sm:$0xf]
    %v1628 = vld [vmem:[#allocation12] sm:$0x1]
    %v1630 = vperm.slane %v1628, 0
    %v1636 = vunpack.c.l.b16 %v1624
    %v1637 = vunpack.c.l.b16 %v1625
    %v1638 = vunpack.c.l.b16 %v1626
    %v1639 = vunpack.c.l.b16 %v1627
    %v1640 = vpack.c.b16 %v1637, %v1636
    %v1641 = vpack.c.b16 %v1639, %v1638
    %v1645 = vsel %vm282, %v1623, 0
    %1647 = vmatpush.bf16.msra.mxu0 0
    %1648 = vmatpush.bf16.msra.mxu0 0
    %1649 = vmatpush.bf16.msra.mxu0 0
    %1650 = vmatpush.bf16.msra.mxu0 0
    %1651 = vmatpush.bf16.msra.mxu0 0
    %1652 = vmatpush.bf16.msra.mxu0 0
    %1653 = vmatpush.bf16.msra.mxu0 %v1641
    %1654 = vmatpush.bf16.msra.mxu0 %v1640
    %1655 = vmatmul.bf16.gmra.mxu0 %v1645
    %v1656 = vpop.f32.mrf.mxu0
    %v1657 = vadd.f32 %v1630, %v1656
    %v1658 = vpop.f32.mrf.mxu0
    %1659 = vdwg.mxu0
    %v1660 = vpack.c.bf16 %v1206, %v1206
    %v1661 = vld [vmem:[#allocation14] sm:$0xf]
    %v1662 = vld [vmem:[#allocation14 + $0x4] sm:$0xf]
    %v1663 = vld [vmem:[#allocation14 + $0x8] sm:$0xf]
    %v1664 = vld [vmem:[#allocation14 + $0xc] sm:$0xf]
    %v1665 = vld [vmem:[#allocation15] sm:$0x1]
    %v1667 = vperm.slane %v1665, 0
    %v1673 = vunpack.c.l.b16 %v1661
    %v1674 = vunpack.c.l.b16 %v1662
    %v1675 = vunpack.c.l.b16 %v1663
    %v1676 = vunpack.c.l.b16 %v1664
    %v1677 = vpack.c.b16 %v1674, %v1673
    %v1678 = vpack.c.b16 %v1676, %v1675
    %v1682 = vsel %vm282, %v1660, 0
    %1684 = vmatpush.bf16.msra.mxu0 0
    %1685 = vmatpush.bf16.msra.mxu0 0
    %1686 = vmatpush.bf16.msra.mxu0 0
    %1687 = vmatpush.bf16.msra.mxu0 0
    %1688 = vmatpush.bf16.msra.mxu0 0
    %1689 = vmatpush.bf16.msra.mxu0 0
    %1690 = vmatpush.bf16.msra.mxu0 %v1678
    %1691 = vmatpush.bf16.msra.mxu0 %v1677
    %1692 = vmatmul.bf16.gmra.mxu0 %v1682
    %v1693 = vpop.f32.mrf.mxu0
    %v1694 = vadd.f32 %v1667, %v1693
    %v1695 = vpop.f32.mrf.mxu0
    %1696 = vdwg.mxu0
    %v1697 = vpack.c.bf16 %v1657, %v1657
    %v1698 = vpack.c.bf16 %v1694, %v1694
    %v1700 = vsel %vm373, %v1697, 0
    %v1703 = vsel %vm373, %v1698, 0
    %1705 = vmatpush.bf16.xpose.msra.mxu0 0
    %1706 = vmatpush.bf16.xpose.msra.mxu0 0
    %1707 = vmatpush.bf16.xpose.msra.mxu0 0
    %1708 = vmatpush.bf16.xpose.msra.mxu0 0
    %1709 = vmatpush.bf16.xpose.msra.mxu0 0
    %1710 = vmatpush.bf16.xpose.msra.mxu0 0
    %1711 = vmatpush.bf16.xpose.msra.mxu0 0
    %1712 = vmatpush.bf16.xpose.msra.mxu0 %v1703
    %1713 = vmatmul.bf16.gmra.mxu0 %v1700
    %v1714 = vpop.f32.mrf.mxu0
    %v1715 = vadd.f32 0.0, %v1714
    %v1716 = vpop.f32.mrf.mxu0
    %1717 = vdwg.mxu0
    %v1718 = vsel %vm373, %v1715, -inf
    %1719 = vmax.xlane.f32.xlu0 %v1718
    %v1720 = vpop.xlane.xlu0 %1719
    %v1721 = vsub.f32 %v1715, %v1720
    %v1722 = vmul.f32 %v1721, 1.442695
    %v1723 = vpow.pop %v1722
    %v1724 = vsel %vm373, %v1723, 0.0
    %1725 = vadd.xlane.f32.xlu0 %v1724
    %v1726 = vpop.xlane.xlu0 %1725
    %v1727 = vrcp.pop %v1726
    %v1728 = vmul.f32 %v1723, %v1727
    %v1729 = vpack.c.bf16 %v1728, %v1728
    %v1731 = vunpack.c.l.b16 %v1698
    %v1732 = vpack.c.b16 %v1731, %v1731
    %1733 = vrot.lane.b32.xlu0 %v1732, 96
    %v1734 = vpop.permute.xlu0 %1733
    %v1736 = vsel %vm373, %v1729, 0
    %v1739 = vsel %vm410, %v1734, 0
    %1741 = vmatpush.bf16.msra.mxu0 0
    %1742 = vmatpush.bf16.msra.mxu0 0
    %1743 = vmatpush.bf16.msra.mxu0 0
    %1744 = vmatpush.bf16.msra.mxu0 0
    %1745 = vmatpush.bf16.msra.mxu0 0
    %1746 = vmatpush.bf16.msra.mxu0 0
    %1747 = vmatpush.bf16.msra.mxu0 0
    %1748 = vmatpush.bf16.msra.mxu0 %v1739
    %1749 = vmatmul.bf16.gmra.mxu0 %v1736
    %v1750 = vpop.f32.mrf.mxu0
    %v1751 = vadd.f32 0.0, %v1750
    %v1752 = vpop.f32.mrf.mxu0
    %1753 = vdwg.mxu0
    %1754 = vst.msk [vmem:[#allocation2] sm:$0xff] %vm373, %v1751
    %v1756 = vunpack.c.l.b16 %v1697
    %v1757 = vpack.c.b16 %v1756, %v1756
    %1758 = vrot.lane.b32.xlu0 %v1757, 120
    %v1759 = vpop.permute.xlu0 %1758
    %1760 = vrot.lane.b32.xlu0 %v1732, 120
    %v1761 = vpop.permute.xlu0 %1760
    %v1763 = vsel %vm373, %v1759, 0
    %v1766 = vsel %vm373, %v1761, 0
    %1768 = vmatpush.bf16.xpose.msra.mxu0 0
    %1769 = vmatpush.bf16.xpose.msra.mxu0 0
    %1770 = vmatpush.bf16.xpose.msra.mxu0 0
    %1771 = vmatpush.bf16.xpose.msra.mxu0 0
    %1772 = vmatpush.bf16.xpose.msra.mxu0 0
    %1773 = vmatpush.bf16.xpose.msra.mxu0 0
    %1774 = vmatpush.bf16.xpose.msra.mxu0 0
    %1775 = vmatpush.bf16.xpose.msra.mxu0 %v1766
    %1776 = vmatmul.bf16.gmra.mxu0 %v1763
    %v1777 = vpop.f32.mrf.mxu0
    %v1778 = vadd.f32 0.0, %v1777
    %v1779 = vpop.f32.mrf.mxu0
    %1780 = vdwg.mxu0
    %v1781 = vsel %vm373, %v1778, -inf
    %1782 = vmax.xlane.f32.xlu0 %v1781
    %v1783 = vpop.xlane.xlu0 %1782
    %v1784 = vsub.f32 %v1778, %v1783
    %v1785 = vmul.f32 %v1784, 1.442695
    %v1786 = vpow.pop %v1785
    %v1787 = vsel %vm373, %v1786, 0.0
    %1788 = vadd.xlane.f32.xlu0 %v1787
    %v1789 = vpop.xlane.xlu0 %1788
    %v1790 = vrcp.pop %v1789
    %v1791 = vmul.f32 %v1786, %v1790
    %v1792 = vpack.c.bf16 %v1791, %v1791
    %1793 = vrot.lane.b32.xlu0 %v1732, 88
    %v1794 = vpop.permute.xlu0 %1793
    %v1796 = vsel %vm373, %v1792, 0
    %v1799 = vsel %vm410, %v1794, 0
    %1801 = vmatpush.bf16.msra.mxu0 0
    %1802 = vmatpush.bf16.msra.mxu0 0
    %1803 = vmatpush.bf16.msra.mxu0 0
    %1804 = vmatpush.bf16.msra.mxu0 0
    %1805 = vmatpush.bf16.msra.mxu0 0
    %1806 = vmatpush.bf16.msra.mxu0 0
    %1807 = vmatpush.bf16.msra.mxu0 0
    %1808 = vmatpush.bf16.msra.mxu0 %v1799
    %1809 = vmatmul.bf16.gmra.mxu0 %v1796
    %v1810 = vpop.f32.mrf.mxu0
    %v1811 = vadd.f32 0.0, %v1810
    %v1812 = vpop.f32.mrf.mxu0
    %1813 = vdwg.mxu0
    %1815 = vrot.lane.b32.xlu0 %v1811, 8
    %v1816 = vpop.permute.xlu0 %1815
    %1818 = vst.msk [vmem:[#allocation2] sm:$0xff] %vm488, %v1816
    %1819 = vrot.lane.b32.xlu0 %v1757, 112
    %v1820 = vpop.permute.xlu0 %1819
    %1821 = vrot.lane.b32.xlu0 %v1732, 112
    %v1822 = vpop.permute.xlu0 %1821
    %v1824 = vsel %vm373, %v1820, 0
    %v1827 = vsel %vm373, %v1822, 0
    %1829 = vmatpush.bf16.xpose.msra.mxu0 0
    %1830 = vmatpush.bf16.xpose.msra.mxu0 0
    %1831 = vmatpush.bf16.xpose.msra.mxu0 0
    %1832 = vmatpush.bf16.xpose.msra.mxu0 0
    %1833 = vmatpush.bf16.xpose.msra.mxu0 0
    %1834 = vmatpush.bf16.xpose.msra.mxu0 0
    %1835 = vmatpush.bf16.xpose.msra.mxu0 0
    %1836 = vmatpush.bf16.xpose.msra.mxu0 %v1827
    %1837 = vmatmul.bf16.gmra.mxu0 %v1824
    %v1838 = vpop.f32.mrf.mxu0
    %v1839 = vadd.f32 0.0, %v1838
    %v1840 = vpop.f32.mrf.mxu0
    %1841 = vdwg.mxu0
    %v1842 = vsel %vm373, %v1839, -inf
    %1843 = vmax.xlane.f32.xlu0 %v1842
    %v1844 = vpop.xlane.xlu0 %1843
    %v1845 = vsub.f32 %v1839, %v1844
    %v1846 = vmul.f32 %v1845, 1.442695
    %v1847 = vpow.pop %v1846
    %v1848 = vsel %vm373, %v1847, 0.0
    %1849 = vadd.xlane.f32.xlu0 %v1848
    %v1850 = vpop.xlane.xlu0 %1849
    %v1851 = vrcp.pop %v1850
    %v1852 = vmul.f32 %v1847, %v1851
    %v1853 = vpack.c.bf16 %v1852, %v1852
    %1854 = vrot.lane.b32.xlu0 %v1732, 80
    %v1855 = vpop.permute.xlu0 %1854
    %v1857 = vsel %vm373, %v1853, 0
    %v1860 = vsel %vm410, %v1855, 0
    %1862 = vmatpush.bf16.msra.mxu0 0
    %1863 = vmatpush.bf16.msra.mxu0 0
    %1864 = vmatpush.bf16.msra.mxu0 0
    %1865 = vmatpush.bf16.msra.mxu0 0
    %1866 = vmatpush.bf16.msra.mxu0 0
    %1867 = vmatpush.bf16.msra.mxu0 0
    %1868 = vmatpush.bf16.msra.mxu0 0
    %1869 = vmatpush.bf16.msra.mxu0 %v1860
    %1870 = vmatmul.bf16.gmra.mxu0 %v1857
    %v1871 = vpop.f32.mrf.mxu0
    %v1872 = vadd.f32 0.0, %v1871
    %v1873 = vpop.f32.mrf.mxu0
    %1874 = vdwg.mxu0
    %1876 = vrot.lane.b32.xlu0 %v1872, 16
    %v1877 = vpop.permute.xlu0 %1876
    %1879 = vst.msk [vmem:[#allocation2] sm:$0xff] %vm550, %v1877
    %1880 = vrot.lane.b32.xlu0 %v1757, 104
    %v1881 = vpop.permute.xlu0 %1880
    %1882 = vrot.lane.b32.xlu0 %v1732, 104
    %v1883 = vpop.permute.xlu0 %1882
    %v1885 = vsel %vm373, %v1881, 0
    %v1888 = vsel %vm373, %v1883, 0
    %1890 = vmatpush.bf16.xpose.msra.mxu0 0
    %1891 = vmatpush.bf16.xpose.msra.mxu0 0
    %1892 = vmatpush.bf16.xpose.msra.mxu0 0
    %1893 = vmatpush.bf16.xpose.msra.mxu0 0
    %1894 = vmatpush.bf16.xpose.msra.mxu0 0
    %1895 = vmatpush.bf16.xpose.msra.mxu0 0
    %1896 = vmatpush.bf16.xpose.msra.mxu0 0
    %1897 = vmatpush.bf16.xpose.msra.mxu0 %v1888
    %1898 = vmatmul.bf16.gmra.mxu0 %v1885
    %v1899 = vpop.f32.mrf.mxu0
    %v1900 = vadd.f32 0.0, %v1899
    %v1901 = vpop.f32.mrf.mxu0
    %1902 = vdwg.mxu0
    %v1903 = vsel %vm373, %v1900, -inf
    %1904 = vmax.xlane.f32.xlu0 %v1903
    %v1905 = vpop.xlane.xlu0 %1904
    %v1906 = vsub.f32 %v1900, %v1905
    %v1907 = vmul.f32 %v1906, 1.442695
    %v1908 = vpow.pop %v1907
    %v1909 = vsel %vm373, %v1908, 0.0
    %1910 = vadd.xlane.f32.xlu0 %v1909
    %v1911 = vpop.xlane.xlu0 %1910
    %v1912 = vrcp.pop %v1911
    %v1913 = vmul.f32 %v1908, %v1912
    %v1914 = vpack.c.bf16 %v1913, %v1913
    %1915 = vrot.lane.b32.xlu0 %v1732, 72
    %v1916 = vpop.permute.xlu0 %1915
    %v1918 = vsel %vm373, %v1914, 0
    %v1921 = vsel %vm410, %v1916, 0
    %1923 = vmatpush.bf16.msra.mxu0 0
    %1924 = vmatpush.bf16.msra.mxu0 0
    %1925 = vmatpush.bf16.msra.mxu0 0
    %1926 = vmatpush.bf16.msra.mxu0 0
    %1927 = vmatpush.bf16.msra.mxu0 0
    %1928 = vmatpush.bf16.msra.mxu0 0
    %1929 = vmatpush.bf16.msra.mxu0 0
    %1930 = vmatpush.bf16.msra.mxu0 %v1921
    %1931 = vmatmul.bf16.gmra.mxu0 %v1918
    %v1932 = vpop.f32.mrf.mxu0
    %v1933 = vadd.f32 0.0, %v1932
    %v1934 = vpop.f32.mrf.mxu0
    %1935 = vdwg.mxu0
    %1937 = vrot.lane.b32.xlu0 %v1933, 24
    %v1938 = vpop.permute.xlu0 %1937
    %1940 = vst.msk [vmem:[#allocation2] sm:$0xff] %vm612, %v1938
    %v1941 = vld [vmem:[#allocation2] sm:$0xff]
    %v1942 = vpack.c.bf16 %v1941, %v1941
    %v1943 = vld [vmem:[#allocation17] sm:$0xf]
    %v1944 = vld [vmem:[#allocation17 + $0x4] sm:$0xf]
    %v1945 = vld [vmem:[#allocation17 + $0x8] sm:$0xf]
    %v1946 = vld [vmem:[#allocation17 + $0xc] sm:$0xf]
    %v1947 = vld [vmem:[#allocation18] sm:$0x1]
    %v1949 = vperm.slane %v1947, 0
    %v1955 = vunpack.c.l.b16 %v1943
    %v1956 = vunpack.c.l.b16 %v1944
    %v1957 = vunpack.c.l.b16 %v1945
    %v1958 = vunpack.c.l.b16 %v1946
    %v1959 = vpack.c.b16 %v1956, %v1955
    %v1960 = vpack.c.b16 %v1958, %v1957
    %v1964 = vsel %vm282, %v1942, 0
    %1966 = vmatpush.bf16.msra.mxu0 0
    %1967 = vmatpush.bf16.msra.mxu0 0
    %1968 = vmatpush.bf16.msra.mxu0 0
    %1969 = vmatpush.bf16.msra.mxu0 0
    %1970 = vmatpush.bf16.msra.mxu0 0
    %1971 = vmatpush.bf16.msra.mxu0 0
    %1972 = vmatpush.bf16.msra.mxu0 %v1960
    %1973 = vmatpush.bf16.msra.mxu0 %v1959
    %1974 = vmatmul.bf16.gmra.mxu0 %v1964
    %v1975 = vpop.f32.mrf.mxu0
    %v1976 = vadd.f32 %v1949, %v1975
    %v1977 = vpop.f32.mrf.mxu0
    %1978 = vdwg.mxu0
    %v1979 = vadd.f32 %v1573, %v1976
    %v1980 = vld [vmem:[%s21] sm:$0x1]
    %v1981 = vld [vmem:[%s22] sm:$0x1]
    %v1982 = vsel %vm282, %v1979, 0.0
    %1983 = vadd.xlane.f32.xlu0 %v1982
    %v1984 = vpop.xlane.xlu0 %1983
    %v1985 = vmul.f32 %v1984, 0.03125
    %v1986 = vsub.f32 %v1979, %v1985
    %v1987 = vmul.f32 %v1986, %v1986
    %v1988 = vsel %vm282, %v1987, 0.0
    %1989 = vadd.xlane.f32.xlu0 %v1988
    %v1990 = vpop.xlane.xlu0 %1989
    %v1991 = vmul.f32 %v1990, 0.032258064
    %v1992 = vrsqrt.pop %v1991
    %v1993 = vmul.f32 %v1992, %v1991
    %v1994 = vmul.f32 %v1993, %v1992
    %v1995 = vmul.f32 0.5, %v1994
    %v1996 = vsub.f32 1.5, %v1995
    %v1997 = vmul.f32 %v1992, %v1996
    %v1998 = vmul.f32 %v1991, %v1997
    %vm1999 = vcmp.eq.f32.partialorder %v1991, inf
    %v2000 = vsel %vm1999, %v1991, %v1998
    %vm2001 = vcmp.eq.f32.partialorder %v1991, 0.0
    %v2002 = vand.u32 %v1991, 2147483648
    %v2003 = vsel %vm2001, %v2002, %v2000
    %v2004 = vadd.f32 %v2003, 1e-06
    %v2005 = vrcp.pop %v2004
    %v2006 = vmul.f32 %v2004, %v2005
    %v2007 = vsub.f32 1.0, %v2006
    %v2008 = vmul.f32 %v2005, %v2007
    %v2009 = vadd.f32 %v2005, %v2008
    %vm2010 = vweird.f32 %v2004
    %vm2011 = vweird.f32 %v2005
    %vm2012 = vmor %vm2010, %vm2011
    %v2013 = vsel %vm2012, %v2005, %v2009
    %v2014 = vand.u32 2147483647, %v2004
    %vm2015 = vcmp.eq.f32.partialorder %v2014, 8.507059e+37
    %v2016 = vand.u32 %v2004, 2147483648
    %v2017 = vor.u32 1.1754944e-38, %v2016
    %v2018 = vsel %vm2015, %v2017, %v2013
    %v2019 = vmul.f32 1.0, %v2018
    %v2020 = vmul.f32 %v1986, %v2019
    %v2022 = vperm.slane %v1980, 0
    %v2024 = vmul.f32 %v2022, %v2020
    %v2026 = vperm.slane %v1981, 0
    %v2028 = vadd.f32 %v2024, %v2026
    %v2029 = vpack.c.bf16 %v2028, %v2028
    %v2030 = vld [vmem:[%s20] sm:$0x1]
    %v2032 = vperm.slane %v2030, 0
    %v2034 = vadd.f32 %v1979, %v2032
    %v2035 = vld [vmem:[#allocation23] sm:$0xf]
    %v2036 = vld [vmem:[#allocation23 + $0x4] sm:$0xf]
    %v2037 = vld [vmem:[#allocation23 + $0x8] sm:$0xf]
    %v2038 = vld [vmem:[#allocation23 + $0xc] sm:$0xf]
    %v2039 = vld [vmem:[#allocation24] sm:$0x1]
    %v2041 = vperm.slane %v2039, 0
    %v2047 = vunpack.c.l.b16 %v2035
    %v2048 = vunpack.c.l.b16 %v2036
    %v2049 = vunpack.c.l.b16 %v2037
    %v2050 = vunpack.c.l.b16 %v2038
    %v2051 = vpack.c.b16 %v2048, %v2047
    %v2052 = vpack.c.b16 %v2050, %v2049
    %v2056 = vsel %vm282, %v2029, 0
    %2058 = vmatpush.bf16.msra.mxu0 0
    %2059 = vmatpush.bf16.msra.mxu0 0
    %2060 = vmatpush.bf16.msra.mxu0 0
    %2061 = vmatpush.bf16.msra.mxu0 0
    %2062 = vmatpush.bf16.msra.mxu0 0
    %2063 = vmatpush.bf16.msra.mxu0 0
    %2064 = vmatpush.bf16.msra.mxu0 %v2052
    %2065 = vmatpush.bf16.msra.mxu0 %v2051
    %2066 = vmatmul.bf16.gmra.mxu0 %v2056
    %v2067 = vpop.f32.mrf.mxu0
    %v2068 = vadd.f32 %v2041, %v2067
    %v2069 = vpop.f32.mrf.mxu0
    %2070 = vdwg.mxu0
    %v2071 = vmax.f32 %v2068, 0.0
    %v2072 = vpack.c.bf16 %v2071, %v2071
    %v2073 = vld [vmem:[%s19] sm:$0xf]
    %v2074 = vld [vmem:[%s19 + $0x4] sm:$0xf]
    %v2075 = vld [vmem:[%s19 + $0x8] sm:$0xf]
    %v2076 = vld [vmem:[%s19 + $0xc] sm:$0xf]
    %v2077 = vld [vmem:[%s19 + $0x10] sm:$0xf]
    %v2078 = vld [vmem:[%s19 + $0x14] sm:$0xf]
    %v2079 = vld [vmem:[%s19 + $0x18] sm:$0xf]
    %v2080 = vld [vmem:[%s19 + $0x1c] sm:$0xf]
    %v2089 = vunpack.c.l.b16 %v2073
    %v2090 = vunpack.c.l.b16 %v2074
    %v2091 = vunpack.c.l.b16 %v2075
    %v2092 = vunpack.c.l.b16 %v2076
    %v2093 = vunpack.c.l.b16 %v2077
    %v2094 = vunpack.c.l.b16 %v2078
    %v2095 = vunpack.c.l.b16 %v2079
    %v2096 = vunpack.c.l.b16 %v2080
    %v2097 = vpack.c.b16 %v2090, %v2089
    %v2098 = vpack.c.b16 %v2092, %v2091
    %v2099 = vpack.c.b16 %v2094, %v2093
    %v2100 = vpack.c.b16 %v2096, %v2095
    %v2106 = vsel %vm1184, %v2072, 0
    %2108 = vmatpush.bf16.msra.mxu0 0
    %2109 = vmatpush.bf16.msra.mxu0 0
    %2110 = vmatpush.bf16.msra.mxu0 0
    %2111 = vmatpush.bf16.msra.mxu0 0
    %2112 = vmatpush.bf16.msra.mxu0 %v2100
    %2113 = vmatpush.bf16.msra.mxu0 %v2099
    %2114 = vmatpush.bf16.msra.mxu0 %v2098
    %2115 = vmatpush.bf16.msra.mxu0 %v2097
    %2116 = vmatmul.bf16.gmra.mxu0 %v2106
    %v2117 = vpop.f32.mrf.mxu0
    %v2118 = vadd.f32 0.0, %v2117
    %v2119 = vpop.f32.mrf.mxu0
    %2120 = vdwg.mxu0
    %v2121 = vadd.f32 %v2034, %v2118
    %s2122 = scalar_lea.vmem [#allocation26], 8
    %2123 = vst.msk [vmem:[%s2122] sm:$0xff] %vm282, %v2121
    // Predicated region
    $region150: #{tpu_custom_call.1} parent=1 // pred_check
      _
    $region151: #{tpu_custom_call.1} parent=1 // pred_check_branch
      %2125 = sbr.rel (0) target = $region153
    $region152: #{tpu_custom_call.1} parent=1 // pred_region
      %2127 = vsyncadd [#allocation5], 0
      %s2128 = sshll.u32 [#allocation26], 4
      %s2129 = int_to_ptr.vmem [resolvable:$true] %s2128
      %s2130 = sshll.u32 %s23, 4
      %s2131 = int_to_ptr.hbm [resolvable:$true] %s2130
      %2136 = dma.vmem_to_hbm [thread:$0]  %s2129, 256, %s2131, [#allocation5], 128, 128, 8
    $region153: #{tpu_custom_call.1} parent=1 // pred_fallthru
      _
    // Predicated region
    $region154: #{tpu_custom_call.1} parent=1 // pred_check
      _
    $region155: #{tpu_custom_call.1} parent=1 // pred_check_branch
      %2138 = sbr.rel (0) target = $region157
    $region156: #{tpu_custom_call.1} parent=1 // pred_region
      %2140 = dma.done [#allocation5], 256
    $region157: #{tpu_custom_call.1} parent=1 // pred_fallthru
      _
    %2141 = vsyncpa [#allocation4], 1
    %2142 = vsyncpa [#allocation7], 1
    %2143 = vsyncpa [#allocation10], 1
    %2144 = vsyncpa [#allocation13], 1
    %2145 = vsyncpa [#allocation16], 1
    %2146 = vsyncpa [#allocation19], 1
    %2147 = vsyncpa [#allocation22], 1
    %2148 = vsyncpa [#allocation25], 1
    %2149 = vsyncpa [#allocation5], 1

</llo_original>
